<compile_context>
chip_gen: v7x
topology: tpu7x:2x2x1
jax: 0.10.0
libtpu: 0.0.40
codegen_flags: <defaults>
</compile_context>

<pallas_src>
import math
from functools import partial

import jax
import jax.numpy as jnp
from jax.experimental import pallas as pl
from jax.experimental.pallas import tpu as pltpu  # noqa: F401  (kept for TPU-specific params if needed)

# module-level hyperparameters from the PyTorch script
dropout = 0          # dropout == 0 -> identity, no kernel needed
d_hid = 200
nhead = 2
nlayers = 3


# -------------------- fused Pallas kernel --------------------

def _transformer_stack_kernel(x_ref, mask_ref,
                              wqkv_ref, bqkv_ref, wo_ref, bo_ref,
                              g1_ref, lb1_ref, w1_ref, fb1_ref,
                              w2_ref, fb2_ref, g2_ref, lb2_ref,
                              dec_w_ref, dec_b_ref,
                              o_ref, *, batch, seq_len, nheads, num_layers, eps):
    """Full post-norm TransformerEncoder (num_layers layers) + decoder linear, fully in VMEM.

    x_ref:    (N*S, E)  embeddings + positional encoding (row = n*S + s)
    mask_ref: (S, S)    additive attention mask (finite; -inf already clamped)
    weights:  stacked with a leading layer axis, pre-transposed / pre-packed at init
    o_ref:    (N*S, ntoken)
    """
    x = x_ref[...]                           # (NS, E) f32
    mask = mask_ref[...]                     # (S, S)  additive
    E = x.shape[-1]
    hd = E // nheads

    for l in range(num_layers):              # static unroll over layers (weights never leave VMEM)
        # ---- packed QKV projection: one (NS,E)@(E,3E) MXU push ----
        qkv = jnp.dot(x, wqkv_ref[l], preferred_element_type=jnp.float32) + bqkv_ref[l]  # (NS, 3E)

        # ---- per-(batch, head) attention (N*H = 4 tiny unrolled blocks), scale folded into Wq ----
        batch_rows = []
        for n in range(batch):
            r0 = n * seq_len
            head_outs = []
            for h in range(nheads):
                q = qkv[r0:r0 + seq_len, h * hd:(h + 1) * hd]              # (S, hd)
                k = qkv[r0:r0 + seq_len, E + h * hd:E + (h + 1) * hd]      # (S, hd)
                v = qkv[r0:r0 + seq_len, 2 * E + h * hd:2 * E + (h + 1) * hd]
                s = jax.lax.dot_general(q, k, (((1,), (1,)), ((), ())),
                                        preferred_element_type=jnp.float32) + mask      # (S, S)
                m = jnp.max(s, axis=-1, keepdims=True)
                p = jnp.exp(s - m)
                p = p / jnp.sum(p, axis=-1, keepdims=True)                 # exact softmax (parity)
                head_outs.append(jnp.dot(p, v, preferred_element_type=jnp.float32))      # (S, hd)
            batch_rows.append(jnp.concatenate(head_outs, axis=-1))         # (S, E)
        ctx = jnp.concatenate(batch_rows, axis=0)                          # (NS, E)

        # ---- single (E,E) output projection for all heads ----
        attn = jnp.dot(ctx, wo_ref[l], preferred_element_type=jnp.float32) + bo_ref[l]

        # ---- residual + LayerNorm 1 (PyTorch: biased variance, eps=1e-5) ----
        y = x + attn
        mu = jnp.mean(y, axis=-1, keepdims=True)
        yc = y - mu
        var = jnp.mean(yc * yc, axis=-1, keepdims=True)
        y = yc * jax.lax.rsqrt(var + eps) * g1_ref[l] + lb1_ref[l]

        # ---- feed forward (relu); hidden dim zero-padded to a multiple of 128 ----
        h1 = jnp.dot(y, w1_ref[l], preferred_element_type=jnp.float32) + fb1_ref[l]
        h1 = jnp.maximum(h1, 0.0)
        h2 = jnp.dot(h1, w2_ref[l], preferred_element_type=jnp.float32) + fb2_ref[l]

        # ---- residual + LayerNorm 2 ----
        z = y + h2
        mu2 = jnp.mean(z, axis=-1, keepdims=True)
        zc = z - mu2
        var2 = jnp.mean(zc * zc, axis=-1, keepdims=True)
        x = zc * jax.lax.rsqrt(var2 + eps) * g2_ref[l] + lb2_ref[l]

    # ---- decoder linear: (NS, E) @ (E, ntoken) ----
    # TODO(synk): for a realistic vocab size, split the decoder into a tiled pallas_call with
    # lane-dense (>=128) output blocks and per-generation VMEM caps; at ntoken=64 it fits trivially.
    o_ref[...] = jnp.dot(x, dec_w_ref[...], preferred_element_type=jnp.float32) + dec_b_ref[...]


def transformer_stack(x2d, mask, params, *, batch, seq_len, nheads, eps=1e-5):
    num_layers = params['wqkv'].shape[0]
    ntoken = params['dec_w_t'].shape[1]
    return pl.pallas_call(
        partial(_transformer_stack_kernel, batch=batch, seq_len=seq_len,
                nheads=nheads, num_layers=num_layers, eps=eps),
        out_shape=jax.ShapeDtypeStruct((x2d.shape[0], ntoken), jnp.float32),
    )(x2d, mask,
      params['wqkv'], params['bqkv'], params['wo'], params['bo'],
      params['ln1_g'], params['ln1_b'], params['w1'], params['b1'],
      params['w2'], params['b2'], params['ln2_g'], params['ln2_b'],
      params['dec_w_t'], params['dec_b'])


# -------------------- parameters (deterministic, synthetic) --------------------

def _uniform(key, shape, a):
    return jax.random.uniform(key, shape, jnp.float32, minval=-a, maxval=a)


def make_positional_encoding(d_model, max_len=5000):
    position = jnp.arange(max_len, dtype=jnp.float32)[:, None]
    div_term = jnp.exp(jnp.arange(0, d_model, 2, dtype=jnp.float32)
                       * (-math.log(10000.0) / d_model))
    pe = jnp.zeros((max_len, d_model), dtype=jnp.float32)
    pe = pe.at[:, 0::2].set(jnp.sin(position * div_term))
    pe = pe.at[:, 1::2].set(jnp.cos(position * div_term))
    return pe                                       # (max_len, d_model)


def init_params(key, ntoken, d_model, nheads, dff, num_layers):
    hd = d_model // nheads
    q_scale = 1.0 / math.sqrt(hd)
    dff_pad = ((dff + 127) // 128) * 128            # 200 -> 256: clean (8,128) tiling
    keys = jax.random.split(key, 2 + 6 * num_layers)
    ki = iter(keys)
    initrange = 0.1
    lim_e = 1.0 / math.sqrt(d_model)
    lim_h = 1.0 / math.sqrt(dff)

    p = {
        # sqrt(d_model) scale folded into the embedding table (decoder weight is independent)
        'emb_w_scaled': _uniform(next(ki), (ntoken, d_model), initrange) * math.sqrt(d_model),
        'pe': make_positional_encoding(d_model),
    }

    wqkv_l, bqkv_l, wo_l, bo_l = [], [], [], []
    g1_l, lb1_l, w1_l, b1_l, w2_l, b2_l, g2_l, lb2_l = [], [], [], [], [], [], [], []
    for _ in range(num_layers):
        in_proj = _uniform(next(ki), (3 * d_model, d_model), lim_e)       # PyTorch (3E, E)
        wqkv = in_proj.T                                                  # (E, 3E): [q | k | v]
        # fold 1/sqrt(head_dim) into the Q projection (in_proj_bias is zero, so nothing else to scale)
        wqkv = jnp.concatenate([wqkv[:, :d_model] * q_scale, wqkv[:, d_model:]], axis=1)
        out_proj = _uniform(next(ki), (d_model, d_model), lim_e)          # PyTorch (E, E)

        w1 = _uniform(next(ki), (dff, d_model), lim_e).T                  # (E, dff) pre-transposed
        b1 = _uniform(next(ki), (1, dff), lim_e)
        w2 = _uniform(next(ki), (d_model, dff), lim_h).T                  # (dff, E) pre-transposed
        b2 = _uniform(next(ki), (1, d_model), lim_h)
        # zero-pad FFN hidden dim (ReLU(0)=0 and zero rows of w2 contribute 0 -> numerics unchanged)
        w1 = jnp.pad(w1, ((0, 0), (0, dff_pad - dff)))
        b1 = jnp.pad(b1, ((0, 0), (0, dff_pad - dff)))
        w2 = jnp.pad(w2, ((0, dff_pad - dff), (0, 0)))

        wqkv_l.append(wqkv)
        bqkv_l.append(jnp.zeros((1, 3 * d_model), jnp.float32))
        wo_l.append(out_proj.T)                                           # (E, E) pre-transposed
        bo_l.append(jnp.zeros((1, d_model), jnp.float32))
        g1_l.append(jnp.ones((1, d_model), jnp.float32))
        lb1_l.append(jnp.zeros((1, d_model), jnp.float32))
        w1_l.append(w1); b1_l.append(b1); w2_l.append(w2); b2_l.append(b2)
        g2_l.append(jnp.ones((1, d_model), jnp.float32))
        lb2_l.append(jnp.zeros((1, d_model), jnp.float32))

    # stack per-layer weights with a leading layer axis so the single fused kernel holds them all
    p.update({
        'wqkv': jnp.stack(wqkv_l), 'bqkv': jnp.stack(bqkv_l),
        'wo': jnp.stack(wo_l), 'bo': jnp.stack(bo_l),
        'ln1_g': jnp.stack(g1_l), 'ln1_b': jnp.stack(lb1_l),
        'w1': jnp.stack(w1_l), 'b1': jnp.stack(b1_l),
        'w2': jnp.stack(w2_l), 'b2': jnp.stack(b2_l),
        'ln2_g': jnp.stack(g2_l), 'ln2_b': jnp.stack(lb2_l),
        'dec_w_t': _uniform(next(ki), (ntoken, d_model), initrange).T,    # (E, ntoken) pre-transposed
        'dec_b': jnp.zeros((1, ntoken), jnp.float32),
    })
    return p


# -------------------- forward pass --------------------

def transformer_forward(params, src, src_mask, *, d_model, nheads):
    S, N = src.shape
    E = d_model

    # embedding lookup (gather) + positional-encoding add stay in XLA glue; they fuse into one op
    # and the sqrt(d_model) scale is already folded into the table. dropout (p=0) is an identity.
    x = jnp.take(params['emb_w_scaled'], src.T, axis=0)        # (N, S, E) batch-first
    x = x + params['pe'][:S][None, :, :]                       # broadcast over batch
    x2d = x.reshape(N * S, E)                                  # row = n*S + s

    # clamp -inf to a large-negative constant (NaN-safe; identical softmax for any unmasked row)
    mask = jnp.maximum(src_mask.astype(jnp.float32), -1e30)

    out2d = transformer_stack(x2d, mask, params, batch=N, seq_len=S, nheads=nheads)  # (N*S, ntoken)
    return out2d.reshape(N, S, -1).transpose(1, 0, 2)          # back to PyTorch (S, N, ntoken)


if __name__ == "__main__":
    ntoken = 64
    d_model = 32
    S, N = 8, 2

    key = jax.random.PRNGKey(0)
    kp, ks = jax.random.split(key)
    params = init_params(kp, ntoken, d_model, nhead, d_hid, nlayers)

    src = jax.random.randint(ks, (S, N), 0, ntoken, dtype=jnp.int32)   # token ids, (S, N)
    # causal additive mask (like nn.Transformer.generate_square_subsequent_mask)
    src_mask = jnp.triu(jnp.full((S, S), -jnp.inf, jnp.float32), k=1)

    fwd = jax.jit(partial(transformer_forward, d_model=d_model, nheads=nhead))
    out = fwd(params, src, src_mask)
    jax.block_until_ready(out)
    assert out.shape == (S, N, ntoken) and out.dtype == jnp.float32
    assert bool(jnp.all(jnp.isfinite(out)))
    print("KERNEL_OK")
</pallas_src>

<mosaic_0001>
module attributes {stable_mosaic.version = 11 : i64} {
  func.func @_transformer_stack_kernel(%arg0: memref<16x32xf32, #tpu.memory_space<vmem>>, %arg1: memref<8x8xf32, #tpu.memory_space<vmem>>, %arg2: memref<3x32x96xf32, #tpu.memory_space<vmem>>, %arg3: memref<3x1x96xf32, #tpu.memory_space<vmem>>, %arg4: memref<3x32x32xf32, #tpu.memory_space<vmem>>, %arg5: memref<3x1x32xf32, #tpu.memory_space<vmem>>, %arg6: memref<3x1x32xf32, #tpu.memory_space<vmem>>, %arg7: memref<3x1x32xf32, #tpu.memory_space<vmem>>, %arg8: memref<3x32x256xf32, #tpu.memory_space<vmem>>, %arg9: memref<3x1x256xf32, #tpu.memory_space<vmem>>, %arg10: memref<3x256x32xf32, #tpu.memory_space<vmem>>, %arg11: memref<3x1x32xf32, #tpu.memory_space<vmem>>, %arg12: memref<3x1x32xf32, #tpu.memory_space<vmem>>, %arg13: memref<3x1x32xf32, #tpu.memory_space<vmem>>, %arg14: memref<32x64xf32, #tpu.memory_space<vmem>>, %arg15: memref<1x64xf32, #tpu.memory_space<vmem>>, %arg16: memref<16x64xf32, #tpu.memory_space<vmem>>) attributes {dimension_semantics = [], scalar_prefetch = 0 : i64, scratch_operands = 0 : i64, tpu.core_type = #tpu.core_type<tc>} {
    %c0 = arith.constant 0 : index
    %c0_0 = arith.constant 0 : index
    %0 = vector.load %arg0[%c0, %c0_0] : memref<16x32xf32, #tpu.memory_space<vmem>>, vector<16x32xf32>
    %c0_1 = arith.constant 0 : index
    %c0_2 = arith.constant 0 : index
    %1 = vector.load %arg1[%c0_1, %c0_2] : memref<8x8xf32, #tpu.memory_space<vmem>>, vector<8x8xf32>
    %c0_3 = arith.constant 0 : index
    %c0_4 = arith.constant 0 : index
    %c0_5 = arith.constant 0 : index
    %2 = vector.load %arg2[%c0_3, %c0_4, %c0_5] : memref<3x32x96xf32, #tpu.memory_space<vmem>>, vector<1x32x96xf32>
    %3 = vector.shape_cast %2 : vector<1x32x96xf32> to vector<32x96xf32>
    %cst = arith.constant dense<0.000000e+00> : vector<16x96xf32>
    %4 = tpu.matmul %0, %3, %cst {dimension_numbers = #tpu.dot_dimension_numbers<[1], [0], [0], [1], [0, 0, 1, 1], [], []>} : vector<16x32xf32>, vector<32x96xf32>, vector<16x96xf32> -> vector<16x96xf32>
    %c0_6 = arith.constant 0 : index
    %c0_7 = arith.constant 0 : index
    %c0_8 = arith.constant 0 : index
    %5 = vector.load %arg3[%c0_6, %c0_7, %c0_8] : memref<3x1x96xf32, #tpu.memory_space<vmem>>, vector<1x1x96xf32>
    %6 = vector.shape_cast %5 : vector<1x1x96xf32> to vector<1x96xf32>
    %7 = vector.broadcast %6 : vector<1x96xf32> to vector<16x96xf32>
    %8 = arith.addf %4, %7 : vector<16x96xf32>
    %9 = vector.extract_strided_slice %8 {offsets = [0, 0], sizes = [8, 16], strides = [1, 1]} : vector<16x96xf32> to vector<8x16xf32>
    %10 = vector.extract_strided_slice %8 {offsets = [0, 32], sizes = [8, 16], strides = [1, 1]} : vector<16x96xf32> to vector<8x16xf32>
    %11 = vector.extract_strided_slice %8 {offsets = [0, 64], sizes = [8, 16], strides = [1, 1]} : vector<16x96xf32> to vector<8x16xf32>
    %cst_9 = arith.constant dense<0.000000e+00> : vector<8x8xf32>
    %12 = tpu.matmul %9, %10, %cst_9 {dimension_numbers = #tpu.dot_dimension_numbers<[1], [1], [0], [0], [0, 0, 1, 0], [], []>} : vector<8x16xf32>, vector<8x16xf32>, vector<8x8xf32> -> vector<8x8xf32>
    %13 = arith.addf %12, %1 : vector<8x8xf32>
    %cst_10 = arith.constant dense<0xFF800000> : vector<8xf32>
    %14 = vector.multi_reduction <maximumf>, %13, %cst_10 [1] : vector<8x8xf32> to vector<8xf32>
    %15 = vector.shape_cast %14 : vector<8xf32> to vector<8x1xf32>
    %16 = vector.broadcast %15 : vector<8x1xf32> to vector<8x8xf32>
    %17 = arith.subf %13, %16 : vector<8x8xf32>
    %18 = math.exp %17 : vector<8x8xf32>
    %cst_11 = arith.constant dense<0.000000e+00> : vector<8xf32>
    %19 = vector.multi_reduction <add>, %18, %cst_11 [1] : vector<8x8xf32> to vector<8xf32>
    %20 = vector.shape_cast %19 : vector<8xf32> to vector<8x1xf32>
    %21 = vector.broadcast %20 : vector<8x1xf32> to vector<8x8xf32>
    %22 = arith.divf %18, %21 : vector<8x8xf32>
    %cst_12 = arith.constant dense<0.000000e+00> : vector<8x16xf32>
    %23 = tpu.matmul %22, %11, %cst_12 {dimension_numbers = #tpu.dot_dimension_numbers<[1], [0], [0], [1], [0, 0, 1, 1], [], []>} : vector<8x8xf32>, vector<8x16xf32>, vector<8x16xf32> -> vector<8x16xf32>
    %24 = vector.extract_strided_slice %8 {offsets = [0, 16], sizes = [8, 16], strides = [1, 1]} : vector<16x96xf32> to vector<8x16xf32>
    %25 = vector.extract_strided_slice %8 {offsets = [0, 48], sizes = [8, 16], strides = [1, 1]} : vector<16x96xf32> to vector<8x16xf32>
    %26 = vector.extract_strided_slice %8 {offsets = [0, 80], sizes = [8, 16], strides = [1, 1]} : vector<16x96xf32> to vector<8x16xf32>
    %cst_13 = arith.constant dense<0.000000e+00> : vector<8x8xf32>
    %27 = tpu.matmul %24, %25, %cst_13 {dimension_numbers = #tpu.dot_dimension_numbers<[1], [1], [0], [0], [0, 0, 1, 0], [], []>} : vector<8x16xf32>, vector<8x16xf32>, vector<8x8xf32> -> vector<8x8xf32>
    %28 = arith.addf %27, %1 : vector<8x8xf32>
    %cst_14 = arith.constant dense<0xFF800000> : vector<8xf32>
    %29 = vector.multi_reduction <maximumf>, %28, %cst_14 [1] : vector<8x8xf32> to vector<8xf32>
    %30 = vector.shape_cast %29 : vector<8xf32> to vector<8x1xf32>
    %31 = vector.broadcast %30 : vector<8x1xf32> to vector<8x8xf32>
    %32 = arith.subf %28, %31 : vector<8x8xf32>
    %33 = math.exp %32 : vector<8x8xf32>
    %cst_15 = arith.constant dense<0.000000e+00> : vector<8xf32>
    %34 = vector.multi_reduction <add>, %33, %cst_15 [1] : vector<8x8xf32> to vector<8xf32>
    %35 = vector.shape_cast %34 : vector<8xf32> to vector<8x1xf32>
    %36 = vector.broadcast %35 : vector<8x1xf32> to vector<8x8xf32>
    %37 = arith.divf %33, %36 : vector<8x8xf32>
    %cst_16 = arith.constant dense<0.000000e+00> : vector<8x16xf32>
    %38 = tpu.matmul %37, %26, %cst_16 {dimension_numbers = #tpu.dot_dimension_numbers<[1], [0], [0], [1], [0, 0, 1, 1], [], []>} : vector<8x8xf32>, vector<8x16xf32>, vector<8x16xf32> -> vector<8x16xf32>
    %39 = tpu.concatenate %23, %38 in 1 : vector<8x16xf32>, vector<8x16xf32> -> vector<8x32xf32>
    %40 = vector.extract_strided_slice %8 {offsets = [8, 0], sizes = [8, 16], strides = [1, 1]} : vector<16x96xf32> to vector<8x16xf32>
    %41 = vector.extract_strided_slice %8 {offsets = [8, 32], sizes = [8, 16], strides = [1, 1]} : vector<16x96xf32> to vector<8x16xf32>
    %42 = vector.extract_strided_slice %8 {offsets = [8, 64], sizes = [8, 16], strides = [1, 1]} : vector<16x96xf32> to vector<8x16xf32>
    %cst_17 = arith.constant dense<0.000000e+00> : vector<8x8xf32>
    %43 = tpu.matmul %40, %41, %cst_17 {dimension_numbers = #tpu.dot_dimension_numbers<[1], [1], [0], [0], [0, 0, 1, 0], [], []>} : vector<8x16xf32>, vector<8x16xf32>, vector<8x8xf32> -> vector<8x8xf32>
    %44 = arith.addf %43, %1 : vector<8x8xf32>
    %cst_18 = arith.constant dense<0xFF800000> : vector<8xf32>
    %45 = vector.multi_reduction <maximumf>, %44, %cst_18 [1] : vector<8x8xf32> to vector<8xf32>
    %46 = vector.shape_cast %45 : vector<8xf32> to vector<8x1xf32>
    %47 = vector.broadcast %46 : vector<8x1xf32> to vector<8x8xf32>
    %48 = arith.subf %44, %47 : vector<8x8xf32>
    %49 = math.exp %48 : vector<8x8xf32>
    %cst_19 = arith.constant dense<0.000000e+00> : vector<8xf32>
    %50 = vector.multi_reduction <add>, %49, %cst_19 [1] : vector<8x8xf32> to vector<8xf32>
    %51 = vector.shape_cast %50 : vector<8xf32> to vector<8x1xf32>
    %52 = vector.broadcast %51 : vector<8x1xf32> to vector<8x8xf32>
    %53 = arith.divf %49, %52 : vector<8x8xf32>
    %cst_20 = arith.constant dense<0.000000e+00> : vector<8x16xf32>
    %54 = tpu.matmul %53, %42, %cst_20 {dimension_numbers = #tpu.dot_dimension_numbers<[1], [0], [0], [1], [0, 0, 1, 1], [], []>} : vector<8x8xf32>, vector<8x16xf32>, vector<8x16xf32> -> vector<8x16xf32>
    %55 = vector.extract_strided_slice %8 {offsets = [8, 16], sizes = [8, 16], strides = [1, 1]} : vector<16x96xf32> to vector<8x16xf32>
    %56 = vector.extract_strided_slice %8 {offsets = [8, 48], sizes = [8, 16], strides = [1, 1]} : vector<16x96xf32> to vector<8x16xf32>
    %57 = vector.extract_strided_slice %8 {offsets = [8, 80], sizes = [8, 16], strides = [1, 1]} : vector<16x96xf32> to vector<8x16xf32>
    %cst_21 = arith.constant dense<0.000000e+00> : vector<8x8xf32>
    %58 = tpu.matmul %55, %56, %cst_21 {dimension_numbers = #tpu.dot_dimension_numbers<[1], [1], [0], [0], [0, 0, 1, 0], [], []>} : vector<8x16xf32>, vector<8x16xf32>, vector<8x8xf32> -> vector<8x8xf32>
    %59 = arith.addf %58, %1 : vector<8x8xf32>
    %cst_22 = arith.constant dense<0xFF800000> : vector<8xf32>
    %60 = vector.multi_reduction <maximumf>, %59, %cst_22 [1] : vector<8x8xf32> to vector<8xf32>
    %61 = vector.shape_cast %60 : vector<8xf32> to vector<8x1xf32>
    %62 = vector.broadcast %61 : vector<8x1xf32> to vector<8x8xf32>
    %63 = arith.subf %59, %62 : vector<8x8xf32>
    %64 = math.exp %63 : vector<8x8xf32>
    %cst_23 = arith.constant dense<0.000000e+00> : vector<8xf32>
    %65 = vector.multi_reduction <add>, %64, %cst_23 [1] : vector<8x8xf32> to vector<8xf32>
    %66 = vector.shape_cast %65 : vector<8xf32> to vector<8x1xf32>
    %67 = vector.broadcast %66 : vector<8x1xf32> to vector<8x8xf32>
    %68 = arith.divf %64, %67 : vector<8x8xf32>
    %cst_24 = arith.constant dense<0.000000e+00> : vector<8x16xf32>
    %69 = tpu.matmul %68, %57, %cst_24 {dimension_numbers = #tpu.dot_dimension_numbers<[1], [0], [0], [1], [0, 0, 1, 1], [], []>} : vector<8x8xf32>, vector<8x16xf32>, vector<8x16xf32> -> vector<8x16xf32>
    %70 = tpu.concatenate %54, %69 in 1 : vector<8x16xf32>, vector<8x16xf32> -> vector<8x32xf32>
    %71 = tpu.concatenate %39, %70 in 0 : vector<8x32xf32>, vector<8x32xf32> -> vector<16x32xf32>
    %c0_25 = arith.constant 0 : index
    %c0_26 = arith.constant 0 : index
    %c0_27 = arith.constant 0 : index
    %72 = vector.load %arg4[%c0_25, %c0_26, %c0_27] : memref<3x32x32xf32, #tpu.memory_space<vmem>>, vector<1x32x32xf32>
    %73 = vector.shape_cast %72 : vector<1x32x32xf32> to vector<32x32xf32>
    %cst_28 = arith.constant dense<0.000000e+00> : vector<16x32xf32>
    %74 = tpu.matmul %71, %73, %cst_28 {dimension_numbers = #tpu.dot_dimension_numbers<[1], [0], [0], [1], [0, 0, 1, 1], [], []>} : vector<16x32xf32>, vector<32x32xf32>, vector<16x32xf32> -> vector<16x32xf32>
    %c0_29 = arith.constant 0 : index
    %c0_30 = arith.constant 0 : index
    %c0_31 = arith.constant 0 : index
    %75 = vector.load %arg5[%c0_29, %c0_30, %c0_31] : memref<3x1x32xf32, #tpu.memory_space<vmem>>, vector<1x1x32xf32>
    %76 = vector.shape_cast %75 : vector<1x1x32xf32> to vector<1x32xf32>
    %77 = vector.broadcast %76 : vector<1x32xf32> to vector<16x32xf32>
    %78 = arith.addf %74, %77 : vector<16x32xf32>
    %79 = arith.addf %0, %78 : vector<16x32xf32>
    %cst_32 = arith.constant dense<0.000000e+00> : vector<16xf32>
    %80 = vector.multi_reduction <add>, %79, %cst_32 [1] : vector<16x32xf32> to vector<16xf32>
    %81 = vector.shape_cast %80 : vector<16xf32> to vector<16x1xf32>
    %cst_33 = arith.constant 3.200000e+01 : f32
    %82 = vector.broadcast %cst_33 : f32 to vector<16x1xf32>
    %83 = arith.divf %81, %82 : vector<16x1xf32>
    %84 = vector.broadcast %83 : vector<16x1xf32> to vector<16x32xf32>
    %85 = arith.subf %79, %84 : vector<16x32xf32>
    %86 = arith.mulf %85, %85 : vector<16x32xf32>
    %cst_34 = arith.constant dense<0.000000e+00> : vector<16xf32>
    %87 = vector.multi_reduction <add>, %86, %cst_34 [1] : vector<16x32xf32> to vector<16xf32>
    %88 = vector.shape_cast %87 : vector<16xf32> to vector<16x1xf32>
    %cst_35 = arith.constant 3.200000e+01 : f32
    %89 = vector.broadcast %cst_35 : f32 to vector<16x1xf32>
    %90 = arith.divf %88, %89 : vector<16x1xf32>
    %cst_36 = arith.constant 9.99999974E-6 : f32
    %91 = vector.broadcast %cst_36 : f32 to vector<16x1xf32>
    %92 = arith.addf %90, %91 : vector<16x1xf32>
    %93 = math.rsqrt %92 : vector<16x1xf32>
    %94 = vector.broadcast %93 : vector<16x1xf32> to vector<16x32xf32>
    %95 = arith.mulf %85, %94 : vector<16x32xf32>
    %c0_37 = arith.constant 0 : index
    %c0_38 = arith.constant 0 : index
    %c0_39 = arith.constant 0 : index
    %96 = vector.load %arg6[%c0_37, %c0_38, %c0_39] : memref<3x1x32xf32, #tpu.memory_space<vmem>>, vector<1x1x32xf32>
    %97 = vector.shape_cast %96 : vector<1x1x32xf32> to vector<1x32xf32>
    %98 = vector.broadcast %97 : vector<1x32xf32> to vector<16x32xf32>
    %99 = arith.mulf %95, %98 : vector<16x32xf32>
    %c0_40 = arith.constant 0 : index
    %c0_41 = arith.constant 0 : index
    %c0_42 = arith.constant 0 : index
    %100 = vector.load %arg7[%c0_40, %c0_41, %c0_42] : memref<3x1x32xf32, #tpu.memory_space<vmem>>, vector<1x1x32xf32>
    %101 = vector.shape_cast %100 : vector<1x1x32xf32> to vector<1x32xf32>
    %102 = vector.broadcast %101 : vector<1x32xf32> to vector<16x32xf32>
    %103 = arith.addf %99, %102 : vector<16x32xf32>
    %c0_43 = arith.constant 0 : index
    %c0_44 = arith.constant 0 : index
    %c0_45 = arith.constant 0 : index
    %104 = vector.load %arg8[%c0_43, %c0_44, %c0_45] : memref<3x32x256xf32, #tpu.memory_space<vmem>>, vector<1x32x256xf32>
    %105 = vector.shape_cast %104 : vector<1x32x256xf32> to vector<32x256xf32>
    %cst_46 = arith.constant dense<0.000000e+00> : vector<16x256xf32>
    %106 = tpu.matmul %103, %105, %cst_46 {dimension_numbers = #tpu.dot_dimension_numbers<[1], [0], [0], [1], [0, 0, 1, 1], [], []>} : vector<16x32xf32>, vector<32x256xf32>, vector<16x256xf32> -> vector<16x256xf32>
    %c0_47 = arith.constant 0 : index
    %c0_48 = arith.constant 0 : index
    %c0_49 = arith.constant 0 : index
    %107 = vector.load %arg9[%c0_47, %c0_48, %c0_49] : memref<3x1x256xf32, #tpu.memory_space<vmem>>, vector<1x1x256xf32>
    %108 = vector.shape_cast %107 : vector<1x1x256xf32> to vector<1x256xf32>
    %109 = vector.broadcast %108 : vector<1x256xf32> to vector<16x256xf32>
    %110 = arith.addf %106, %109 : vector<16x256xf32>
    %cst_50 = arith.constant 0.000000e+00 : f32
    %111 = vector.broadcast %cst_50 : f32 to vector<16x256xf32>
    %112 = arith.maximumf %110, %111 : vector<16x256xf32>
    %c0_51 = arith.constant 0 : index
    %c0_52 = arith.constant 0 : index
    %c0_53 = arith.constant 0 : index
    %113 = vector.load %arg10[%c0_51, %c0_52, %c0_53] : memref<3x256x32xf32, #tpu.memory_space<vmem>>, vector<1x256x32xf32>
    %114 = vector.shape_cast %113 : vector<1x256x32xf32> to vector<256x32xf32>
    %cst_54 = arith.constant dense<0.000000e+00> : vector<16x32xf32>
    %115 = tpu.matmul %112, %114, %cst_54 {dimension_numbers = #tpu.dot_dimension_numbers<[1], [0], [0], [1], [0, 0, 1, 1], [], []>} : vector<16x256xf32>, vector<256x32xf32>, vector<16x32xf32> -> vector<16x32xf32>
    %c0_55 = arith.constant 0 : index
    %c0_56 = arith.constant 0 : index
    %c0_57 = arith.constant 0 : index
    %116 = vector.load %arg11[%c0_55, %c0_56, %c0_57] : memref<3x1x32xf32, #tpu.memory_space<vmem>>, vector<1x1x32xf32>
    %117 = vector.shape_cast %116 : vector<1x1x32xf32> to vector<1x32xf32>
    %118 = vector.broadcast %117 : vector<1x32xf32> to vector<16x32xf32>
    %119 = arith.addf %115, %118 : vector<16x32xf32>
    %120 = arith.addf %103, %119 : vector<16x32xf32>
    %cst_58 = arith.constant dense<0.000000e+00> : vector<16xf32>
    %121 = vector.multi_reduction <add>, %120, %cst_58 [1] : vector<16x32xf32> to vector<16xf32>
    %122 = vector.shape_cast %121 : vector<16xf32> to vector<16x1xf32>
    %cst_59 = arith.constant 3.200000e+01 : f32
    %123 = vector.broadcast %cst_59 : f32 to vector<16x1xf32>
    %124 = arith.divf %122, %123 : vector<16x1xf32>
    %125 = vector.broadcast %124 : vector<16x1xf32> to vector<16x32xf32>
    %126 = arith.subf %120, %125 : vector<16x32xf32>
    %127 = arith.mulf %126, %126 : vector<16x32xf32>
    %cst_60 = arith.constant dense<0.000000e+00> : vector<16xf32>
    %128 = vector.multi_reduction <add>, %127, %cst_60 [1] : vector<16x32xf32> to vector<16xf32>
    %129 = vector.shape_cast %128 : vector<16xf32> to vector<16x1xf32>
    %cst_61 = arith.constant 3.200000e+01 : f32
    %130 = vector.broadcast %cst_61 : f32 to vector<16x1xf32>
    %131 = arith.divf %129, %130 : vector<16x1xf32>
    %cst_62 = arith.constant 9.99999974E-6 : f32
    %132 = vector.broadcast %cst_62 : f32 to vector<16x1xf32>
    %133 = arith.addf %131, %132 : vector<16x1xf32>
    %134 = math.rsqrt %133 : vector<16x1xf32>
    %135 = vector.broadcast %134 : vector<16x1xf32> to vector<16x32xf32>
    %136 = arith.mulf %126, %135 : vector<16x32xf32>
    %c0_63 = arith.constant 0 : index
    %c0_64 = arith.constant 0 : index
    %c0_65 = arith.constant 0 : index
    %137 = vector.load %arg12[%c0_63, %c0_64, %c0_65] : memref<3x1x32xf32, #tpu.memory_space<vmem>>, vector<1x1x32xf32>
    %138 = vector.shape_cast %137 : vector<1x1x32xf32> to vector<1x32xf32>
    %139 = vector.broadcast %138 : vector<1x32xf32> to vector<16x32xf32>
    %140 = arith.mulf %136, %139 : vector<16x32xf32>
    %c0_66 = arith.constant 0 : index
    %c0_67 = arith.constant 0 : index
    %c0_68 = arith.constant 0 : index
    %141 = vector.load %arg13[%c0_66, %c0_67, %c0_68] : memref<3x1x32xf32, #tpu.memory_space<vmem>>, vector<1x1x32xf32>
    %142 = vector.shape_cast %141 : vector<1x1x32xf32> to vector<1x32xf32>
    %143 = vector.broadcast %142 : vector<1x32xf32> to vector<16x32xf32>
    %144 = arith.addf %140, %143 : vector<16x32xf32>
    %c1 = arith.constant 1 : index
    %c0_69 = arith.constant 0 : index
    %c0_70 = arith.constant 0 : index
    %145 = vector.load %arg2[%c1, %c0_69, %c0_70] : memref<3x32x96xf32, #tpu.memory_space<vmem>>, vector<1x32x96xf32>
    %146 = vector.shape_cast %145 : vector<1x32x96xf32> to vector<32x96xf32>
    %cst_71 = arith.constant dense<0.000000e+00> : vector<16x96xf32>
    %147 = tpu.matmul %144, %146, %cst_71 {dimension_numbers = #tpu.dot_dimension_numbers<[1], [0], [0], [1], [0, 0, 1, 1], [], []>} : vector<16x32xf32>, vector<32x96xf32>, vector<16x96xf32> -> vector<16x96xf32>
    %c1_72 = arith.constant 1 : index
    %c0_73 = arith.constant 0 : index
    %c0_74 = arith.constant 0 : index
    %148 = vector.load %arg3[%c1_72, %c0_73, %c0_74] : memref<3x1x96xf32, #tpu.memory_space<vmem>>, vector<1x1x96xf32>
    %149 = vector.shape_cast %148 : vector<1x1x96xf32> to vector<1x96xf32>
    %150 = vector.broadcast %149 : vector<1x96xf32> to vector<16x96xf32>
    %151 = arith.addf %147, %150 : vector<16x96xf32>
    %152 = vector.extract_strided_slice %151 {offsets = [0, 0], sizes = [8, 16], strides = [1, 1]} : vector<16x96xf32> to vector<8x16xf32>
    %153 = vector.extract_strided_slice %151 {offsets = [0, 32], sizes = [8, 16], strides = [1, 1]} : vector<16x96xf32> to vector<8x16xf32>
    %154 = vector.extract_strided_slice %151 {offsets = [0, 64], sizes = [8, 16], strides = [1, 1]} : vector<16x96xf32> to vector<8x16xf32>
    %cst_75 = arith.constant dense<0.000000e+00> : vector<8x8xf32>
    %155 = tpu.matmul %152, %153, %cst_75 {dimension_numbers = #tpu.dot_dimension_numbers<[1], [1], [0], [0], [0, 0, 1, 0], [], []>} : vector<8x16xf32>, vector<8x16xf32>, vector<8x8xf32> -> vector<8x8xf32>
    %156 = arith.addf %155, %1 : vector<8x8xf32>
    %cst_76 = arith.constant dense<0xFF800000> : vector<8xf32>
    %157 = vector.multi_reduction <maximumf>, %156, %cst_76 [1] : vector<8x8xf32> to vector<8xf32>
    %158 = vector.shape_cast %157 : vector<8xf32> to vector<8x1xf32>
    %159 = vector.broadcast %158 : vector<8x1xf32> to vector<8x8xf32>
    %160 = arith.subf %156, %159 : vector<8x8xf32>
    %161 = math.exp %160 : vector<8x8xf32>
    %cst_77 = arith.constant dense<0.000000e+00> : vector<8xf32>
    %162 = vector.multi_reduction <add>, %161, %cst_77 [1] : vector<8x8xf32> to vector<8xf32>
    %163 = vector.shape_cast %162 : vector<8xf32> to vector<8x1xf32>
    %164 = vector.broadcast %163 : vector<8x1xf32> to vector<8x8xf32>
    %165 = arith.divf %161, %164 : vector<8x8xf32>
    %cst_78 = arith.constant dense<0.000000e+00> : vector<8x16xf32>
    %166 = tpu.matmul %165, %154, %cst_78 {dimension_numbers = #tpu.dot_dimension_numbers<[1], [0], [0], [1], [0, 0, 1, 1], [], []>} : vector<8x8xf32>, vector<8x16xf32>, vector<8x16xf32> -> vector<8x16xf32>
    %167 = vector.extract_strided_slice %151 {offsets = [0, 16], sizes = [8, 16], strides = [1, 1]} : vector<16x96xf32> to vector<8x16xf32>
    %168 = vector.extract_strided_slice %151 {offsets = [0, 48], sizes = [8, 16], strides = [1, 1]} : vector<16x96xf32> to vector<8x16xf32>
    %169 = vector.extract_strided_slice %151 {offsets = [0, 80], sizes = [8, 16], strides = [1, 1]} : vector<16x96xf32> to vector<8x16xf32>
    %cst_79 = arith.constant dense<0.000000e+00> : vector<8x8xf32>
    %170 = tpu.matmul %167, %168, %cst_79 {dimension_numbers = #tpu.dot_dimension_numbers<[1], [1], [0], [0], [0, 0, 1, 0], [], []>} : vector<8x16xf32>, vector<8x16xf32>, vector<8x8xf32> -> vector<8x8xf32>
    %171 = arith.addf %170, %1 : vector<8x8xf32>
    %cst_80 = arith.constant dense<0xFF800000> : vector<8xf32>
    %172 = vector.multi_reduction <maximumf>, %171, %cst_80 [1] : vector<8x8xf32> to vector<8xf32>
    %173 = vector.shape_cast %172 : vector<8xf32> to vector<8x1xf32>
    %174 = vector.broadcast %173 : vector<8x1xf32> to vector<8x8xf32>
    %175 = arith.subf %171, %174 : vector<8x8xf32>
    %176 = math.exp %175 : vector<8x8xf32>
    %cst_81 = arith.constant dense<0.000000e+00> : vector<8xf32>
    %177 = vector.multi_reduction <add>, %176, %cst_81 [1] : vector<8x8xf32> to vector<8xf32>
    %178 = vector.shape_cast %177 : vector<8xf32> to vector<8x1xf32>
    %179 = vector.broadcast %178 : vector<8x1xf32> to vector<8x8xf32>
    %180 = arith.divf %176, %179 : vector<8x8xf32>
    %cst_82 = arith.constant dense<0.000000e+00> : vector<8x16xf32>
    %181 = tpu.matmul %180, %169, %cst_82 {dimension_numbers = #tpu.dot_dimension_numbers<[1], [0], [0], [1], [0, 0, 1, 1], [], []>} : vector<8x8xf32>, vector<8x16xf32>, vector<8x16xf32> -> vector<8x16xf32>
    %182 = tpu.concatenate %166, %181 in 1 : vector<8x16xf32>, vector<8x16xf32> -> vector<8x32xf32>
    %183 = vector.extract_strided_slice %151 {offsets = [8, 0], sizes = [8, 16], strides = [1, 1]} : vector<16x96xf32> to vector<8x16xf32>
    %184 = vector.extract_strided_slice %151 {offsets = [8, 32], sizes = [8, 16], strides = [1, 1]} : vector<16x96xf32> to vector<8x16xf32>
    %185 = vector.extract_strided_slice %151 {offsets = [8, 64], sizes = [8, 16], strides = [1, 1]} : vector<16x96xf32> to vector<8x16xf32>
    %cst_83 = arith.constant dense<0.000000e+00> : vector<8x8xf32>
    %186 = tpu.matmul %183, %184, %cst_83 {dimension_numbers = #tpu.dot_dimension_numbers<[1], [1], [0], [0], [0, 0, 1, 0], [], []>} : vector<8x16xf32>, vector<8x16xf32>, vector<8x8xf32> -> vector<8x8xf32>
    %187 = arith.addf %186, %1 : vector<8x8xf32>
    %cst_84 = arith.constant dense<0xFF800000> : vector<8xf32>
    %188 = vector.multi_reduction <maximumf>, %187, %cst_84 [1] : vector<8x8xf32> to vector<8xf32>
    %189 = vector.shape_cast %188 : vector<8xf32> to vector<8x1xf32>
    %190 = vector.broadcast %189 : vector<8x1xf32> to vector<8x8xf32>
    %191 = arith.subf %187, %190 : vector<8x8xf32>
    %192 = math.exp %191 : vector<8x8xf32>
    %cst_85 = arith.constant dense<0.000000e+00> : vector<8xf32>
    %193 = vector.multi_reduction <add>, %192, %cst_85 [1] : vector<8x8xf32> to vector<8xf32>
    %194 = vector.shape_cast %193 : vector<8xf32> to vector<8x1xf32>
    %195 = vector.broadcast %194 : vector<8x1xf32> to vector<8x8xf32>
    %196 = arith.divf %192, %195 : vector<8x8xf32>
    %cst_86 = arith.constant dense<0.000000e+00> : vector<8x16xf32>
    %197 = tpu.matmul %196, %185, %cst_86 {dimension_numbers = #tpu.dot_dimension_numbers<[1], [0], [0], [1], [0, 0, 1, 1], [], []>} : vector<8x8xf32>, vector<8x16xf32>, vector<8x16xf32> -> vector<8x16xf32>
    %198 = vector.extract_strided_slice %151 {offsets = [8, 16], sizes = [8, 16], strides = [1, 1]} : vector<16x96xf32> to vector<8x16xf32>
    %199 = vector.extract_strided_slice %151 {offsets = [8, 48], sizes = [8, 16], strides = [1, 1]} : vector<16x96xf32> to vector<8x16xf32>
    %200 = vector.extract_strided_slice %151 {offsets = [8, 80], sizes = [8, 16], strides = [1, 1]} : vector<16x96xf32> to vector<8x16xf32>
    %cst_87 = arith.constant dense<0.000000e+00> : vector<8x8xf32>
    %201 = tpu.matmul %198, %199, %cst_87 {dimension_numbers = #tpu.dot_dimension_numbers<[1], [1], [0], [0], [0, 0, 1, 0], [], []>} : vector<8x16xf32>, vector<8x16xf32>, vector<8x8xf32> -> vector<8x8xf32>
    %202 = arith.addf %201, %1 : vector<8x8xf32>
    %cst_88 = arith.constant dense<0xFF800000> : vector<8xf32>
    %203 = vector.multi_reduction <maximumf>, %202, %cst_88 [1] : vector<8x8xf32> to vector<8xf32>
    %204 = vector.shape_cast %203 : vector<8xf32> to vector<8x1xf32>
    %205 = vector.broadcast %204 : vector<8x1xf32> to vector<8x8xf32>
    %206 = arith.subf %202, %205 : vector<8x8xf32>
    %207 = math.exp %206 : vector<8x8xf32>
    %cst_89 = arith.constant dense<0.000000e+00> : vector<8xf32>
    %208 = vector.multi_reduction <add>, %207, %cst_89 [1] : vector<8x8xf32> to vector<8xf32>
    %209 = vector.shape_cast %208 : vector<8xf32> to vector<8x1xf32>
    %210 = vector.broadcast %209 : vector<8x1xf32> to vector<8x8xf32>
    %211 = arith.divf %207, %210 : vector<8x8xf32>
    %cst_90 = arith.constant dense<0.000000e+00> : vector<8x16xf32>
    %212 = tpu.matmul %211, %200, %cst_90 {dimension_numbers = #tpu.dot_dimension_numbers<[1], [0], [0], [1], [0, 0, 1, 1], [], []>} : vector<8x8xf32>, vector<8x16xf32>, vector<8x16xf32> -> vector<8x16xf32>
    %213 = tpu.concatenate %197, %212 in 1 : vector<8x16xf32>, vector<8x16xf32> -> vector<8x32xf32>
    %214 = tpu.concatenate %182, %213 in 0 : vector<8x32xf32>, vector<8x32xf32> -> vector<16x32xf32>
    %c1_91 = arith.constant 1 : index
    %c0_92 = arith.constant 0 : index
    %c0_93 = arith.constant 0 : index
    %215 = vector.load %arg4[%c1_91, %c0_92, %c0_93] : memref<3x32x32xf32, #tpu.memory_space<vmem>>, vector<1x32x32xf32>
    %216 = vector.shape_cast %215 : vector<1x32x32xf32> to vector<32x32xf32>
    %cst_94 = arith.constant dense<0.000000e+00> : vector<16x32xf32>
    %217 = tpu.matmul %214, %216, %cst_94 {dimension_numbers = #tpu.dot_dimension_numbers<[1], [0], [0], [1], [0, 0, 1, 1], [], []>} : vector<16x32xf32>, vector<32x32xf32>, vector<16x32xf32> -> vector<16x32xf32>
    %c1_95 = arith.constant 1 : index
    %c0_96 = arith.constant 0 : index
    %c0_97 = arith.constant 0 : index
    %218 = vector.load %arg5[%c1_95, %c0_96, %c0_97] : memref<3x1x32xf32, #tpu.memory_space<vmem>>, vector<1x1x32xf32>
    %219 = vector.shape_cast %218 : vector<1x1x32xf32> to vector<1x32xf32>
    %220 = vector.broadcast %219 : vector<1x32xf32> to vector<16x32xf32>
    %221 = arith.addf %217, %220 : vector<16x32xf32>
    %222 = arith.addf %144, %221 : vector<16x32xf32>
    %cst_98 = arith.constant dense<0.000000e+00> : vector<16xf32>
    %223 = vector.multi_reduction <add>, %222, %cst_98 [1] : vector<16x32xf32> to vector<16xf32>
    %224 = vector.shape_cast %223 : vector<16xf32> to vector<16x1xf32>
    %cst_99 = arith.constant 3.200000e+01 : f32
    %225 = vector.broadcast %cst_99 : f32 to vector<16x1xf32>
    %226 = arith.divf %224, %225 : vector<16x1xf32>
    %227 = vector.broadcast %226 : vector<16x1xf32> to vector<16x32xf32>
    %228 = arith.subf %222, %227 : vector<16x32xf32>
    %229 = arith.mulf %228, %228 : vector<16x32xf32>
    %cst_100 = arith.constant dense<0.000000e+00> : vector<16xf32>
    %230 = vector.multi_reduction <add>, %229, %cst_100 [1] : vector<16x32xf32> to vector<16xf32>
    %231 = vector.shape_cast %230 : vector<16xf32> to vector<16x1xf32>
    %cst_101 = arith.constant 3.200000e+01 : f32
    %232 = vector.broadcast %cst_101 : f32 to vector<16x1xf32>
    %233 = arith.divf %231, %232 : vector<16x1xf32>
    %cst_102 = arith.constant 9.99999974E-6 : f32
    %234 = vector.broadcast %cst_102 : f32 to vector<16x1xf32>
    %235 = arith.addf %233, %234 : vector<16x1xf32>
    %236 = math.rsqrt %235 : vector<16x1xf32>
    %237 = vector.broadcast %236 : vector<16x1xf32> to vector<16x32xf32>
    %238 = arith.mulf %228, %237 : vector<16x32xf32>
    %c1_103 = arith.constant 1 : index
    %c0_104 = arith.constant 0 : index
    %c0_105 = arith.constant 0 : index
    %239 = vector.load %arg6[%c1_103, %c0_104, %c0_105] : memref<3x1x32xf32, #tpu.memory_space<vmem>>, vector<1x1x32xf32>
    %240 = vector.shape_cast %239 : vector<1x1x32xf32> to vector<1x32xf32>
    %241 = vector.broadcast %240 : vector<1x32xf32> to vector<16x32xf32>
    %242 = arith.mulf %238, %241 : vector<16x32xf32>
    %c1_106 = arith.constant 1 : index
    %c0_107 = arith.constant 0 : index
    %c0_108 = arith.constant 0 : index
    %243 = vector.load %arg7[%c1_106, %c0_107, %c0_108] : memref<3x1x32xf32, #tpu.memory_space<vmem>>, vector<1x1x32xf32>
    %244 = vector.shape_cast %243 : vector<1x1x32xf32> to vector<1x32xf32>
    %245 = vector.broadcast %244 : vector<1x32xf32> to vector<16x32xf32>
    %246 = arith.addf %242, %245 : vector<16x32xf32>
    %c1_109 = arith.constant 1 : index
    %c0_110 = arith.constant 0 : index
    %c0_111 = arith.constant 0 : index
    %247 = vector.load %arg8[%c1_109, %c0_110, %c0_111] : memref<3x32x256xf32, #tpu.memory_space<vmem>>, vector<1x32x256xf32>
    %248 = vector.shape_cast %247 : vector<1x32x256xf32> to vector<32x256xf32>
    %cst_112 = arith.constant dense<0.000000e+00> : vector<16x256xf32>
    %249 = tpu.matmul %246, %248, %cst_112 {dimension_numbers = #tpu.dot_dimension_numbers<[1], [0], [0], [1], [0, 0, 1, 1], [], []>} : vector<16x32xf32>, vector<32x256xf32>, vector<16x256xf32> -> vector<16x256xf32>
    %c1_113 = arith.constant 1 : index
    %c0_114 = arith.constant 0 : index
    %c0_115 = arith.constant 0 : index
    %250 = vector.load %arg9[%c1_113, %c0_114, %c0_115] : memref<3x1x256xf32, #tpu.memory_space<vmem>>, vector<1x1x256xf32>
    %251 = vector.shape_cast %250 : vector<1x1x256xf32> to vector<1x256xf32>
    %252 = vector.broadcast %251 : vector<1x256xf32> to vector<16x256xf32>
    %253 = arith.addf %249, %252 : vector<16x256xf32>
    %cst_116 = arith.constant 0.000000e+00 : f32
    %254 = vector.broadcast %cst_116 : f32 to vector<16x256xf32>
    %255 = arith.maximumf %253, %254 : vector<16x256xf32>
    %c1_117 = arith.constant 1 : index
    %c0_118 = arith.constant 0 : index
    %c0_119 = arith.constant 0 : index
    %256 = vector.load %arg10[%c1_117, %c0_118, %c0_119] : memref<3x256x32xf32, #tpu.memory_space<vmem>>, vector<1x256x32xf32>
    %257 = vector.shape_cast %256 : vector<1x256x32xf32> to vector<256x32xf32>
    %cst_120 = arith.constant dense<0.000000e+00> : vector<16x32xf32>
    %258 = tpu.matmul %255, %257, %cst_120 {dimension_numbers = #tpu.dot_dimension_numbers<[1], [0], [0], [1], [0, 0, 1, 1], [], []>} : vector<16x256xf32>, vector<256x32xf32>, vector<16x32xf32> -> vector<16x32xf32>
    %c1_121 = arith.constant 1 : index
    %c0_122 = arith.constant 0 : index
    %c0_123 = arith.constant 0 : index
    %259 = vector.load %arg11[%c1_121, %c0_122, %c0_123] : memref<3x1x32xf32, #tpu.memory_space<vmem>>, vector<1x1x32xf32>
    %260 = vector.shape_cast %259 : vector<1x1x32xf32> to vector<1x32xf32>
    %261 = vector.broadcast %260 : vector<1x32xf32> to vector<16x32xf32>
    %262 = arith.addf %258, %261 : vector<16x32xf32>
    %263 = arith.addf %246, %262 : vector<16x32xf32>
    %cst_124 = arith.constant dense<0.000000e+00> : vector<16xf32>
    %264 = vector.multi_reduction <add>, %263, %cst_124 [1] : vector<16x32xf32> to vector<16xf32>
    %265 = vector.shape_cast %264 : vector<16xf32> to vector<16x1xf32>
    %cst_125 = arith.constant 3.200000e+01 : f32
    %266 = vector.broadcast %cst_125 : f32 to vector<16x1xf32>
    %267 = arith.divf %265, %266 : vector<16x1xf32>
    %268 = vector.broadcast %267 : vector<16x1xf32> to vector<16x32xf32>
    %269 = arith.subf %263, %268 : vector<16x32xf32>
    %270 = arith.mulf %269, %269 : vector<16x32xf32>
    %cst_126 = arith.constant dense<0.000000e+00> : vector<16xf32>
    %271 = vector.multi_reduction <add>, %270, %cst_126 [1] : vector<16x32xf32> to vector<16xf32>
    %272 = vector.shape_cast %271 : vector<16xf32> to vector<16x1xf32>
    %cst_127 = arith.constant 3.200000e+01 : f32
    %273 = vector.broadcast %cst_127 : f32 to vector<16x1xf32>
    %274 = arith.divf %272, %273 : vector<16x1xf32>
    %cst_128 = arith.constant 9.99999974E-6 : f32
    %275 = vector.broadcast %cst_128 : f32 to vector<16x1xf32>
    %276 = arith.addf %274, %275 : vector<16x1xf32>
    %277 = math.rsqrt %276 : vector<16x1xf32>
    %278 = vector.broadcast %277 : vector<16x1xf32> to vector<16x32xf32>
    %279 = arith.mulf %269, %278 : vector<16x32xf32>
    %c1_129 = arith.constant 1 : index
    %c0_130 = arith.constant 0 : index
    %c0_131 = arith.constant 0 : index
    %280 = vector.load %arg12[%c1_129, %c0_130, %c0_131] : memref<3x1x32xf32, #tpu.memory_space<vmem>>, vector<1x1x32xf32>
    %281 = vector.shape_cast %280 : vector<1x1x32xf32> to vector<1x32xf32>
    %282 = vector.broadcast %281 : vector<1x32xf32> to vector<16x32xf32>
    %283 = arith.mulf %279, %282 : vector<16x32xf32>
    %c1_132 = arith.constant 1 : index
    %c0_133 = arith.constant 0 : index
    %c0_134 = arith.constant 0 : index
    %284 = vector.load %arg13[%c1_132, %c0_133, %c0_134] : memref<3x1x32xf32, #tpu.memory_space<vmem>>, vector<1x1x32xf32>
    %285 = vector.shape_cast %284 : vector<1x1x32xf32> to vector<1x32xf32>
    %286 = vector.broadcast %285 : vector<1x32xf32> to vector<16x32xf32>
    %287 = arith.addf %283, %286 : vector<16x32xf32>
    %c2 = arith.constant 2 : index
    %c0_135 = arith.constant 0 : index
    %c0_136 = arith.constant 0 : index
    %288 = vector.load %arg2[%c2, %c0_135, %c0_136] : memref<3x32x96xf32, #tpu.memory_space<vmem>>, vector<1x32x96xf32>
    %289 = vector.shape_cast %288 : vector<1x32x96xf32> to vector<32x96xf32>
    %cst_137 = arith.constant dense<0.000000e+00> : vector<16x96xf32>
    %290 = tpu.matmul %287, %289, %cst_137 {dimension_numbers = #tpu.dot_dimension_numbers<[1], [0], [0], [1], [0, 0, 1, 1], [], []>} : vector<16x32xf32>, vector<32x96xf32>, vector<16x96xf32> -> vector<16x96xf32>
    %c2_138 = arith.constant 2 : index
    %c0_139 = arith.constant 0 : index
    %c0_140 = arith.constant 0 : index
    %291 = vector.load %arg3[%c2_138, %c0_139, %c0_140] : memref<3x1x96xf32, #tpu.memory_space<vmem>>, vector<1x1x96xf32>
    %292 = vector.shape_cast %291 : vector<1x1x96xf32> to vector<1x96xf32>
    %293 = vector.broadcast %292 : vector<1x96xf32> to vector<16x96xf32>
    %294 = arith.addf %290, %293 : vector<16x96xf32>
    %295 = vector.extract_strided_slice %294 {offsets = [0, 0], sizes = [8, 16], strides = [1, 1]} : vector<16x96xf32> to vector<8x16xf32>
    %296 = vector.extract_strided_slice %294 {offsets = [0, 32], sizes = [8, 16], strides = [1, 1]} : vector<16x96xf32> to vector<8x16xf32>
    %297 = vector.extract_strided_slice %294 {offsets = [0, 64], sizes = [8, 16], strides = [1, 1]} : vector<16x96xf32> to vector<8x16xf32>
    %cst_141 = arith.constant dense<0.000000e+00> : vector<8x8xf32>
    %298 = tpu.matmul %295, %296, %cst_141 {dimension_numbers = #tpu.dot_dimension_numbers<[1], [1], [0], [0], [0, 0, 1, 0], [], []>} : vector<8x16xf32>, vector<8x16xf32>, vector<8x8xf32> -> vector<8x8xf32>
    %299 = arith.addf %298, %1 : vector<8x8xf32>
    %cst_142 = arith.constant dense<0xFF800000> : vector<8xf32>
    %300 = vector.multi_reduction <maximumf>, %299, %cst_142 [1] : vector<8x8xf32> to vector<8xf32>
    %301 = vector.shape_cast %300 : vector<8xf32> to vector<8x1xf32>
    %302 = vector.broadcast %301 : vector<8x1xf32> to vector<8x8xf32>
    %303 = arith.subf %299, %302 : vector<8x8xf32>
    %304 = math.exp %303 : vector<8x8xf32>
    %cst_143 = arith.constant dense<0.000000e+00> : vector<8xf32>
    %305 = vector.multi_reduction <add>, %304, %cst_143 [1] : vector<8x8xf32> to vector<8xf32>
    %306 = vector.shape_cast %305 : vector<8xf32> to vector<8x1xf32>
    %307 = vector.broadcast %306 : vector<8x1xf32> to vector<8x8xf32>
    %308 = arith.divf %304, %307 : vector<8x8xf32>
    %cst_144 = arith.constant dense<0.000000e+00> : vector<8x16xf32>
    %309 = tpu.matmul %308, %297, %cst_144 {dimension_numbers = #tpu.dot_dimension_numbers<[1], [0], [0], [1], [0, 0, 1, 1], [], []>} : vector<8x8xf32>, vector<8x16xf32>, vector<8x16xf32> -> vector<8x16xf32>
    %310 = vector.extract_strided_slice %294 {offsets = [0, 16], sizes = [8, 16], strides = [1, 1]} : vector<16x96xf32> to vector<8x16xf32>
    %311 = vector.extract_strided_slice %294 {offsets = [0, 48], sizes = [8, 16], strides = [1, 1]} : vector<16x96xf32> to vector<8x16xf32>
    %312 = vector.extract_strided_slice %294 {offsets = [0, 80], sizes = [8, 16], strides = [1, 1]} : vector<16x96xf32> to vector<8x16xf32>
    %cst_145 = arith.constant dense<0.000000e+00> : vector<8x8xf32>
    %313 = tpu.matmul %310, %311, %cst_145 {dimension_numbers = #tpu.dot_dimension_numbers<[1], [1], [0], [0], [0, 0, 1, 0], [], []>} : vector<8x16xf32>, vector<8x16xf32>, vector<8x8xf32> -> vector<8x8xf32>
    %314 = arith.addf %313, %1 : vector<8x8xf32>
    %cst_146 = arith.constant dense<0xFF800000> : vector<8xf32>
    %315 = vector.multi_reduction <maximumf>, %314, %cst_146 [1] : vector<8x8xf32> to vector<8xf32>
    %316 = vector.shape_cast %315 : vector<8xf32> to vector<8x1xf32>
    %317 = vector.broadcast %316 : vector<8x1xf32> to vector<8x8xf32>
    %318 = arith.subf %314, %317 : vector<8x8xf32>
    %319 = math.exp %318 : vector<8x8xf32>
    %cst_147 = arith.constant dense<0.000000e+00> : vector<8xf32>
    %320 = vector.multi_reduction <add>, %319, %cst_147 [1] : vector<8x8xf32> to vector<8xf32>
    %321 = vector.shape_cast %320 : vector<8xf32> to vector<8x1xf32>
    %322 = vector.broadcast %321 : vector<8x1xf32> to vector<8x8xf32>
    %323 = arith.divf %319, %322 : vector<8x8xf32>
    %cst_148 = arith.constant dense<0.000000e+00> : vector<8x16xf32>
    %324 = tpu.matmul %323, %312, %cst_148 {dimension_numbers = #tpu.dot_dimension_numbers<[1], [0], [0], [1], [0, 0, 1, 1], [], []>} : vector<8x8xf32>, vector<8x16xf32>, vector<8x16xf32> -> vector<8x16xf32>
    %325 = tpu.concatenate %309, %324 in 1 : vector<8x16xf32>, vector<8x16xf32> -> vector<8x32xf32>
    %326 = vector.extract_strided_slice %294 {offsets = [8, 0], sizes = [8, 16], strides = [1, 1]} : vector<16x96xf32> to vector<8x16xf32>
    %327 = vector.extract_strided_slice %294 {offsets = [8, 32], sizes = [8, 16], strides = [1, 1]} : vector<16x96xf32> to vector<8x16xf32>
    %328 = vector.extract_strided_slice %294 {offsets = [8, 64], sizes = [8, 16], strides = [1, 1]} : vector<16x96xf32> to vector<8x16xf32>
    %cst_149 = arith.constant dense<0.000000e+00> : vector<8x8xf32>
    %329 = tpu.matmul %326, %327, %cst_149 {dimension_numbers = #tpu.dot_dimension_numbers<[1], [1], [0], [0], [0, 0, 1, 0], [], []>} : vector<8x16xf32>, vector<8x16xf32>, vector<8x8xf32> -> vector<8x8xf32>
    %330 = arith.addf %329, %1 : vector<8x8xf32>
    %cst_150 = arith.constant dense<0xFF800000> : vector<8xf32>
    %331 = vector.multi_reduction <maximumf>, %330, %cst_150 [1] : vector<8x8xf32> to vector<8xf32>
    %332 = vector.shape_cast %331 : vector<8xf32> to vector<8x1xf32>
    %333 = vector.broadcast %332 : vector<8x1xf32> to vector<8x8xf32>
    %334 = arith.subf %330, %333 : vector<8x8xf32>
    %335 = math.exp %334 : vector<8x8xf32>
    %cst_151 = arith.constant dense<0.000000e+00> : vector<8xf32>
    %336 = vector.multi_reduction <add>, %335, %cst_151 [1] : vector<8x8xf32> to vector<8xf32>
    %337 = vector.shape_cast %336 : vector<8xf32> to vector<8x1xf32>
    %338 = vector.broadcast %337 : vector<8x1xf32> to vector<8x8xf32>
    %339 = arith.divf %335, %338 : vector<8x8xf32>
    %cst_152 = arith.constant dense<0.000000e+00> : vector<8x16xf32>
    %340 = tpu.matmul %339, %328, %cst_152 {dimension_numbers = #tpu.dot_dimension_numbers<[1], [0], [0], [1], [0, 0, 1, 1], [], []>} : vector<8x8xf32>, vector<8x16xf32>, vector<8x16xf32> -> vector<8x16xf32>
    %341 = vector.extract_strided_slice %294 {offsets = [8, 16], sizes = [8, 16], strides = [1, 1]} : vector<16x96xf32> to vector<8x16xf32>
    %342 = vector.extract_strided_slice %294 {offsets = [8, 48], sizes = [8, 16], strides = [1, 1]} : vector<16x96xf32> to vector<8x16xf32>
    %343 = vector.extract_strided_slice %294 {offsets = [8, 80], sizes = [8, 16], strides = [1, 1]} : vector<16x96xf32> to vector<8x16xf32>
    %cst_153 = arith.constant dense<0.000000e+00> : vector<8x8xf32>
    %344 = tpu.matmul %341, %342, %cst_153 {dimension_numbers = #tpu.dot_dimension_numbers<[1], [1], [0], [0], [0, 0, 1, 0], [], []>} : vector<8x16xf32>, vector<8x16xf32>, vector<8x8xf32> -> vector<8x8xf32>
    %345 = arith.addf %344, %1 : vector<8x8xf32>
    %cst_154 = arith.constant dense<0xFF800000> : vector<8xf32>
    %346 = vector.multi_reduction <maximumf>, %345, %cst_154 [1] : vector<8x8xf32> to vector<8xf32>
    %347 = vector.shape_cast %346 : vector<8xf32> to vector<8x1xf32>
    %348 = vector.broadcast %347 : vector<8x1xf32> to vector<8x8xf32>
    %349 = arith.subf %345, %348 : vector<8x8xf32>
    %350 = math.exp %349 : vector<8x8xf32>
    %cst_155 = arith.constant dense<0.000000e+00> : vector<8xf32>
    %351 = vector.multi_reduction <add>, %350, %cst_155 [1] : vector<8x8xf32> to vector<8xf32>
    %352 = vector.shape_cast %351 : vector<8xf32> to vector<8x1xf32>
    %353 = vector.broadcast %352 : vector<8x1xf32> to vector<8x8xf32>
    %354 = arith.divf %350, %353 : vector<8x8xf32>
    %cst_156 = arith.constant dense<0.000000e+00> : vector<8x16xf32>
    %355 = tpu.matmul %354, %343, %cst_156 {dimension_numbers = #tpu.dot_dimension_numbers<[1], [0], [0], [1], [0, 0, 1, 1], [], []>} : vector<8x8xf32>, vector<8x16xf32>, vector<8x16xf32> -> vector<8x16xf32>
    %356 = tpu.concatenate %340, %355 in 1 : vector<8x16xf32>, vector<8x16xf32> -> vector<8x32xf32>
    %357 = tpu.concatenate %325, %356 in 0 : vector<8x32xf32>, vector<8x32xf32> -> vector<16x32xf32>
    %c2_157 = arith.constant 2 : index
    %c0_158 = arith.constant 0 : index
    %c0_159 = arith.constant 0 : index
    %358 = vector.load %arg4[%c2_157, %c0_158, %c0_159] : memref<3x32x32xf32, #tpu.memory_space<vmem>>, vector<1x32x32xf32>
    %359 = vector.shape_cast %358 : vector<1x32x32xf32> to vector<32x32xf32>
    %cst_160 = arith.constant dense<0.000000e+00> : vector<16x32xf32>
    %360 = tpu.matmul %357, %359, %cst_160 {dimension_numbers = #tpu.dot_dimension_numbers<[1], [0], [0], [1], [0, 0, 1, 1], [], []>} : vector<16x32xf32>, vector<32x32xf32>, vector<16x32xf32> -> vector<16x32xf32>
    %c2_161 = arith.constant 2 : index
    %c0_162 = arith.constant 0 : index
    %c0_163 = arith.constant 0 : index
    %361 = vector.load %arg5[%c2_161, %c0_162, %c0_163] : memref<3x1x32xf32, #tpu.memory_space<vmem>>, vector<1x1x32xf32>
    %362 = vector.shape_cast %361 : vector<1x1x32xf32> to vector<1x32xf32>
    %363 = vector.broadcast %362 : vector<1x32xf32> to vector<16x32xf32>
    %364 = arith.addf %360, %363 : vector<16x32xf32>
    %365 = arith.addf %287, %364 : vector<16x32xf32>
    %cst_164 = arith.constant dense<0.000000e+00> : vector<16xf32>
    %366 = vector.multi_reduction <add>, %365, %cst_164 [1] : vector<16x32xf32> to vector<16xf32>
    %367 = vector.shape_cast %366 : vector<16xf32> to vector<16x1xf32>
    %cst_165 = arith.constant 3.200000e+01 : f32
    %368 = vector.broadcast %cst_165 : f32 to vector<16x1xf32>
    %369 = arith.divf %367, %368 : vector<16x1xf32>
    %370 = vector.broadcast %369 : vector<16x1xf32> to vector<16x32xf32>
    %371 = arith.subf %365, %370 : vector<16x32xf32>
    %372 = arith.mulf %371, %371 : vector<16x32xf32>
    %cst_166 = arith.constant dense<0.000000e+00> : vector<16xf32>
    %373 = vector.multi_reduction <add>, %372, %cst_166 [1] : vector<16x32xf32> to vector<16xf32>
    %374 = vector.shape_cast %373 : vector<16xf32> to vector<16x1xf32>
    %cst_167 = arith.constant 3.200000e+01 : f32
    %375 = vector.broadcast %cst_167 : f32 to vector<16x1xf32>
    %376 = arith.divf %374, %375 : vector<16x1xf32>
    %cst_168 = arith.constant 9.99999974E-6 : f32
    %377 = vector.broadcast %cst_168 : f32 to vector<16x1xf32>
    %378 = arith.addf %376, %377 : vector<16x1xf32>
    %379 = math.rsqrt %378 : vector<16x1xf32>
    %380 = vector.broadcast %379 : vector<16x1xf32> to vector<16x32xf32>
    %381 = arith.mulf %371, %380 : vector<16x32xf32>
    %c2_169 = arith.constant 2 : index
    %c0_170 = arith.constant 0 : index
    %c0_171 = arith.constant 0 : index
    %382 = vector.load %arg6[%c2_169, %c0_170, %c0_171] : memref<3x1x32xf32, #tpu.memory_space<vmem>>, vector<1x1x32xf32>
    %383 = vector.shape_cast %382 : vector<1x1x32xf32> to vector<1x32xf32>
    %384 = vector.broadcast %383 : vector<1x32xf32> to vector<16x32xf32>
    %385 = arith.mulf %381, %384 : vector<16x32xf32>
    %c2_172 = arith.constant 2 : index
    %c0_173 = arith.constant 0 : index
    %c0_174 = arith.constant 0 : index
    %386 = vector.load %arg7[%c2_172, %c0_173, %c0_174] : memref<3x1x32xf32, #tpu.memory_space<vmem>>, vector<1x1x32xf32>
    %387 = vector.shape_cast %386 : vector<1x1x32xf32> to vector<1x32xf32>
    %388 = vector.broadcast %387 : vector<1x32xf32> to vector<16x32xf32>
    %389 = arith.addf %385, %388 : vector<16x32xf32>
    %c2_175 = arith.constant 2 : index
    %c0_176 = arith.constant 0 : index
    %c0_177 = arith.constant 0 : index
    %390 = vector.load %arg8[%c2_175, %c0_176, %c0_177] : memref<3x32x256xf32, #tpu.memory_space<vmem>>, vector<1x32x256xf32>
    %391 = vector.shape_cast %390 : vector<1x32x256xf32> to vector<32x256xf32>
    %cst_178 = arith.constant dense<0.000000e+00> : vector<16x256xf32>
    %392 = tpu.matmul %389, %391, %cst_178 {dimension_numbers = #tpu.dot_dimension_numbers<[1], [0], [0], [1], [0, 0, 1, 1], [], []>} : vector<16x32xf32>, vector<32x256xf32>, vector<16x256xf32> -> vector<16x256xf32>
    %c2_179 = arith.constant 2 : index
    %c0_180 = arith.constant 0 : index
    %c0_181 = arith.constant 0 : index
    %393 = vector.load %arg9[%c2_179, %c0_180, %c0_181] : memref<3x1x256xf32, #tpu.memory_space<vmem>>, vector<1x1x256xf32>
    %394 = vector.shape_cast %393 : vector<1x1x256xf32> to vector<1x256xf32>
    %395 = vector.broadcast %394 : vector<1x256xf32> to vector<16x256xf32>
    %396 = arith.addf %392, %395 : vector<16x256xf32>
    %cst_182 = arith.constant 0.000000e+00 : f32
    %397 = vector.broadcast %cst_182 : f32 to vector<16x256xf32>
    %398 = arith.maximumf %396, %397 : vector<16x256xf32>
    %c2_183 = arith.constant 2 : index
    %c0_184 = arith.constant 0 : index
    %c0_185 = arith.constant 0 : index
    %399 = vector.load %arg10[%c2_183, %c0_184, %c0_185] : memref<3x256x32xf32, #tpu.memory_space<vmem>>, vector<1x256x32xf32>
    %400 = vector.shape_cast %399 : vector<1x256x32xf32> to vector<256x32xf32>
    %cst_186 = arith.constant dense<0.000000e+00> : vector<16x32xf32>
    %401 = tpu.matmul %398, %400, %cst_186 {dimension_numbers = #tpu.dot_dimension_numbers<[1], [0], [0], [1], [0, 0, 1, 1], [], []>} : vector<16x256xf32>, vector<256x32xf32>, vector<16x32xf32> -> vector<16x32xf32>
    %c2_187 = arith.constant 2 : index
    %c0_188 = arith.constant 0 : index
    %c0_189 = arith.constant 0 : index
    %402 = vector.load %arg11[%c2_187, %c0_188, %c0_189] : memref<3x1x32xf32, #tpu.memory_space<vmem>>, vector<1x1x32xf32>
    %403 = vector.shape_cast %402 : vector<1x1x32xf32> to vector<1x32xf32>
    %404 = vector.broadcast %403 : vector<1x32xf32> to vector<16x32xf32>
    %405 = arith.addf %401, %404 : vector<16x32xf32>
    %406 = arith.addf %389, %405 : vector<16x32xf32>
    %cst_190 = arith.constant dense<0.000000e+00> : vector<16xf32>
    %407 = vector.multi_reduction <add>, %406, %cst_190 [1] : vector<16x32xf32> to vector<16xf32>
    %408 = vector.shape_cast %407 : vector<16xf32> to vector<16x1xf32>
    %cst_191 = arith.constant 3.200000e+01 : f32
    %409 = vector.broadcast %cst_191 : f32 to vector<16x1xf32>
    %410 = arith.divf %408, %409 : vector<16x1xf32>
    %411 = vector.broadcast %410 : vector<16x1xf32> to vector<16x32xf32>
    %412 = arith.subf %406, %411 : vector<16x32xf32>
    %413 = arith.mulf %412, %412 : vector<16x32xf32>
    %cst_192 = arith.constant dense<0.000000e+00> : vector<16xf32>
    %414 = vector.multi_reduction <add>, %413, %cst_192 [1] : vector<16x32xf32> to vector<16xf32>
    %415 = vector.shape_cast %414 : vector<16xf32> to vector<16x1xf32>
    %cst_193 = arith.constant 3.200000e+01 : f32
    %416 = vector.broadcast %cst_193 : f32 to vector<16x1xf32>
    %417 = arith.divf %415, %416 : vector<16x1xf32>
    %cst_194 = arith.constant 9.99999974E-6 : f32
    %418 = vector.broadcast %cst_194 : f32 to vector<16x1xf32>
    %419 = arith.addf %417, %418 : vector<16x1xf32>
    %420 = math.rsqrt %419 : vector<16x1xf32>
    %421 = vector.broadcast %420 : vector<16x1xf32> to vector<16x32xf32>
    %422 = arith.mulf %412, %421 : vector<16x32xf32>
    %c2_195 = arith.constant 2 : index
    %c0_196 = arith.constant 0 : index
    %c0_197 = arith.constant 0 : index
    %423 = vector.load %arg12[%c2_195, %c0_196, %c0_197] : memref<3x1x32xf32, #tpu.memory_space<vmem>>, vector<1x1x32xf32>
    %424 = vector.shape_cast %423 : vector<1x1x32xf32> to vector<1x32xf32>
    %425 = vector.broadcast %424 : vector<1x32xf32> to vector<16x32xf32>
    %426 = arith.mulf %422, %425 : vector<16x32xf32>
    %c2_198 = arith.constant 2 : index
    %c0_199 = arith.constant 0 : index
    %c0_200 = arith.constant 0 : index
    %427 = vector.load %arg13[%c2_198, %c0_199, %c0_200] : memref<3x1x32xf32, #tpu.memory_space<vmem>>, vector<1x1x32xf32>
    %428 = vector.shape_cast %427 : vector<1x1x32xf32> to vector<1x32xf32>
    %429 = vector.broadcast %428 : vector<1x32xf32> to vector<16x32xf32>
    %430 = arith.addf %426, %429 : vector<16x32xf32>
    %c0_201 = arith.constant 0 : index
    %c0_202 = arith.constant 0 : index
    %431 = vector.load %arg14[%c0_201, %c0_202] : memref<32x64xf32, #tpu.memory_space<vmem>>, vector<32x64xf32>
    %cst_203 = arith.constant dense<0.000000e+00> : vector<16x64xf32>
    %432 = tpu.matmul %430, %431, %cst_203 {dimension_numbers = #tpu.dot_dimension_numbers<[1], [0], [0], [1], [0, 0, 1, 1], [], []>} : vector<16x32xf32>, vector<32x64xf32>, vector<16x64xf32> -> vector<16x64xf32>
    %c0_204 = arith.constant 0 : index
    %c0_205 = arith.constant 0 : index
    %433 = vector.load %arg15[%c0_204, %c0_205] : memref<1x64xf32, #tpu.memory_space<vmem>>, vector<1x64xf32>
    %434 = vector.broadcast %433 : vector<1x64xf32> to vector<16x64xf32>
    %435 = arith.addf %432, %434 : vector<16x64xf32>
    %c0_206 = arith.constant 0 : index
    %c0_207 = arith.constant 0 : index
    %436 = vector.load %arg16[%c0_206, %c0_207] : memref<16x64xf32, #tpu.memory_space<vmem>>, vector<16x64xf32>
    tpu.vector_store %arg16[%c0_206, %c0_207], %435 {strides = array<i32>} : memref<16x64xf32, #tpu.memory_space<vmem>>, vector<16x64xf32>,
    return
  }
}

</mosaic_0001>

<llo_original>
// kernel: transformer_forward.1
$region0: #{transformer_forward.1}
  #allocation0 [shape = 'u32[]', space=smem, size = 0x4, offset = 0x4, fixed_abs, tag = 'smem constant byte address 0x4 - core index']
  #allocation1 [shape = 'u32[144,128]{1,0:T(1,128)}', space=vmem, size = 0x12000, scoped, tag = 'internal scratch']
  %s0 = inlined_call_operand.vmem [shape: f32[16,32], index: 0, kind: input, shape index: {}]
  %s1 = inlined_call_operand.vmem [shape: f32[8,8], index: 1, kind: input, shape index: {}]
  %s2 = inlined_call_operand.vmem [shape: f32[3,32,96], index: 2, kind: input, shape index: {}]
  %s3 = inlined_call_operand.vmem [shape: f32[3,1,96], index: 3, kind: input, shape index: {}]
  %s4 = inlined_call_operand.vmem [shape: f32[3,32,32], index: 4, kind: input, shape index: {}]
  %s5 = inlined_call_operand.vmem [shape: f32[3,1,32], index: 5, kind: input, shape index: {}]
  %s6 = inlined_call_operand.vmem [shape: f32[3,1,32], index: 6, kind: input, shape index: {}]
  %s7 = inlined_call_operand.vmem [shape: f32[3,1,32], index: 7, kind: input, shape index: {}]
  %s8 = inlined_call_operand.vmem [shape: f32[3,32,256], index: 8, kind: input, shape index: {}]
  %s9 = inlined_call_operand.vmem [shape: f32[3,1,256], index: 9, kind: input, shape index: {}]
  %s10 = inlined_call_operand.vmem [shape: f32[3,256,32], index: 10, kind: input, shape index: {}]
  %s11 = inlined_call_operand.vmem [shape: f32[3,1,32], index: 11, kind: input, shape index: {}]
  %s12 = inlined_call_operand.vmem [shape: f32[3,1,32], index: 12, kind: input, shape index: {}]
  %s13 = inlined_call_operand.vmem [shape: f32[3,1,32], index: 13, kind: input, shape index: {}]
  %s14 = inlined_call_operand.vmem [shape: f32[32,64], index: 14, kind: input, shape index: {}]
  %s15 = inlined_call_operand.vmem [shape: f32[1,64], index: 15, kind: input, shape index: {}]
  %s16 = inlined_call_operand.vmem [shape: f32[16,64], index: 16, kind: output, shape index: {}]
  %s17 = sld [smem:[#allocation0]]
  $region74: #{transformer_forward.1} parent=0
    _
  %s19 = ssub.s32 1, %s17
  %s20 = scalar_select 0, %s19, %s17
  // Predicated region
  $region2: #{transformer_forward.1} parent=0 // pred_check
    _
  $region3: #{transformer_forward.1} parent=0 // pred_check_branch
    %22 = sbr.rel (0) target = $region5
  $region4: #{transformer_forward.1} parent=0 // pred_region
    _
  $region5: #{transformer_forward.1} parent=0 // pred_fallthru
    _
  // Predicated region
  $region6: #{transformer_forward.1} parent=0 // pred_check
    _
  $region7: #{transformer_forward.1} parent=0 // pred_check_branch
    %24 = sbr.rel (0) target = $region9
  $region8: #{transformer_forward.1} parent=0 // pred_region
    _
  $region9: #{transformer_forward.1} parent=0 // pred_fallthru
    _
  // Predicated region
  $region10: #{transformer_forward.1} parent=0 // pred_check
    _
  $region11: #{transformer_forward.1} parent=0 // pred_check_branch
    %26 = sbr.rel (0) target = $region13
  $region12: #{transformer_forward.1} parent=0 // pred_region
    _
  $region13: #{transformer_forward.1} parent=0 // pred_fallthru
    _
  // Predicated region
  $region14: #{transformer_forward.1} parent=0 // pred_check
    _
  $region15: #{transformer_forward.1} parent=0 // pred_check_branch
    %28 = sbr.rel (0) target = $region17
  $region16: #{transformer_forward.1} parent=0 // pred_region
    _
  $region17: #{transformer_forward.1} parent=0 // pred_fallthru
    _
  // Predicated region
  $region18: #{transformer_forward.1} parent=0 // pred_check
    _
  $region19: #{transformer_forward.1} parent=0 // pred_check_branch
    %30 = sbr.rel (0) target = $region21
  $region20: #{transformer_forward.1} parent=0 // pred_region
    _
  $region21: #{transformer_forward.1} parent=0 // pred_fallthru
    _
  // Predicated region
  $region22: #{transformer_forward.1} parent=0 // pred_check
    _
  $region23: #{transformer_forward.1} parent=0 // pred_check_branch
    %32 = sbr.rel (0) target = $region25
  $region24: #{transformer_forward.1} parent=0 // pred_region
    _
  $region25: #{transformer_forward.1} parent=0 // pred_fallthru
    _
  // Predicated region
  $region26: #{transformer_forward.1} parent=0 // pred_check
    _
  $region27: #{transformer_forward.1} parent=0 // pred_check_branch
    %34 = sbr.rel (0) target = $region29
  $region28: #{transformer_forward.1} parent=0 // pred_region
    _
  $region29: #{transformer_forward.1} parent=0 // pred_fallthru
    _
  // Predicated region
  $region30: #{transformer_forward.1} parent=0 // pred_check
    _
  $region31: #{transformer_forward.1} parent=0 // pred_check_branch
    %36 = sbr.rel (0) target = $region33
  $region32: #{transformer_forward.1} parent=0 // pred_region
    _
  $region33: #{transformer_forward.1} parent=0 // pred_fallthru
    _
  // Predicated region
  $region34: #{transformer_forward.1} parent=0 // pred_check
    _
  $region35: #{transformer_forward.1} parent=0 // pred_check_branch
    %38 = sbr.rel (0) target = $region37
  $region36: #{transformer_forward.1} parent=0 // pred_region
    _
  $region37: #{transformer_forward.1} parent=0 // pred_fallthru
    _
  // Predicated region
  $region38: #{transformer_forward.1} parent=0 // pred_check
    _
  $region39: #{transformer_forward.1} parent=0 // pred_check_branch
    %40 = sbr.rel (0) target = $region41
  $region40: #{transformer_forward.1} parent=0 // pred_region
    _
  $region41: #{transformer_forward.1} parent=0 // pred_fallthru
    _
  // Predicated region
  $region42: #{transformer_forward.1} parent=0 // pred_check
    _
  $region43: #{transformer_forward.1} parent=0 // pred_check_branch
    %42 = sbr.rel (0) target = $region45
  $region44: #{transformer_forward.1} parent=0 // pred_region
    _
  $region45: #{transformer_forward.1} parent=0 // pred_fallthru
    _
  // Predicated region
  $region46: #{transformer_forward.1} parent=0 // pred_check
    _
  $region47: #{transformer_forward.1} parent=0 // pred_check_branch
    %44 = sbr.rel (0) target = $region49
  $region48: #{transformer_forward.1} parent=0 // pred_region
    _
  $region49: #{transformer_forward.1} parent=0 // pred_fallthru
    _
  // Predicated region
  $region50: #{transformer_forward.1} parent=0 // pred_check
    _
  $region51: #{transformer_forward.1} parent=0 // pred_check_branch
    %46 = sbr.rel (0) target = $region53
  $region52: #{transformer_forward.1} parent=0 // pred_region
    _
  $region53: #{transformer_forward.1} parent=0 // pred_fallthru
    _
  // Predicated region
  $region54: #{transformer_forward.1} parent=0 // pred_check
    _
  $region55: #{transformer_forward.1} parent=0 // pred_check_branch
    %48 = sbr.rel (0) target = $region57
  $region56: #{transformer_forward.1} parent=0 // pred_region
    _
  $region57: #{transformer_forward.1} parent=0 // pred_fallthru
    _
  // Predicated region
  $region58: #{transformer_forward.1} parent=0 // pred_check
    _
  $region59: #{transformer_forward.1} parent=0 // pred_check_branch
    %50 = sbr.rel (0) target = $region61
  $region60: #{transformer_forward.1} parent=0 // pred_region
    _
  $region61: #{transformer_forward.1} parent=0 // pred_fallthru
    _
  // Predicated region
  $region62: #{transformer_forward.1} parent=0 // pred_check
    _
  $region63: #{transformer_forward.1} parent=0 // pred_check_branch
    %52 = sbr.rel (0) target = $region65
  $region64: #{transformer_forward.1} parent=0 // pred_region
    _
  $region65: #{transformer_forward.1} parent=0 // pred_fallthru
    _
  %v53 = vld [vmem:[%s0] sm:$0xff]
  %v54 = vld [vmem:[%s0 + $0x8] sm:$0xff]
  %v55 = vld [vmem:[%s1] sm:$0xff]
  %v56 = vld [vmem:[%s2] sm:$0xff]
  %v57 = vld [vmem:[%s2 + $0x8] sm:$0xff]
  %v58 = vld [vmem:[%s2 + $0x10] sm:$0xff]
  %v59 = vld [vmem:[%s2 + $0x18] sm:$0xff]
  %v60 = vld [vmem:[%s3] sm:$0x1]
  %v62 = vlaneseq
  %v63 = vshrl.u32 %v62, 7
  %v64 = vsub.s32 0, %v63
  %v65 = vrot.slane %v60, %v64
  %vm67 = vcmask 261120
  %v69 = vsel %vm67, %v53, 0
  %v72 = vsel %vm67, %v54, 0
  %74 = vmatprep.subr.mxu0 0.0
  %75 = vmatpush1.msra.mxu0 %v56
  %76 = vmatprep.subr.mxu0 0.0
  %77 = vmatpush1.msra.mxu0 %v57
  %78 = vmatprep.subr.mxu0 0.0
  %79 = vmatpush1.msra.mxu0 %v58
  %80 = vmatprep.subr.mxu0 0.0
  %81 = vmatpush1.msra.mxu0 %v59
  %82 = vmatprep.subr.mxu0 0.0
  %83 = vmatpush1.msra.mxu0 0.0
  %84 = vmatprep.subr.mxu0 0.0
  %85 = vmatpush1.msra.mxu0 0.0
  %86 = vmatprep.subr.mxu0 0.0
  %87 = vmatpush1.msra.mxu0 0.0
  %88 = vmatprep.subr.mxu0 0.0
  %89 = vmatpush1.msra.mxu0 0.0
  %90 = vmatprep.subr.mxu0 0.0
  %91 = vmatpush1.msra.mxu0 0.0
  %92 = vmatprep.subr.mxu0 0.0
  %93 = vmatpush1.msra.mxu0 0.0
  %94 = vmatprep.subr.mxu0 0.0
  %95 = vmatpush1.msra.mxu0 0.0
  %96 = vmatprep.subr.mxu0 0.0
  %97 = vmatpush1.msra.mxu0 0.0
  %98 = vmatprep.subr.mxu0 0.0
  %99 = vmatpush1.msra.mxu0 0.0
  %100 = vmatprep.subr.mxu0 0.0
  %101 = vmatpush1.msra.mxu0 0.0
  %102 = vmatprep.subr.mxu0 0.0
  %103 = vmatpush1.msra.mxu0 0.0
  %104 = vmatprep.subr.mxu0 0.0
  %105 = vmatpush1.msra.mxu0 0.0
  %106 = vmatprep.subr.mxu0 0.0
  %107 = vmatpush1.msra.mxu0 0.0
  %108 = vmatprep.subr.mxu0 0.0
  %109 = vmatpush1.msra.mxu0 0.0
  %110 = vmatprep.subr.mxu0 0.0
  %111 = vmatpush1.msra.mxu0 0.0
  %112 = vmatprep.subr.mxu0 0.0
  %113 = vmatpush1.msra.mxu0 0.0
  %114 = vmatprep.subr.mxu0 0.0
  %115 = vmatpush1.msra.mxu0 0.0
  %116 = vmatprep.subr.mxu0 0.0
  %117 = vmatpush1.msra.mxu0 0.0
  %118 = vmatprep.subr.mxu0 0.0
  %119 = vmatpush1.msra.mxu0 0.0
  %120 = vmatprep.subr.mxu0 0.0
  %121 = vmatpush1.msra.mxu0 0.0
  %122 = vmatprep.subr.mxu0 0.0
  %123 = vmatpush1.msra.mxu0 0.0
  %124 = vmatprep.subr.mxu0 0.0
  %125 = vmatpush1.msra.mxu0 0.0
  %126 = vmatprep.subr.mxu0 0.0
  %127 = vmatpush1.msra.mxu0 0.0
  %128 = vmatprep.subr.mxu0 0.0
  %129 = vmatpush1.msra.mxu0 0.0
  %130 = vmatprep.subr.mxu0 0.0
  %131 = vmatpush1.msra.mxu0 0.0
  %132 = vmatprep.subr.mxu0 0.0
  %133 = vmatpush1.msra.mxu0 0.0
  %134 = vmatprep.subr.mxu0 0.0
  %135 = vmatpush1.msra.mxu0 0.0
  %136 = vmatprep.subr.mxu0 0.0
  %137 = vmatpush1.msra.mxu0 0.0
  %138 = vmatprep.mubr.f32.mxu0 0.0
  %139 = vmatmul.mubr.f32.gmra.mrb[0].mxu0 %v69
  %v140 = vpop.f32.mrb[0].mxu0
  %v141 = vadd.f32 %v65, %v140
  %v142 = vpop.f32.mrb[0].mxu0
  %143 = vmatprep.mubr.f32.mxu0 0.0
  %144 = vmatmul.mubr.f32.gmra.mrb[0].mxu0 %v72
  %v145 = vpop.f32.mrb[0].mxu0
  %v146 = vadd.f32 %v65, %v145
  %v147 = vpop.f32.mrb[0].mxu0
  %148 = vdwg.mxu0
  %150 = vrot.lane.b32.xlu0 %v141, 96
  %v151 = vpop.permute.xlu0 %150
  %vm152 = vcmask 130048
  %v153 = vsel %vm152, %v141, 0
  %v155 = vsel %vm152, %v151, 0
  %157 = vmatprep.subr.mxu0 0.0
  %158 = vmatpush1.xpose.msra.mxu0 %v155
  %159 = vmatprep.subr.mxu0 0.0
  %160 = vmatpush1.xpose.msra.mxu0 0.0
  %161 = vmatprep.subr.mxu0 0.0
  %162 = vmatpush1.xpose.msra.mxu0 0.0
  %163 = vmatprep.subr.mxu0 0.0
  %164 = vmatpush1.xpose.msra.mxu0 0.0
  %165 = vmatprep.subr.mxu0 0.0
  %166 = vmatpush1.xpose.msra.mxu0 0.0
  %167 = vmatprep.subr.mxu0 0.0
  %168 = vmatpush1.xpose.msra.mxu0 0.0
  %169 = vmatprep.subr.mxu0 0.0
  %170 = vmatpush1.xpose.msra.mxu0 0.0
  %171 = vmatprep.subr.mxu0 0.0
  %172 = vmatpush1.xpose.msra.mxu0 0.0
  %173 = vmatprep.subr.mxu0 0.0
  %174 = vmatpush1.xpose.msra.mxu0 0.0
  %175 = vmatprep.subr.mxu0 0.0
  %176 = vmatpush1.xpose.msra.mxu0 0.0
  %177 = vmatprep.subr.mxu0 0.0
  %178 = vmatpush1.xpose.msra.mxu0 0.0
  %179 = vmatprep.subr.mxu0 0.0
  %180 = vmatpush1.xpose.msra.mxu0 0.0
  %181 = vmatprep.subr.mxu0 0.0
  %182 = vmatpush1.xpose.msra.mxu0 0.0
  %183 = vmatprep.subr.mxu0 0.0
  %184 = vmatpush1.xpose.msra.mxu0 0.0
  %185 = vmatprep.subr.mxu0 0.0
  %186 = vmatpush1.xpose.msra.mxu0 0.0
  %187 = vmatprep.subr.mxu0 0.0
  %188 = vmatpush1.xpose.msra.mxu0 0.0
  %189 = vmatprep.subr.mxu0 0.0
  %190 = vmatpush1.xpose.msra.mxu0 0.0
  %191 = vmatprep.subr.mxu0 0.0
  %192 = vmatpush1.xpose.msra.mxu0 0.0
  %193 = vmatprep.subr.mxu0 0.0
  %194 = vmatpush1.xpose.msra.mxu0 0.0
  %195 = vmatprep.subr.mxu0 0.0
  %196 = vmatpush1.xpose.msra.mxu0 0.0
  %197 = vmatprep.subr.mxu0 0.0
  %198 = vmatpush1.xpose.msra.mxu0 0.0
  %199 = vmatprep.subr.mxu0 0.0
  %200 = vmatpush1.xpose.msra.mxu0 0.0
  %201 = vmatprep.subr.mxu0 0.0
  %202 = vmatpush1.xpose.msra.mxu0 0.0
  %203 = vmatprep.subr.mxu0 0.0
  %204 = vmatpush1.xpose.msra.mxu0 0.0
  %205 = vmatprep.subr.mxu0 0.0
  %206 = vmatpush1.xpose.msra.mxu0 0.0
  %207 = vmatprep.subr.mxu0 0.0
  %208 = vmatpush1.xpose.msra.mxu0 0.0
  %209 = vmatprep.subr.mxu0 0.0
  %210 = vmatpush1.xpose.msra.mxu0 0.0
  %211 = vmatprep.subr.mxu0 0.0
  %212 = vmatpush1.xpose.msra.mxu0 0.0
  %213 = vmatprep.subr.mxu0 0.0
  %214 = vmatpush1.xpose.msra.mxu0 0.0
  %215 = vmatprep.subr.mxu0 0.0
  %216 = vmatpush1.xpose.msra.mxu0 0.0
  %217 = vmatprep.subr.mxu0 0.0
  %218 = vmatpush1.xpose.msra.mxu0 0.0
  %219 = vmatprep.subr.mxu0 0.0
  %220 = vmatpush1.xpose.msra.mxu0 0.0
  %221 = vmatprep.mubr.f32.mxu0 0.0
  %222 = vmatmul.mubr.f32.gmra.mrb[0].mxu0 %v153
  %v223 = vpop.f32.mrb[0].mxu0
  %v224 = vadd.f32 %v55, %v223
  %v225 = vpop.f32.mrb[0].mxu0
  %226 = vdwg.mxu0
  %vm227 = vcmask 64512
  %v228 = vsel %vm227, %v224, -inf
  %229 = vmax.xlane.f32.xlu0 %v228
  %v230 = vpop.xlane.xlu0 %229
  %v231 = vsub.f32 %v224, %v230
  %v232 = vmul.f32 %v231, 1.442695
  %v233 = vpow.pop %v232
  %v234 = vsel %vm227, %v233, 0.0
  %235 = vadd.xlane.f32.xlu0 %v234
  %v236 = vpop.xlane.xlu0 %235
  %v237 = vrcp.pop %v236
  %v238 = vmul.f32 %v233, %v237
  %239 = vrot.lane.b32.xlu0 %v141, 64
  %v240 = vpop.permute.xlu0 %239
  %v243 = vsel %vm227, %v238, 0
  %245 = vmatprep.subr.mxu0 0.0
  %246 = vmatpush1.msra.mxu0 %v240
  %247 = vmatprep.subr.mxu0 0.0
  %248 = vmatpush1.msra.mxu0 0.0
  %249 = vmatprep.subr.mxu0 0.0
  %250 = vmatpush1.msra.mxu0 0.0
  %251 = vmatprep.subr.mxu0 0.0
  %252 = vmatpush1.msra.mxu0 0.0
  %253 = vmatprep.subr.mxu0 0.0
  %254 = vmatpush1.msra.mxu0 0.0
  %255 = vmatprep.subr.mxu0 0.0
  %256 = vmatpush1.msra.mxu0 0.0
  %257 = vmatprep.subr.mxu0 0.0
  %258 = vmatpush1.msra.mxu0 0.0
  %259 = vmatprep.subr.mxu0 0.0
  %260 = vmatpush1.msra.mxu0 0.0
  %261 = vmatprep.subr.mxu0 0.0
  %262 = vmatpush1.msra.mxu0 0.0
  %263 = vmatprep.subr.mxu0 0.0
  %264 = vmatpush1.msra.mxu0 0.0
  %265 = vmatprep.subr.mxu0 0.0
  %266 = vmatpush1.msra.mxu0 0.0
  %267 = vmatprep.subr.mxu0 0.0
  %268 = vmatpush1.msra.mxu0 0.0
  %269 = vmatprep.subr.mxu0 0.0
  %270 = vmatpush1.msra.mxu0 0.0
  %271 = vmatprep.subr.mxu0 0.0
  %272 = vmatpush1.msra.mxu0 0.0
  %273 = vmatprep.subr.mxu0 0.0
  %274 = vmatpush1.msra.mxu0 0.0
  %275 = vmatprep.subr.mxu0 0.0
  %276 = vmatpush1.msra.mxu0 0.0
  %277 = vmatprep.subr.mxu0 0.0
  %278 = vmatpush1.msra.mxu0 0.0
  %279 = vmatprep.subr.mxu0 0.0
  %280 = vmatpush1.msra.mxu0 0.0
  %281 = vmatprep.subr.mxu0 0.0
  %282 = vmatpush1.msra.mxu0 0.0
  %283 = vmatprep.subr.mxu0 0.0
  %284 = vmatpush1.msra.mxu0 0.0
  %285 = vmatprep.subr.mxu0 0.0
  %286 = vmatpush1.msra.mxu0 0.0
  %287 = vmatprep.subr.mxu0 0.0
  %288 = vmatpush1.msra.mxu0 0.0
  %289 = vmatprep.subr.mxu0 0.0
  %290 = vmatpush1.msra.mxu0 0.0
  %291 = vmatprep.subr.mxu0 0.0
  %292 = vmatpush1.msra.mxu0 0.0
  %293 = vmatprep.subr.mxu0 0.0
  %294 = vmatpush1.msra.mxu0 0.0
  %295 = vmatprep.subr.mxu0 0.0
  %296 = vmatpush1.msra.mxu0 0.0
  %297 = vmatprep.subr.mxu0 0.0
  %298 = vmatpush1.msra.mxu0 0.0
  %299 = vmatprep.subr.mxu0 0.0
  %300 = vmatpush1.msra.mxu0 0.0
  %301 = vmatprep.subr.mxu0 0.0
  %302 = vmatpush1.msra.mxu0 0.0
  %303 = vmatprep.subr.mxu0 0.0
  %304 = vmatpush1.msra.mxu0 0.0
  %305 = vmatprep.subr.mxu0 0.0
  %306 = vmatpush1.msra.mxu0 0.0
  %307 = vmatprep.subr.mxu0 0.0
  %308 = vmatpush1.msra.mxu0 0.0
  %309 = vmatprep.mubr.f32.mxu0 0.0
  %310 = vmatmul.mubr.f32.gmra.mrb[0].mxu0 %v243
  %v311 = vpop.f32.mrb[0].mxu0
  %v312 = vadd.f32 0.0, %v311
  %v313 = vpop.f32.mrb[0].mxu0
  %314 = vdwg.mxu0
  %315 = vrot.lane.b32.xlu0 %v141, 112
  %v316 = vpop.permute.xlu0 %315
  %317 = vrot.lane.b32.xlu0 %v141, 80
  %v318 = vpop.permute.xlu0 %317
  %v319 = vsel %vm152, %v316, 0
  %v321 = vsel %vm152, %v318, 0
  %323 = vmatprep.subr.mxu0 0.0
  %324 = vmatpush1.xpose.msra.mxu0 %v321
  %325 = vmatprep.subr.mxu0 0.0
  %326 = vmatpush1.xpose.msra.mxu0 0.0
  %327 = vmatprep.subr.mxu0 0.0
  %328 = vmatpush1.xpose.msra.mxu0 0.0
  %329 = vmatprep.subr.mxu0 0.0
  %330 = vmatpush1.xpose.msra.mxu0 0.0
  %331 = vmatprep.subr.mxu0 0.0
  %332 = vmatpush1.xpose.msra.mxu0 0.0
  %333 = vmatprep.subr.mxu0 0.0
  %334 = vmatpush1.xpose.msra.mxu0 0.0
  %335 = vmatprep.subr.mxu0 0.0
  %336 = vmatpush1.xpose.msra.mxu0 0.0
  %337 = vmatprep.subr.mxu0 0.0
  %338 = vmatpush1.xpose.msra.mxu0 0.0
  %339 = vmatprep.subr.mxu0 0.0
  %340 = vmatpush1.xpose.msra.mxu0 0.0
  %341 = vmatprep.subr.mxu0 0.0
  %342 = vmatpush1.xpose.msra.mxu0 0.0
  %343 = vmatprep.subr.mxu0 0.0
  %344 = vmatpush1.xpose.msra.mxu0 0.0
  %345 = vmatprep.subr.mxu0 0.0
  %346 = vmatpush1.xpose.msra.mxu0 0.0
  %347 = vmatprep.subr.mxu0 0.0
  %348 = vmatpush1.xpose.msra.mxu0 0.0
  %349 = vmatprep.subr.mxu0 0.0
  %350 = vmatpush1.xpose.msra.mxu0 0.0
  %351 = vmatprep.subr.mxu0 0.0
  %352 = vmatpush1.xpose.msra.mxu0 0.0
  %353 = vmatprep.subr.mxu0 0.0
  %354 = vmatpush1.xpose.msra.mxu0 0.0
  %355 = vmatprep.subr.mxu0 0.0
  %356 = vmatpush1.xpose.msra.mxu0 0.0
  %357 = vmatprep.subr.mxu0 0.0
  %358 = vmatpush1.xpose.msra.mxu0 0.0
  %359 = vmatprep.subr.mxu0 0.0
  %360 = vmatpush1.xpose.msra.mxu0 0.0
  %361 = vmatprep.subr.mxu0 0.0
  %362 = vmatpush1.xpose.msra.mxu0 0.0
  %363 = vmatprep.subr.mxu0 0.0
  %364 = vmatpush1.xpose.msra.mxu0 0.0
  %365 = vmatprep.subr.mxu0 0.0
  %366 = vmatpush1.xpose.msra.mxu0 0.0
  %367 = vmatprep.subr.mxu0 0.0
  %368 = vmatpush1.xpose.msra.mxu0 0.0
  %369 = vmatprep.subr.mxu0 0.0
  %370 = vmatpush1.xpose.msra.mxu0 0.0
  %371 = vmatprep.subr.mxu0 0.0
  %372 = vmatpush1.xpose.msra.mxu0 0.0
  %373 = vmatprep.subr.mxu0 0.0
  %374 = vmatpush1.xpose.msra.mxu0 0.0
  %375 = vmatprep.subr.mxu0 0.0
  %376 = vmatpush1.xpose.msra.mxu0 0.0
  %377 = vmatprep.subr.mxu0 0.0
  %378 = vmatpush1.xpose.msra.mxu0 0.0
  %379 = vmatprep.subr.mxu0 0.0
  %380 = vmatpush1.xpose.msra.mxu0 0.0
  %381 = vmatprep.subr.mxu0 0.0
  %382 = vmatpush1.xpose.msra.mxu0 0.0
  %383 = vmatprep.subr.mxu0 0.0
  %384 = vmatpush1.xpose.msra.mxu0 0.0
  %385 = vmatprep.subr.mxu0 0.0
  %386 = vmatpush1.xpose.msra.mxu0 0.0
  %387 = vmatprep.mubr.f32.mxu0 0.0
  %388 = vmatmul.mubr.f32.gmra.mrb[0].mxu0 %v319
  %v389 = vpop.f32.mrb[0].mxu0
  %v390 = vadd.f32 %v55, %v389
  %v391 = vpop.f32.mrb[0].mxu0
  %392 = vdwg.mxu0
  %v393 = vsel %vm227, %v390, -inf
  %394 = vmax.xlane.f32.xlu0 %v393
  %v395 = vpop.xlane.xlu0 %394
  %v396 = vsub.f32 %v390, %v395
  %v397 = vmul.f32 %v396, 1.442695
  %v398 = vpow.pop %v397
  %v399 = vsel %vm227, %v398, 0.0
  %400 = vadd.xlane.f32.xlu0 %v399
  %v401 = vpop.xlane.xlu0 %400
  %v402 = vrcp.pop %v401
  %v403 = vmul.f32 %v398, %v402
  %404 = vrot.lane.b32.xlu0 %v141, 48
  %v405 = vpop.permute.xlu0 %404
  %v408 = vsel %vm227, %v403, 0
  %410 = vmatprep.subr.mxu0 0.0
  %411 = vmatpush1.msra.mxu0 %v405
  %412 = vmatprep.subr.mxu0 0.0
  %413 = vmatpush1.msra.mxu0 0.0
  %414 = vmatprep.subr.mxu0 0.0
  %415 = vmatpush1.msra.mxu0 0.0
  %416 = vmatprep.subr.mxu0 0.0
  %417 = vmatpush1.msra.mxu0 0.0
  %418 = vmatprep.subr.mxu0 0.0
  %419 = vmatpush1.msra.mxu0 0.0
  %420 = vmatprep.subr.mxu0 0.0
  %421 = vmatpush1.msra.mxu0 0.0
  %422 = vmatprep.subr.mxu0 0.0
  %423 = vmatpush1.msra.mxu0 0.0
  %424 = vmatprep.subr.mxu0 0.0
  %425 = vmatpush1.msra.mxu0 0.0
  %426 = vmatprep.subr.mxu0 0.0
  %427 = vmatpush1.msra.mxu0 0.0
  %428 = vmatprep.subr.mxu0 0.0
  %429 = vmatpush1.msra.mxu0 0.0
  %430 = vmatprep.subr.mxu0 0.0
  %431 = vmatpush1.msra.mxu0 0.0
  %432 = vmatprep.subr.mxu0 0.0
  %433 = vmatpush1.msra.mxu0 0.0
  %434 = vmatprep.subr.mxu0 0.0
  %435 = vmatpush1.msra.mxu0 0.0
  %436 = vmatprep.subr.mxu0 0.0
  %437 = vmatpush1.msra.mxu0 0.0
  %438 = vmatprep.subr.mxu0 0.0
  %439 = vmatpush1.msra.mxu0 0.0
  %440 = vmatprep.subr.mxu0 0.0
  %441 = vmatpush1.msra.mxu0 0.0
  %442 = vmatprep.subr.mxu0 0.0
  %443 = vmatpush1.msra.mxu0 0.0
  %444 = vmatprep.subr.mxu0 0.0
  %445 = vmatpush1.msra.mxu0 0.0
  %446 = vmatprep.subr.mxu0 0.0
  %447 = vmatpush1.msra.mxu0 0.0
  %448 = vmatprep.subr.mxu0 0.0
  %449 = vmatpush1.msra.mxu0 0.0
  %450 = vmatprep.subr.mxu0 0.0
  %451 = vmatpush1.msra.mxu0 0.0
  %452 = vmatprep.subr.mxu0 0.0
  %453 = vmatpush1.msra.mxu0 0.0
  %454 = vmatprep.subr.mxu0 0.0
  %455 = vmatpush1.msra.mxu0 0.0
  %456 = vmatprep.subr.mxu0 0.0
  %457 = vmatpush1.msra.mxu0 0.0
  %458 = vmatprep.subr.mxu0 0.0
  %459 = vmatpush1.msra.mxu0 0.0
  %460 = vmatprep.subr.mxu0 0.0
  %461 = vmatpush1.msra.mxu0 0.0
  %462 = vmatprep.subr.mxu0 0.0
  %463 = vmatpush1.msra.mxu0 0.0
  %464 = vmatprep.subr.mxu0 0.0
  %465 = vmatpush1.msra.mxu0 0.0
  %466 = vmatprep.subr.mxu0 0.0
  %467 = vmatpush1.msra.mxu0 0.0
  %468 = vmatprep.subr.mxu0 0.0
  %469 = vmatpush1.msra.mxu0 0.0
  %470 = vmatprep.subr.mxu0 0.0
  %471 = vmatpush1.msra.mxu0 0.0
  %472 = vmatprep.subr.mxu0 0.0
  %473 = vmatpush1.msra.mxu0 0.0
  %474 = vmatprep.mubr.f32.mxu0 0.0
  %475 = vmatmul.mubr.f32.gmra.mrb[0].mxu0 %v408
  %v476 = vpop.f32.mrb[0].mxu0
  %v477 = vadd.f32 0.0, %v476
  %v478 = vpop.f32.mrb[0].mxu0
  %479 = vdwg.mxu0
  %481 = vrot.lane.b32.xlu0 %v477, 16
  %v482 = vpop.permute.xlu0 %481
  %v484 = vsel %vm152, %v312, %v482
  %486 = vrot.lane.b32.xlu0 %v146, 96
  %v487 = vpop.permute.xlu0 %486
  %v488 = vsel %vm152, %v146, 0
  %v490 = vsel %vm152, %v487, 0
  %492 = vmatprep.subr.mxu0 0.0
  %493 = vmatpush1.xpose.msra.mxu0 %v490
  %494 = vmatprep.subr.mxu0 0.0
  %495 = vmatpush1.xpose.msra.mxu0 0.0
  %496 = vmatprep.subr.mxu0 0.0
  %497 = vmatpush1.xpose.msra.mxu0 0.0
  %498 = vmatprep.subr.mxu0 0.0
  %499 = vmatpush1.xpose.msra.mxu0 0.0
  %500 = vmatprep.subr.mxu0 0.0
  %501 = vmatpush1.xpose.msra.mxu0 0.0
  %502 = vmatprep.subr.mxu0 0.0
  %503 = vmatpush1.xpose.msra.mxu0 0.0
  %504 = vmatprep.subr.mxu0 0.0
  %505 = vmatpush1.xpose.msra.mxu0 0.0
  %506 = vmatprep.subr.mxu0 0.0
  %507 = vmatpush1.xpose.msra.mxu0 0.0
  %508 = vmatprep.subr.mxu0 0.0
  %509 = vmatpush1.xpose.msra.mxu0 0.0
  %510 = vmatprep.subr.mxu0 0.0
  %511 = vmatpush1.xpose.msra.mxu0 0.0
  %512 = vmatprep.subr.mxu0 0.0
  %513 = vmatpush1.xpose.msra.mxu0 0.0
  %514 = vmatprep.subr.mxu0 0.0
  %515 = vmatpush1.xpose.msra.mxu0 0.0
  %516 = vmatprep.subr.mxu0 0.0
  %517 = vmatpush1.xpose.msra.mxu0 0.0
  %518 = vmatprep.subr.mxu0 0.0
  %519 = vmatpush1.xpose.msra.mxu0 0.0
  %520 = vmatprep.subr.mxu0 0.0
  %521 = vmatpush1.xpose.msra.mxu0 0.0
  %522 = vmatprep.subr.mxu0 0.0
  %523 = vmatpush1.xpose.msra.mxu0 0.0
  %524 = vmatprep.subr.mxu0 0.0
  %525 = vmatpush1.xpose.msra.mxu0 0.0
  %526 = vmatprep.subr.mxu0 0.0
  %527 = vmatpush1.xpose.msra.mxu0 0.0
  %528 = vmatprep.subr.mxu0 0.0
  %529 = vmatpush1.xpose.msra.mxu0 0.0
  %530 = vmatprep.subr.mxu0 0.0
  %531 = vmatpush1.xpose.msra.mxu0 0.0
  %532 = vmatprep.subr.mxu0 0.0
  %533 = vmatpush1.xpose.msra.mxu0 0.0
  %534 = vmatprep.subr.mxu0 0.0
  %535 = vmatpush1.xpose.msra.mxu0 0.0
  %536 = vmatprep.subr.mxu0 0.0
  %537 = vmatpush1.xpose.msra.mxu0 0.0
  %538 = vmatprep.subr.mxu0 0.0
  %539 = vmatpush1.xpose.msra.mxu0 0.0
  %540 = vmatprep.subr.mxu0 0.0
  %541 = vmatpush1.xpose.msra.mxu0 0.0
  %542 = vmatprep.subr.mxu0 0.0
  %543 = vmatpush1.xpose.msra.mxu0 0.0
  %544 = vmatprep.subr.mxu0 0.0
  %545 = vmatpush1.xpose.msra.mxu0 0.0
  %546 = vmatprep.subr.mxu0 0.0
  %547 = vmatpush1.xpose.msra.mxu0 0.0
  %548 = vmatprep.subr.mxu0 0.0
  %549 = vmatpush1.xpose.msra.mxu0 0.0
  %550 = vmatprep.subr.mxu0 0.0
  %551 = vmatpush1.xpose.msra.mxu0 0.0
  %552 = vmatprep.subr.mxu0 0.0
  %553 = vmatpush1.xpose.msra.mxu0 0.0
  %554 = vmatprep.subr.mxu0 0.0
  %555 = vmatpush1.xpose.msra.mxu0 0.0
  %556 = vmatprep.mubr.f32.mxu0 0.0
  %557 = vmatmul.mubr.f32.gmra.mrb[0].mxu0 %v488
  %v558 = vpop.f32.mrb[0].mxu0
  %v559 = vadd.f32 %v55, %v558
  %v560 = vpop.f32.mrb[0].mxu0
  %561 = vdwg.mxu0
  %v562 = vsel %vm227, %v559, -inf
  %563 = vmax.xlane.f32.xlu0 %v562
  %v564 = vpop.xlane.xlu0 %563
  %v565 = vsub.f32 %v559, %v564
  %v566 = vmul.f32 %v565, 1.442695
  %v567 = vpow.pop %v566
  %v568 = vsel %vm227, %v567, 0.0
  %569 = vadd.xlane.f32.xlu0 %v568
  %v570 = vpop.xlane.xlu0 %569
  %v571 = vrcp.pop %v570
  %v572 = vmul.f32 %v567, %v571
  %573 = vrot.lane.b32.xlu0 %v146, 64
  %v574 = vpop.permute.xlu0 %573
  %v577 = vsel %vm227, %v572, 0
  %579 = vmatprep.subr.mxu0 0.0
  %580 = vmatpush1.msra.mxu0 %v574
  %581 = vmatprep.subr.mxu0 0.0
  %582 = vmatpush1.msra.mxu0 0.0
  %583 = vmatprep.subr.mxu0 0.0
  %584 = vmatpush1.msra.mxu0 0.0
  %585 = vmatprep.subr.mxu0 0.0
  %586 = vmatpush1.msra.mxu0 0.0
  %587 = vmatprep.subr.mxu0 0.0
  %588 = vmatpush1.msra.mxu0 0.0
  %589 = vmatprep.subr.mxu0 0.0
  %590 = vmatpush1.msra.mxu0 0.0
  %591 = vmatprep.subr.mxu0 0.0
  %592 = vmatpush1.msra.mxu0 0.0
  %593 = vmatprep.subr.mxu0 0.0
  %594 = vmatpush1.msra.mxu0 0.0
  %595 = vmatprep.subr.mxu0 0.0
  %596 = vmatpush1.msra.mxu0 0.0
  %597 = vmatprep.subr.mxu0 0.0
  %598 = vmatpush1.msra.mxu0 0.0
  %599 = vmatprep.subr.mxu0 0.0
  %600 = vmatpush1.msra.mxu0 0.0
  %601 = vmatprep.subr.mxu0 0.0
  %602 = vmatpush1.msra.mxu0 0.0
  %603 = vmatprep.subr.mxu0 0.0
  %604 = vmatpush1.msra.mxu0 0.0
  %605 = vmatprep.subr.mxu0 0.0
  %606 = vmatpush1.msra.mxu0 0.0
  %607 = vmatprep.subr.mxu0 0.0
  %608 = vmatpush1.msra.mxu0 0.0
  %609 = vmatprep.subr.mxu0 0.0
  %610 = vmatpush1.msra.mxu0 0.0
  %611 = vmatprep.subr.mxu0 0.0
  %612 = vmatpush1.msra.mxu0 0.0
  %613 = vmatprep.subr.mxu0 0.0
  %614 = vmatpush1.msra.mxu0 0.0
  %615 = vmatprep.subr.mxu0 0.0
  %616 = vmatpush1.msra.mxu0 0.0
  %617 = vmatprep.subr.mxu0 0.0
  %618 = vmatpush1.msra.mxu0 0.0
  %619 = vmatprep.subr.mxu0 0.0
  %620 = vmatpush1.msra.mxu0 0.0
  %621 = vmatprep.subr.mxu0 0.0
  %622 = vmatpush1.msra.mxu0 0.0
  %623 = vmatprep.subr.mxu0 0.0
  %624 = vmatpush1.msra.mxu0 0.0
  %625 = vmatprep.subr.mxu0 0.0
  %626 = vmatpush1.msra.mxu0 0.0
  %627 = vmatprep.subr.mxu0 0.0
  %628 = vmatpush1.msra.mxu0 0.0
  %629 = vmatprep.subr.mxu0 0.0
  %630 = vmatpush1.msra.mxu0 0.0
  %631 = vmatprep.subr.mxu0 0.0
  %632 = vmatpush1.msra.mxu0 0.0
  %633 = vmatprep.subr.mxu0 0.0
  %634 = vmatpush1.msra.mxu0 0.0
  %635 = vmatprep.subr.mxu0 0.0
  %636 = vmatpush1.msra.mxu0 0.0
  %637 = vmatprep.subr.mxu0 0.0
  %638 = vmatpush1.msra.mxu0 0.0
  %639 = vmatprep.subr.mxu0 0.0
  %640 = vmatpush1.msra.mxu0 0.0
  %641 = vmatprep.subr.mxu0 0.0
  %642 = vmatpush1.msra.mxu0 0.0
  %643 = vmatprep.mubr.f32.mxu0 0.0
  %644 = vmatmul.mubr.f32.gmra.mrb[0].mxu0 %v577
  %v645 = vpop.f32.mrb[0].mxu0
  %v646 = vadd.f32 0.0, %v645
  %v647 = vpop.f32.mrb[0].mxu0
  %648 = vdwg.mxu0
  %649 = vrot.lane.b32.xlu0 %v146, 112
  %v650 = vpop.permute.xlu0 %649
  %651 = vrot.lane.b32.xlu0 %v146, 80
  %v652 = vpop.permute.xlu0 %651
  %v653 = vsel %vm152, %v650, 0
  %v655 = vsel %vm152, %v652, 0
  %657 = vmatprep.subr.mxu0 0.0
  %658 = vmatpush1.xpose.msra.mxu0 %v655
  %659 = vmatprep.subr.mxu0 0.0
  %660 = vmatpush1.xpose.msra.mxu0 0.0
  %661 = vmatprep.subr.mxu0 0.0
  %662 = vmatpush1.xpose.msra.mxu0 0.0
  %663 = vmatprep.subr.mxu0 0.0
  %664 = vmatpush1.xpose.msra.mxu0 0.0
  %665 = vmatprep.subr.mxu0 0.0
  %666 = vmatpush1.xpose.msra.mxu0 0.0
  %667 = vmatprep.subr.mxu0 0.0
  %668 = vmatpush1.xpose.msra.mxu0 0.0
  %669 = vmatprep.subr.mxu0 0.0
  %670 = vmatpush1.xpose.msra.mxu0 0.0
  %671 = vmatprep.subr.mxu0 0.0
  %672 = vmatpush1.xpose.msra.mxu0 0.0
  %673 = vmatprep.subr.mxu0 0.0
  %674 = vmatpush1.xpose.msra.mxu0 0.0
  %675 = vmatprep.subr.mxu0 0.0
  %676 = vmatpush1.xpose.msra.mxu0 0.0
  %677 = vmatprep.subr.mxu0 0.0
  %678 = vmatpush1.xpose.msra.mxu0 0.0
  %679 = vmatprep.subr.mxu0 0.0
  %680 = vmatpush1.xpose.msra.mxu0 0.0
  %681 = vmatprep.subr.mxu0 0.0
  %682 = vmatpush1.xpose.msra.mxu0 0.0
  %683 = vmatprep.subr.mxu0 0.0
  %684 = vmatpush1.xpose.msra.mxu0 0.0
  %685 = vmatprep.subr.mxu0 0.0
  %686 = vmatpush1.xpose.msra.mxu0 0.0
  %687 = vmatprep.subr.mxu0 0.0
  %688 = vmatpush1.xpose.msra.mxu0 0.0
  %689 = vmatprep.subr.mxu0 0.0
  %690 = vmatpush1.xpose.msra.mxu0 0.0
  %691 = vmatprep.subr.mxu0 0.0
  %692 = vmatpush1.xpose.msra.mxu0 0.0
  %693 = vmatprep.subr.mxu0 0.0
  %694 = vmatpush1.xpose.msra.mxu0 0.0
  %695 = vmatprep.subr.mxu0 0.0
  %696 = vmatpush1.xpose.msra.mxu0 0.0
  %697 = vmatprep.subr.mxu0 0.0
  %698 = vmatpush1.xpose.msra.mxu0 0.0
  %699 = vmatprep.subr.mxu0 0.0
  %700 = vmatpush1.xpose.msra.mxu0 0.0
  %701 = vmatprep.subr.mxu0 0.0
  %702 = vmatpush1.xpose.msra.mxu0 0.0
  %703 = vmatprep.subr.mxu0 0.0
  %704 = vmatpush1.xpose.msra.mxu0 0.0
  %705 = vmatprep.subr.mxu0 0.0
  %706 = vmatpush1.xpose.msra.mxu0 0.0
  %707 = vmatprep.subr.mxu0 0.0
  %708 = vmatpush1.xpose.msra.mxu0 0.0
  %709 = vmatprep.subr.mxu0 0.0
  %710 = vmatpush1.xpose.msra.mxu0 0.0
  %711 = vmatprep.subr.mxu0 0.0
  %712 = vmatpush1.xpose.msra.mxu0 0.0
  %713 = vmatprep.subr.mxu0 0.0
  %714 = vmatpush1.xpose.msra.mxu0 0.0
  %715 = vmatprep.subr.mxu0 0.0
  %716 = vmatpush1.xpose.msra.mxu0 0.0
  %717 = vmatprep.subr.mxu0 0.0
  %718 = vmatpush1.xpose.msra.mxu0 0.0
  %719 = vmatprep.subr.mxu0 0.0
  %720 = vmatpush1.xpose.msra.mxu0 0.0
  %721 = vmatprep.mubr.f32.mxu0 0.0
  %722 = vmatmul.mubr.f32.gmra.mrb[0].mxu0 %v653
  %v723 = vpop.f32.mrb[0].mxu0
  %v724 = vadd.f32 %v55, %v723
  %v725 = vpop.f32.mrb[0].mxu0
  %726 = vdwg.mxu0
  %v727 = vsel %vm227, %v724, -inf
  %728 = vmax.xlane.f32.xlu0 %v727
  %v729 = vpop.xlane.xlu0 %728
  %v730 = vsub.f32 %v724, %v729
  %v731 = vmul.f32 %v730, 1.442695
  %v732 = vpow.pop %v731
  %v733 = vsel %vm227, %v732, 0.0
  %734 = vadd.xlane.f32.xlu0 %v733
  %v735 = vpop.xlane.xlu0 %734
  %v736 = vrcp.pop %v735
  %v737 = vmul.f32 %v732, %v736
  %738 = vrot.lane.b32.xlu0 %v146, 48
  %v739 = vpop.permute.xlu0 %738
  %v742 = vsel %vm227, %v737, 0
  %744 = vmatprep.subr.mxu0 0.0
  %745 = vmatpush1.msra.mxu0 %v739
  %746 = vmatprep.subr.mxu0 0.0
  %747 = vmatpush1.msra.mxu0 0.0
  %748 = vmatprep.subr.mxu0 0.0
  %749 = vmatpush1.msra.mxu0 0.0
  %750 = vmatprep.subr.mxu0 0.0
  %751 = vmatpush1.msra.mxu0 0.0
  %752 = vmatprep.subr.mxu0 0.0
  %753 = vmatpush1.msra.mxu0 0.0
  %754 = vmatprep.subr.mxu0 0.0
  %755 = vmatpush1.msra.mxu0 0.0
  %756 = vmatprep.subr.mxu0 0.0
  %757 = vmatpush1.msra.mxu0 0.0
  %758 = vmatprep.subr.mxu0 0.0
  %759 = vmatpush1.msra.mxu0 0.0
  %760 = vmatprep.subr.mxu0 0.0
  %761 = vmatpush1.msra.mxu0 0.0
  %762 = vmatprep.subr.mxu0 0.0
  %763 = vmatpush1.msra.mxu0 0.0
  %764 = vmatprep.subr.mxu0 0.0
  %765 = vmatpush1.msra.mxu0 0.0
  %766 = vmatprep.subr.mxu0 0.0
  %767 = vmatpush1.msra.mxu0 0.0
  %768 = vmatprep.subr.mxu0 0.0
  %769 = vmatpush1.msra.mxu0 0.0
  %770 = vmatprep.subr.mxu0 0.0
  %771 = vmatpush1.msra.mxu0 0.0
  %772 = vmatprep.subr.mxu0 0.0
  %773 = vmatpush1.msra.mxu0 0.0
  %774 = vmatprep.subr.mxu0 0.0
  %775 = vmatpush1.msra.mxu0 0.0
  %776 = vmatprep.subr.mxu0 0.0
  %777 = vmatpush1.msra.mxu0 0.0
  %778 = vmatprep.subr.mxu0 0.0
  %779 = vmatpush1.msra.mxu0 0.0
  %780 = vmatprep.subr.mxu0 0.0
  %781 = vmatpush1.msra.mxu0 0.0
  %782 = vmatprep.subr.mxu0 0.0
  %783 = vmatpush1.msra.mxu0 0.0
  %784 = vmatprep.subr.mxu0 0.0
  %785 = vmatpush1.msra.mxu0 0.0
  %786 = vmatprep.subr.mxu0 0.0
  %787 = vmatpush1.msra.mxu0 0.0
  %788 = vmatprep.subr.mxu0 0.0
  %789 = vmatpush1.msra.mxu0 0.0
  %790 = vmatprep.subr.mxu0 0.0
  %791 = vmatpush1.msra.mxu0 0.0
  %792 = vmatprep.subr.mxu0 0.0
  %793 = vmatpush1.msra.mxu0 0.0
  %794 = vmatprep.subr.mxu0 0.0
  %795 = vmatpush1.msra.mxu0 0.0
  %796 = vmatprep.subr.mxu0 0.0
  %797 = vmatpush1.msra.mxu0 0.0
  %798 = vmatprep.subr.mxu0 0.0
  %799 = vmatpush1.msra.mxu0 0.0
  %800 = vmatprep.subr.mxu0 0.0
  %801 = vmatpush1.msra.mxu0 0.0
  %802 = vmatprep.subr.mxu0 0.0
  %803 = vmatpush1.msra.mxu0 0.0
  %804 = vmatprep.subr.mxu0 0.0
  %805 = vmatpush1.msra.mxu0 0.0
  %806 = vmatprep.subr.mxu0 0.0
  %807 = vmatpush1.msra.mxu0 0.0
  %808 = vmatprep.mubr.f32.mxu0 0.0
  %809 = vmatmul.mubr.f32.gmra.mrb[0].mxu0 %v742
  %v810 = vpop.f32.mrb[0].mxu0
  %v811 = vadd.f32 0.0, %v810
  %v812 = vpop.f32.mrb[0].mxu0
  %813 = vdwg.mxu0
  %815 = vrot.lane.b32.xlu0 %v811, 16
  %v816 = vpop.permute.xlu0 %815
  %v818 = vsel %vm152, %v646, %v816
  %v819 = vld [vmem:[%s4] sm:$0xff]
  %v820 = vld [vmem:[%s4 + $0x8] sm:$0xff]
  %v821 = vld [vmem:[%s4 + $0x10] sm:$0xff]
  %v822 = vld [vmem:[%s4 + $0x18] sm:$0xff]
  %v823 = vld [vmem:[%s5] sm:$0x1]
  %v825 = vlaneseq
  %v826 = vshrl.u32 %v825, 7
  %v827 = vsub.s32 0, %v826
  %v828 = vrot.slane %v823, %v827
  %v831 = vsel %vm67, %v484, 0
  %v834 = vsel %vm67, %v818, 0
  %836 = vmatprep.subr.mxu0 0.0
  %837 = vmatpush1.msra.mxu0 %v819
  %838 = vmatprep.subr.mxu0 0.0
  %839 = vmatpush1.msra.mxu0 %v820
  %840 = vmatprep.subr.mxu0 0.0
  %841 = vmatpush1.msra.mxu0 %v821
  %842 = vmatprep.subr.mxu0 0.0
  %843 = vmatpush1.msra.mxu0 %v822
  %844 = vmatprep.subr.mxu0 0.0
  %845 = vmatpush1.msra.mxu0 0.0
  %846 = vmatprep.subr.mxu0 0.0
  %847 = vmatpush1.msra.mxu0 0.0
  %848 = vmatprep.subr.mxu0 0.0
  %849 = vmatpush1.msra.mxu0 0.0
  %850 = vmatprep.subr.mxu0 0.0
  %851 = vmatpush1.msra.mxu0 0.0
  %852 = vmatprep.subr.mxu0 0.0
  %853 = vmatpush1.msra.mxu0 0.0
  %854 = vmatprep.subr.mxu0 0.0
  %855 = vmatpush1.msra.mxu0 0.0
  %856 = vmatprep.subr.mxu0 0.0
  %857 = vmatpush1.msra.mxu0 0.0
  %858 = vmatprep.subr.mxu0 0.0
  %859 = vmatpush1.msra.mxu0 0.0
  %860 = vmatprep.subr.mxu0 0.0
  %861 = vmatpush1.msra.mxu0 0.0
  %862 = vmatprep.subr.mxu0 0.0
  %863 = vmatpush1.msra.mxu0 0.0
  %864 = vmatprep.subr.mxu0 0.0
  %865 = vmatpush1.msra.mxu0 0.0
  %866 = vmatprep.subr.mxu0 0.0
  %867 = vmatpush1.msra.mxu0 0.0
  %868 = vmatprep.subr.mxu0 0.0
  %869 = vmatpush1.msra.mxu0 0.0
  %870 = vmatprep.subr.mxu0 0.0
  %871 = vmatpush1.msra.mxu0 0.0
  %872 = vmatprep.subr.mxu0 0.0
  %873 = vmatpush1.msra.mxu0 0.0
  %874 = vmatprep.subr.mxu0 0.0
  %875 = vmatpush1.msra.mxu0 0.0
  %876 = vmatprep.subr.mxu0 0.0
  %877 = vmatpush1.msra.mxu0 0.0
  %878 = vmatprep.subr.mxu0 0.0
  %879 = vmatpush1.msra.mxu0 0.0
  %880 = vmatprep.subr.mxu0 0.0
  %881 = vmatpush1.msra.mxu0 0.0
  %882 = vmatprep.subr.mxu0 0.0
  %883 = vmatpush1.msra.mxu0 0.0
  %884 = vmatprep.subr.mxu0 0.0
  %885 = vmatpush1.msra.mxu0 0.0
  %886 = vmatprep.subr.mxu0 0.0
  %887 = vmatpush1.msra.mxu0 0.0
  %888 = vmatprep.subr.mxu0 0.0
  %889 = vmatpush1.msra.mxu0 0.0
  %890 = vmatprep.subr.mxu0 0.0
  %891 = vmatpush1.msra.mxu0 0.0
  %892 = vmatprep.subr.mxu0 0.0
  %893 = vmatpush1.msra.mxu0 0.0
  %894 = vmatprep.subr.mxu0 0.0
  %895 = vmatpush1.msra.mxu0 0.0
  %896 = vmatprep.subr.mxu0 0.0
  %897 = vmatpush1.msra.mxu0 0.0
  %898 = vmatprep.subr.mxu0 0.0
  %899 = vmatpush1.msra.mxu0 0.0
  %900 = vmatprep.mubr.f32.mxu0 0.0
  %901 = vmatmul.mubr.f32.gmra.mrb[0].mxu0 %v831
  %v902 = vpop.f32.mrb[0].mxu0
  %v903 = vadd.f32 %v828, %v902
  %v904 = vpop.f32.mrb[0].mxu0
  %905 = vmatprep.mubr.f32.mxu0 0.0
  %906 = vmatmul.mubr.f32.gmra.mrb[0].mxu0 %v834
  %v907 = vpop.f32.mrb[0].mxu0
  %v908 = vadd.f32 %v828, %v907
  %v909 = vpop.f32.mrb[0].mxu0
  %910 = vdwg.mxu0
  %v911 = vadd.f32 %v53, %v903
  %v912 = vadd.f32 %v54, %v908
  %v913 = vsel %vm67, %v911, 0.0
  %914 = vadd.xlane.f32.xlu0 %v913
  %v915 = vpop.xlane.xlu0 %914
  %v916 = vsel %vm67, %v912, 0.0
  %917 = vadd.xlane.f32.xlu0 %v916
  %v918 = vpop.xlane.xlu0 %917
  %v919 = vrcp.pop 32.0
  %v920 = vmul.f32 %v915, %v919
  %v921 = vmul.f32 %v918, %v919
  %v922 = vsub.f32 %v911, %v920
  %v923 = vsub.f32 %v912, %v921
  %v924 = vmul.f32 %v922, %v922
  %v925 = vmul.f32 %v923, %v923
  %v926 = vsel %vm67, %v924, 0.0
  %927 = vadd.xlane.f32.xlu0 %v926
  %v928 = vpop.xlane.xlu0 %927
  %v929 = vsel %vm67, %v925, 0.0
  %930 = vadd.xlane.f32.xlu0 %v929
  %v931 = vpop.xlane.xlu0 %930
  %v932 = vmul.f32 %v928, %v919
  %v933 = vmul.f32 %v931, %v919
  %v934 = vadd.f32 %v932, 1e-05
  %v935 = vadd.f32 %v933, 1e-05
  %v936 = vrsqrt.pop %v934
  %v937 = vrsqrt.pop %v935
  %v938 = vmul.f32 %v922, %v936
  %v939 = vmul.f32 %v923, %v937
  %v940 = vld [vmem:[%s6] sm:$0x1]
  %v942 = vlaneseq
  %v943 = vshrl.u32 %v942, 7
  %v944 = vsub.s32 0, %v943
  %v945 = vrot.slane %v940, %v944
  %v947 = vmul.f32 %v938, %v945
  %v948 = vmul.f32 %v939, %v945
  %v949 = vld [vmem:[%s7] sm:$0x1]
  %v951 = vlaneseq
  %v952 = vshrl.u32 %v951, 7
  %v953 = vsub.s32 0, %v952
  %v954 = vrot.slane %v949, %v953
  %v956 = vadd.f32 %v947, %v954
  %v957 = vadd.f32 %v948, %v954
  %v958 = vld [vmem:[%s8] sm:$0xff]
  %v959 = vld [vmem:[%s8 + $0x8] sm:$0xff]
  %v960 = vld [vmem:[%s8 + $0x10] sm:$0xff]
  %v961 = vld [vmem:[%s8 + $0x18] sm:$0xff]
  %v962 = vld [vmem:[%s8 + $0x20] sm:$0xff]
  %v963 = vld [vmem:[%s8 + $0x28] sm:$0xff]
  %v964 = vld [vmem:[%s8 + $0x30] sm:$0xff]
  %v965 = vld [vmem:[%s8 + $0x38] sm:$0xff]
  %v966 = vld [vmem:[%s9] sm:$0x3]
  %v968 = vlaneseq
  %v969 = vshrl.u32 %v968, 7
  %v970 = vsub.s32 0, %v969
  %v971 = vrot.slane %v966, %v970
  %v972 = vlaneseq
  %v973 = vshrl.u32 %v972, 7
  %v974 = vsub.s32 1, %v973
  %v975 = vrot.slane %v966, %v974
  %v979 = vsel %vm67, %v956, 0
  %v982 = vsel %vm67, %v957, 0
  %984 = vmatprep.subr.mxu0 %v959
  %985 = vmatpush1.msra.mxu0 %v958
  %986 = vmatprep.subr.mxu0 %v961
  %987 = vmatpush1.msra.mxu0 %v960
  %988 = vmatprep.subr.mxu0 %v963
  %989 = vmatpush1.msra.mxu0 %v962
  %990 = vmatprep.subr.mxu0 %v965
  %991 = vmatpush1.msra.mxu0 %v964
  %992 = vmatprep.subr.mxu0 0.0
  %993 = vmatpush1.msra.mxu0 0.0
  %994 = vmatprep.subr.mxu0 0.0
  %995 = vmatpush1.msra.mxu0 0.0
  %996 = vmatprep.subr.mxu0 0.0
  %997 = vmatpush1.msra.mxu0 0.0
  %998 = vmatprep.subr.mxu0 0.0
  %999 = vmatpush1.msra.mxu0 0.0
  %1000 = vmatprep.subr.mxu0 0.0
  %1001 = vmatpush1.msra.mxu0 0.0
  %1002 = vmatprep.subr.mxu0 0.0
  %1003 = vmatpush1.msra.mxu0 0.0
  %1004 = vmatprep.subr.mxu0 0.0
  %1005 = vmatpush1.msra.mxu0 0.0
  %1006 = vmatprep.subr.mxu0 0.0
  %1007 = vmatpush1.msra.mxu0 0.0
  %1008 = vmatprep.subr.mxu0 0.0
  %1009 = vmatpush1.msra.mxu0 0.0
  %1010 = vmatprep.subr.mxu0 0.0
  %1011 = vmatpush1.msra.mxu0 0.0
  %1012 = vmatprep.subr.mxu0 0.0
  %1013 = vmatpush1.msra.mxu0 0.0
  %1014 = vmatprep.subr.mxu0 0.0
  %1015 = vmatpush1.msra.mxu0 0.0
  %1016 = vmatprep.subr.mxu0 0.0
  %1017 = vmatpush1.msra.mxu0 0.0
  %1018 = vmatprep.subr.mxu0 0.0
  %1019 = vmatpush1.msra.mxu0 0.0
  %1020 = vmatprep.subr.mxu0 0.0
  %1021 = vmatpush1.msra.mxu0 0.0
  %1022 = vmatprep.subr.mxu0 0.0
  %1023 = vmatpush1.msra.mxu0 0.0
  %1024 = vmatprep.subr.mxu0 0.0
  %1025 = vmatpush1.msra.mxu0 0.0
  %1026 = vmatprep.subr.mxu0 0.0
  %1027 = vmatpush1.msra.mxu0 0.0
  %1028 = vmatprep.subr.mxu0 0.0
  %1029 = vmatpush1.msra.mxu0 0.0
  %1030 = vmatprep.subr.mxu0 0.0
  %1031 = vmatpush1.msra.mxu0 0.0
  %1032 = vmatprep.subr.mxu0 0.0
  %1033 = vmatpush1.msra.mxu0 0.0
  %1034 = vmatprep.subr.mxu0 0.0
  %1035 = vmatpush1.msra.mxu0 0.0
  %1036 = vmatprep.subr.mxu0 0.0
  %1037 = vmatpush1.msra.mxu0 0.0
  %1038 = vmatprep.subr.mxu0 0.0
  %1039 = vmatpush1.msra.mxu0 0.0
  %1040 = vmatprep.subr.mxu0 0.0
  %1041 = vmatpush1.msra.mxu0 0.0
  %1042 = vmatprep.subr.mxu0 0.0
  %1043 = vmatpush1.msra.mxu0 0.0
  %1044 = vmatprep.subr.mxu0 0.0
  %1045 = vmatpush1.msra.mxu0 0.0
  %1046 = vmatprep.subr.mxu0 0.0
  %1047 = vmatpush1.msra.mxu0 0.0
  %1048 = vmatprep.mubr.f32.mxu0 0.0
  %1049 = vmatmul.mubr.f32.gmra.mrb[0].mxu0 %v979
  %v1050 = vpop.f32.mrb[0].mxu0
  %v1051 = vadd.f32 %v971, %v1050
  %v1052 = vpop.f32.mrb[0].mxu0
  %v1053 = vadd.f32 %v975, %v1052
  %1054 = vmatprep.mubr.f32.mxu0 0.0
  %1055 = vmatmul.mubr.f32.gmra.mrb[0].mxu0 %v982
  %v1056 = vpop.f32.mrb[0].mxu0
  %v1057 = vadd.f32 %v971, %v1056
  %v1058 = vpop.f32.mrb[0].mxu0
  %v1059 = vadd.f32 %v975, %v1058
  %1060 = vdwg.mxu0
  %v1061 = vmax.f32 %v1051, 0.0
  %v1062 = vmax.f32 %v1053, 0.0
  %v1063 = vmax.f32 %v1057, 0.0
  %v1064 = vmax.f32 %v1059, 0.0
  %v1065 = vld [vmem:[%s10] sm:$0xff]
  %v1066 = vld [vmem:[%s10 + $0x8] sm:$0xff]
  %v1067 = vld [vmem:[%s10 + $0x10] sm:$0xff]
  %v1068 = vld [vmem:[%s10 + $0x18] sm:$0xff]
  %v1069 = vld [vmem:[%s10 + $0x20] sm:$0xff]
  %v1070 = vld [vmem:[%s10 + $0x28] sm:$0xff]
  %v1071 = vld [vmem:[%s10 + $0x30] sm:$0xff]
  %v1072 = vld [vmem:[%s10 + $0x38] sm:$0xff]
  %v1073 = vld [vmem:[%s10 + $0x40] sm:$0xff]
  %v1074 = vld [vmem:[%s10 + $0x48] sm:$0xff]
  %v1075 = vld [vmem:[%s10 + $0x50] sm:$0xff]
  %v1076 = vld [vmem:[%s10 + $0x58] sm:$0xff]
  %v1077 = vld [vmem:[%s10 + $0x60] sm:$0xff]
  %v1078 = vld [vmem:[%s10 + $0x68] sm:$0xff]
  %v1079 = vld [vmem:[%s10 + $0x70] sm:$0xff]
  %v1080 = vld [vmem:[%s10 + $0x78] sm:$0xff]
  %v1081 = vld [vmem:[%s10 + $0x80] sm:$0xff]
  %v1082 = vld [vmem:[%s10 + $0x88] sm:$0xff]
  %v1083 = vld [vmem:[%s10 + $0x90] sm:$0xff]
  %v1084 = vld [vmem:[%s10 + $0x98] sm:$0xff]
  %v1085 = vld [vmem:[%s10 + $0xa0] sm:$0xff]
  %v1086 = vld [vmem:[%s10 + $0xa8] sm:$0xff]
  %v1087 = vld [vmem:[%s10 + $0xb0] sm:$0xff]
  %v1088 = vld [vmem:[%s10 + $0xb8] sm:$0xff]
  %v1089 = vld [vmem:[%s10 + $0xc0] sm:$0xff]
  %v1090 = vld [vmem:[%s10 + $0xc8] sm:$0xff]
  %v1091 = vld [vmem:[%s10 + $0xd0] sm:$0xff]
  %v1092 = vld [vmem:[%s10 + $0xd8] sm:$0xff]
  %v1093 = vld [vmem:[%s10 + $0xe0] sm:$0xff]
  %v1094 = vld [vmem:[%s10 + $0xe8] sm:$0xff]
  %v1095 = vld [vmem:[%s10 + $0xf0] sm:$0xff]
  %v1096 = vld [vmem:[%s10 + $0xf8] sm:$0xff]
  %v1097 = vld [vmem:[%s11] sm:$0x1]
  %v1099 = vlaneseq
  %v1100 = vshrl.u32 %v1099, 7
  %v1101 = vsub.s32 0, %v1100
  %v1102 = vrot.slane %v1097, %v1101
  %1104 = vmatprep.subr.mxu0 0.0
  %1105 = vmatpush1.msra.mxu0 %v1065
  %1106 = vmatprep.subr.mxu0 0.0
  %1107 = vmatpush1.msra.mxu0 %v1066
  %1108 = vmatprep.subr.mxu0 0.0
  %1109 = vmatpush1.msra.mxu0 %v1067
  %1110 = vmatprep.subr.mxu0 0.0
  %1111 = vmatpush1.msra.mxu0 %v1068
  %1112 = vmatprep.subr.mxu0 0.0
  %1113 = vmatpush1.msra.mxu0 %v1069
  %1114 = vmatprep.subr.mxu0 0.0
  %1115 = vmatpush1.msra.mxu0 %v1070
  %1116 = vmatprep.subr.mxu0 0.0
  %1117 = vmatpush1.msra.mxu0 %v1071
  %1118 = vmatprep.subr.mxu0 0.0
  %1119 = vmatpush1.msra.mxu0 %v1072
  %1120 = vmatprep.subr.mxu0 0.0
  %1121 = vmatpush1.msra.mxu0 %v1073
  %1122 = vmatprep.subr.mxu0 0.0
  %1123 = vmatpush1.msra.mxu0 %v1074
  %1124 = vmatprep.subr.mxu0 0.0
  %1125 = vmatpush1.msra.mxu0 %v1075
  %1126 = vmatprep.subr.mxu0 0.0
  %1127 = vmatpush1.msra.mxu0 %v1076
  %1128 = vmatprep.subr.mxu0 0.0
  %1129 = vmatpush1.msra.mxu0 %v1077
  %1130 = vmatprep.subr.mxu0 0.0
  %1131 = vmatpush1.msra.mxu0 %v1078
  %1132 = vmatprep.subr.mxu0 0.0
  %1133 = vmatpush1.msra.mxu0 %v1079
  %1134 = vmatprep.subr.mxu0 0.0
  %1135 = vmatpush1.msra.mxu0 %v1080
  %1136 = vmatprep.subr.mxu0 0.0
  %1137 = vmatpush1.msra.mxu0 %v1081
  %1138 = vmatprep.subr.mxu0 0.0
  %1139 = vmatpush1.msra.mxu0 %v1082
  %1140 = vmatprep.subr.mxu0 0.0
  %1141 = vmatpush1.msra.mxu0 %v1083
  %1142 = vmatprep.subr.mxu0 0.0
  %1143 = vmatpush1.msra.mxu0 %v1084
  %1144 = vmatprep.subr.mxu0 0.0
  %1145 = vmatpush1.msra.mxu0 %v1085
  %1146 = vmatprep.subr.mxu0 0.0
  %1147 = vmatpush1.msra.mxu0 %v1086
  %1148 = vmatprep.subr.mxu0 0.0
  %1149 = vmatpush1.msra.mxu0 %v1087
  %1150 = vmatprep.subr.mxu0 0.0
  %1151 = vmatpush1.msra.mxu0 %v1088
  %1152 = vmatprep.subr.mxu0 0.0
  %1153 = vmatpush1.msra.mxu0 %v1089
  %1154 = vmatprep.subr.mxu0 0.0
  %1155 = vmatpush1.msra.mxu0 %v1090
  %1156 = vmatprep.subr.mxu0 0.0
  %1157 = vmatpush1.msra.mxu0 %v1091
  %1158 = vmatprep.subr.mxu0 0.0
  %1159 = vmatpush1.msra.mxu0 %v1092
  %1160 = vmatprep.subr.mxu0 0.0
  %1161 = vmatpush1.msra.mxu0 %v1093
  %1162 = vmatprep.subr.mxu0 0.0
  %1163 = vmatpush1.msra.mxu0 %v1094
  %1164 = vmatprep.subr.mxu0 0.0
  %1165 = vmatpush1.msra.mxu0 %v1095
  %1166 = vmatprep.subr.mxu0 0.0
  %1167 = vmatpush1.msra.mxu0 %v1096
  %1168 = vmatprep.mubr.f32.mxu0 %v1062
  %1169 = vmatmul.mubr.f32.gmra.mrb[0].mxu0 %v1061
  %v1170 = vpop.f32.mrb[0].mxu0
  %v1171 = vadd.f32 %v1102, %v1170
  %v1172 = vpop.f32.mrb[0].mxu0
  %1173 = vmatprep.mubr.f32.mxu0 %v1064
  %1174 = vmatmul.mubr.f32.gmra.mrb[0].mxu0 %v1063
  %v1175 = vpop.f32.mrb[0].mxu0
  %v1176 = vadd.f32 %v1102, %v1175
  %v1177 = vpop.f32.mrb[0].mxu0
  %1178 = vdwg.mxu0
  %v1179 = vadd.f32 %v956, %v1171
  %v1180 = vadd.f32 %v957, %v1176
  %v1181 = vsel %vm67, %v1179, 0.0
  %1182 = vadd.xlane.f32.xlu0 %v1181
  %v1183 = vpop.xlane.xlu0 %1182
  %v1184 = vsel %vm67, %v1180, 0.0
  %1185 = vadd.xlane.f32.xlu0 %v1184
  %v1186 = vpop.xlane.xlu0 %1185
  %v1187 = vmul.f32 %v1183, %v919
  %v1188 = vmul.f32 %v1186, %v919
  %v1189 = vsub.f32 %v1179, %v1187
  %v1190 = vsub.f32 %v1180, %v1188
  %v1191 = vmul.f32 %v1189, %v1189
  %v1192 = vmul.f32 %v1190, %v1190
  %v1193 = vsel %vm67, %v1191, 0.0
  %1194 = vadd.xlane.f32.xlu0 %v1193
  %v1195 = vpop.xlane.xlu0 %1194
  %v1196 = vsel %vm67, %v1192, 0.0
  %1197 = vadd.xlane.f32.xlu0 %v1196
  %v1198 = vpop.xlane.xlu0 %1197
  %v1199 = vmul.f32 %v1195, %v919
  %v1200 = vmul.f32 %v1198, %v919
  %v1201 = vadd.f32 %v1199, 1e-05
  %v1202 = vadd.f32 %v1200, 1e-05
  %v1203 = vrsqrt.pop %v1201
  %v1204 = vrsqrt.pop %v1202
  %v1205 = vmul.f32 %v1189, %v1203
  %v1206 = vmul.f32 %v1190, %v1204
  %v1207 = vld [vmem:[%s12] sm:$0x1]
  %v1209 = vlaneseq
  %v1210 = vshrl.u32 %v1209, 7
  %v1211 = vsub.s32 0, %v1210
  %v1212 = vrot.slane %v1207, %v1211
  %v1214 = vmul.f32 %v1205, %v1212
  %v1215 = vmul.f32 %v1206, %v1212
  %v1216 = vld [vmem:[%s13] sm:$0x1]
  %v1218 = vlaneseq
  %v1219 = vshrl.u32 %v1218, 7
  %v1220 = vsub.s32 0, %v1219
  %v1221 = vrot.slane %v1216, %v1220
  %v1223 = vadd.f32 %v1214, %v1221
  %v1224 = vadd.f32 %v1215, %v1221
  %s1225 = scalar_lea.vmem %s2, 32
  %v1226 = vld [vmem:[%s1225] sm:$0xff]
  %v1227 = vld [vmem:[%s1225 + $0x8] sm:$0xff]
  %v1228 = vld [vmem:[%s1225 + $0x10] sm:$0xff]
  %v1229 = vld [vmem:[%s1225 + $0x18] sm:$0xff]
  %s1230 = scalar_lea.vmem %s3, 1
  %v1231 = vld [vmem:[%s1230] sm:$0x1]
  %v1233 = vlaneseq
  %v1234 = vshrl.u32 %v1233, 7
  %v1235 = vsub.s32 0, %v1234
  %v1236 = vrot.slane %v1231, %v1235
  %v1239 = vsel %vm67, %v1223, 0
  %v1242 = vsel %vm67, %v1224, 0
  %1244 = vmatprep.subr.mxu0 0.0
  %1245 = vmatpush1.msra.mxu0 %v1226
  %1246 = vmatprep.subr.mxu0 0.0
  %1247 = vmatpush1.msra.mxu0 %v1227
  %1248 = vmatprep.subr.mxu0 0.0
  %1249 = vmatpush1.msra.mxu0 %v1228
  %1250 = vmatprep.subr.mxu0 0.0
  %1251 = vmatpush1.msra.mxu0 %v1229
  %1252 = vmatprep.subr.mxu0 0.0
  %1253 = vmatpush1.msra.mxu0 0.0
  %1254 = vmatprep.subr.mxu0 0.0
  %1255 = vmatpush1.msra.mxu0 0.0
  %1256 = vmatprep.subr.mxu0 0.0
  %1257 = vmatpush1.msra.mxu0 0.0
  %1258 = vmatprep.subr.mxu0 0.0
  %1259 = vmatpush1.msra.mxu0 0.0
  %1260 = vmatprep.subr.mxu0 0.0
  %1261 = vmatpush1.msra.mxu0 0.0
  %1262 = vmatprep.subr.mxu0 0.0
  %1263 = vmatpush1.msra.mxu0 0.0
  %1264 = vmatprep.subr.mxu0 0.0
  %1265 = vmatpush1.msra.mxu0 0.0
  %1266 = vmatprep.subr.mxu0 0.0
  %1267 = vmatpush1.msra.mxu0 0.0
  %1268 = vmatprep.subr.mxu0 0.0
  %1269 = vmatpush1.msra.mxu0 0.0
  %1270 = vmatprep.subr.mxu0 0.0
  %1271 = vmatpush1.msra.mxu0 0.0
  %1272 = vmatprep.subr.mxu0 0.0
  %1273 = vmatpush1.msra.mxu0 0.0
  %1274 = vmatprep.subr.mxu0 0.0
  %1275 = vmatpush1.msra.mxu0 0.0
  %1276 = vmatprep.subr.mxu0 0.0
  %1277 = vmatpush1.msra.mxu0 0.0
  %1278 = vmatprep.subr.mxu0 0.0
  %1279 = vmatpush1.msra.mxu0 0.0
  %1280 = vmatprep.subr.mxu0 0.0
  %1281 = vmatpush1.msra.mxu0 0.0
  %1282 = vmatprep.subr.mxu0 0.0
  %1283 = vmatpush1.msra.mxu0 0.0
  %1284 = vmatprep.subr.mxu0 0.0
  %1285 = vmatpush1.msra.mxu0 0.0
  %1286 = vmatprep.subr.mxu0 0.0
  %1287 = vmatpush1.msra.mxu0 0.0
  %1288 = vmatprep.subr.mxu0 0.0
  %1289 = vmatpush1.msra.mxu0 0.0
  %1290 = vmatprep.subr.mxu0 0.0
  %1291 = vmatpush1.msra.mxu0 0.0
  %1292 = vmatprep.subr.mxu0 0.0
  %1293 = vmatpush1.msra.mxu0 0.0
  %1294 = vmatprep.subr.mxu0 0.0
  %1295 = vmatpush1.msra.mxu0 0.0
  %1296 = vmatprep.subr.mxu0 0.0
  %1297 = vmatpush1.msra.mxu0 0.0
  %1298 = vmatprep.subr.mxu0 0.0
  %1299 = vmatpush1.msra.mxu0 0.0
  %1300 = vmatprep.subr.mxu0 0.0
  %1301 = vmatpush1.msra.mxu0 0.0
  %1302 = vmatprep.subr.mxu0 0.0
  %1303 = vmatpush1.msra.mxu0 0.0
  %1304 = vmatprep.subr.mxu0 0.0
  %1305 = vmatpush1.msra.mxu0 0.0
  %1306 = vmatprep.subr.mxu0 0.0
  %1307 = vmatpush1.msra.mxu0 0.0
  %1308 = vmatprep.mubr.f32.mxu0 0.0
  %1309 = vmatmul.mubr.f32.gmra.mrb[0].mxu0 %v1239
  %v1310 = vpop.f32.mrb[0].mxu0
  %v1311 = vadd.f32 %v1236, %v1310
  %v1312 = vpop.f32.mrb[0].mxu0
  %1313 = vmatprep.mubr.f32.mxu0 0.0
  %1314 = vmatmul.mubr.f32.gmra.mrb[0].mxu0 %v1242
  %v1315 = vpop.f32.mrb[0].mxu0
  %v1316 = vadd.f32 %v1236, %v1315
  %v1317 = vpop.f32.mrb[0].mxu0
  %1318 = vdwg.mxu0
  %1320 = vrot.lane.b32.xlu0 %v1311, 96
  %v1321 = vpop.permute.xlu0 %1320
  %v1322 = vsel %vm152, %v1311, 0
  %v1324 = vsel %vm152, %v1321, 0
  %1326 = vmatprep.subr.mxu0 0.0
  %1327 = vmatpush1.xpose.msra.mxu0 %v1324
  %1328 = vmatprep.subr.mxu0 0.0
  %1329 = vmatpush1.xpose.msra.mxu0 0.0
  %1330 = vmatprep.subr.mxu0 0.0
  %1331 = vmatpush1.xpose.msra.mxu0 0.0
  %1332 = vmatprep.subr.mxu0 0.0
  %1333 = vmatpush1.xpose.msra.mxu0 0.0
  %1334 = vmatprep.subr.mxu0 0.0
  %1335 = vmatpush1.xpose.msra.mxu0 0.0
  %1336 = vmatprep.subr.mxu0 0.0
  %1337 = vmatpush1.xpose.msra.mxu0 0.0
  %1338 = vmatprep.subr.mxu0 0.0
  %1339 = vmatpush1.xpose.msra.mxu0 0.0
  %1340 = vmatprep.subr.mxu0 0.0
  %1341 = vmatpush1.xpose.msra.mxu0 0.0
  %1342 = vmatprep.subr.mxu0 0.0
  %1343 = vmatpush1.xpose.msra.mxu0 0.0
  %1344 = vmatprep.subr.mxu0 0.0
  %1345 = vmatpush1.xpose.msra.mxu0 0.0
  %1346 = vmatprep.subr.mxu0 0.0
  %1347 = vmatpush1.xpose.msra.mxu0 0.0
  %1348 = vmatprep.subr.mxu0 0.0
  %1349 = vmatpush1.xpose.msra.mxu0 0.0
  %1350 = vmatprep.subr.mxu0 0.0
  %1351 = vmatpush1.xpose.msra.mxu0 0.0
  %1352 = vmatprep.subr.mxu0 0.0
  %1353 = vmatpush1.xpose.msra.mxu0 0.0
  %1354 = vmatprep.subr.mxu0 0.0
  %1355 = vmatpush1.xpose.msra.mxu0 0.0
  %1356 = vmatprep.subr.mxu0 0.0
  %1357 = vmatpush1.xpose.msra.mxu0 0.0
  %1358 = vmatprep.subr.mxu0 0.0
  %1359 = vmatpush1.xpose.msra.mxu0 0.0
  %1360 = vmatprep.subr.mxu0 0.0
  %1361 = vmatpush1.xpose.msra.mxu0 0.0
  %1362 = vmatprep.subr.mxu0 0.0
  %1363 = vmatpush1.xpose.msra.mxu0 0.0
  %1364 = vmatprep.subr.mxu0 0.0
  %1365 = vmatpush1.xpose.msra.mxu0 0.0
  %1366 = vmatprep.subr.mxu0 0.0
  %1367 = vmatpush1.xpose.msra.mxu0 0.0
  %1368 = vmatprep.subr.mxu0 0.0
  %1369 = vmatpush1.xpose.msra.mxu0 0.0
  %1370 = vmatprep.subr.mxu0 0.0
  %1371 = vmatpush1.xpose.msra.mxu0 0.0
  %1372 = vmatprep.subr.mxu0 0.0
  %1373 = vmatpush1.xpose.msra.mxu0 0.0
  %1374 = vmatprep.subr.mxu0 0.0
  %1375 = vmatpush1.xpose.msra.mxu0 0.0
  %1376 = vmatprep.subr.mxu0 0.0
  %1377 = vmatpush1.xpose.msra.mxu0 0.0
  %1378 = vmatprep.subr.mxu0 0.0
  %1379 = vmatpush1.xpose.msra.mxu0 0.0
  %1380 = vmatprep.subr.mxu0 0.0
  %1381 = vmatpush1.xpose.msra.mxu0 0.0
  %1382 = vmatprep.subr.mxu0 0.0
  %1383 = vmatpush1.xpose.msra.mxu0 0.0
  %1384 = vmatprep.subr.mxu0 0.0
  %1385 = vmatpush1.xpose.msra.mxu0 0.0
  %1386 = vmatprep.subr.mxu0 0.0
  %1387 = vmatpush1.xpose.msra.mxu0 0.0
  %1388 = vmatprep.subr.mxu0 0.0
  %1389 = vmatpush1.xpose.msra.mxu0 0.0
  %1390 = vmatprep.mubr.f32.mxu0 0.0
  %1391 = vmatmul.mubr.f32.gmra.mrb[0].mxu0 %v1322
  %v1392 = vpop.f32.mrb[0].mxu0
  %v1393 = vadd.f32 %v55, %v1392
  %v1394 = vpop.f32.mrb[0].mxu0
  %1395 = vdwg.mxu0
  %v1396 = vsel %vm227, %v1393, -inf
  %1397 = vmax.xlane.f32.xlu0 %v1396
  %v1398 = vpop.xlane.xlu0 %1397
  %v1399 = vsub.f32 %v1393, %v1398
  %v1400 = vmul.f32 %v1399, 1.442695
  %v1401 = vpow.pop %v1400
  %v1402 = vsel %vm227, %v1401, 0.0
  %1403 = vadd.xlane.f32.xlu0 %v1402
  %v1404 = vpop.xlane.xlu0 %1403
  %v1405 = vrcp.pop %v1404
  %v1406 = vmul.f32 %v1401, %v1405
  %1407 = vrot.lane.b32.xlu0 %v1311, 64
  %v1408 = vpop.permute.xlu0 %1407
  %v1411 = vsel %vm227, %v1406, 0
  %1413 = vmatprep.subr.mxu0 0.0
  %1414 = vmatpush1.msra.mxu0 %v1408
  %1415 = vmatprep.subr.mxu0 0.0
  %1416 = vmatpush1.msra.mxu0 0.0
  %1417 = vmatprep.subr.mxu0 0.0
  %1418 = vmatpush1.msra.mxu0 0.0
  %1419 = vmatprep.subr.mxu0 0.0
  %1420 = vmatpush1.msra.mxu0 0.0
  %1421 = vmatprep.subr.mxu0 0.0
  %1422 = vmatpush1.msra.mxu0 0.0
  %1423 = vmatprep.subr.mxu0 0.0
  %1424 = vmatpush1.msra.mxu0 0.0
  %1425 = vmatprep.subr.mxu0 0.0
  %1426 = vmatpush1.msra.mxu0 0.0
  %1427 = vmatprep.subr.mxu0 0.0
  %1428 = vmatpush1.msra.mxu0 0.0
  %1429 = vmatprep.subr.mxu0 0.0
  %1430 = vmatpush1.msra.mxu0 0.0
  %1431 = vmatprep.subr.mxu0 0.0
  %1432 = vmatpush1.msra.mxu0 0.0
  %1433 = vmatprep.subr.mxu0 0.0
  %1434 = vmatpush1.msra.mxu0 0.0
  %1435 = vmatprep.subr.mxu0 0.0
  %1436 = vmatpush1.msra.mxu0 0.0
  %1437 = vmatprep.subr.mxu0 0.0
  %1438 = vmatpush1.msra.mxu0 0.0
  %1439 = vmatprep.subr.mxu0 0.0
  %1440 = vmatpush1.msra.mxu0 0.0
  %1441 = vmatprep.subr.mxu0 0.0
  %1442 = vmatpush1.msra.mxu0 0.0
  %1443 = vmatprep.subr.mxu0 0.0
  %1444 = vmatpush1.msra.mxu0 0.0
  %1445 = vmatprep.subr.mxu0 0.0
  %1446 = vmatpush1.msra.mxu0 0.0
  %1447 = vmatprep.subr.mxu0 0.0
  %1448 = vmatpush1.msra.mxu0 0.0
  %1449 = vmatprep.subr.mxu0 0.0
  %1450 = vmatpush1.msra.mxu0 0.0
  %1451 = vmatprep.subr.mxu0 0.0
  %1452 = vmatpush1.msra.mxu0 0.0
  %1453 = vmatprep.subr.mxu0 0.0
  %1454 = vmatpush1.msra.mxu0 0.0
  %1455 = vmatprep.subr.mxu0 0.0
  %1456 = vmatpush1.msra.mxu0 0.0
  %1457 = vmatprep.subr.mxu0 0.0
  %1458 = vmatpush1.msra.mxu0 0.0
  %1459 = vmatprep.subr.mxu0 0.0
  %1460 = vmatpush1.msra.mxu0 0.0
  %1461 = vmatprep.subr.mxu0 0.0
  %1462 = vmatpush1.msra.mxu0 0.0
  %1463 = vmatprep.subr.mxu0 0.0
  %1464 = vmatpush1.msra.mxu0 0.0
  %1465 = vmatprep.subr.mxu0 0.0
  %1466 = vmatpush1.msra.mxu0 0.0
  %1467 = vmatprep.subr.mxu0 0.0
  %1468 = vmatpush1.msra.mxu0 0.0
  %1469 = vmatprep.subr.mxu0 0.0
  %1470 = vmatpush1.msra.mxu0 0.0
  %1471 = vmatprep.subr.mxu0 0.0
  %1472 = vmatpush1.msra.mxu0 0.0
  %1473 = vmatprep.subr.mxu0 0.0
  %1474 = vmatpush1.msra.mxu0 0.0
  %1475 = vmatprep.subr.mxu0 0.0
  %1476 = vmatpush1.msra.mxu0 0.0
  %1477 = vmatprep.mubr.f32.mxu0 0.0
  %1478 = vmatmul.mubr.f32.gmra.mrb[0].mxu0 %v1411
  %v1479 = vpop.f32.mrb[0].mxu0
  %v1480 = vadd.f32 0.0, %v1479
  %v1481 = vpop.f32.mrb[0].mxu0
  %1482 = vdwg.mxu0
  %1483 = vrot.lane.b32.xlu0 %v1311, 112
  %v1484 = vpop.permute.xlu0 %1483
  %1485 = vrot.lane.b32.xlu0 %v1311, 80
  %v1486 = vpop.permute.xlu0 %1485
  %v1487 = vsel %vm152, %v1484, 0
  %v1489 = vsel %vm152, %v1486, 0
  %1491 = vmatprep.subr.mxu0 0.0
  %1492 = vmatpush1.xpose.msra.mxu0 %v1489
  %1493 = vmatprep.subr.mxu0 0.0
  %1494 = vmatpush1.xpose.msra.mxu0 0.0
  %1495 = vmatprep.subr.mxu0 0.0
  %1496 = vmatpush1.xpose.msra.mxu0 0.0
  %1497 = vmatprep.subr.mxu0 0.0
  %1498 = vmatpush1.xpose.msra.mxu0 0.0
  %1499 = vmatprep.subr.mxu0 0.0
  %1500 = vmatpush1.xpose.msra.mxu0 0.0
  %1501 = vmatprep.subr.mxu0 0.0
  %1502 = vmatpush1.xpose.msra.mxu0 0.0
  %1503 = vmatprep.subr.mxu0 0.0
  %1504 = vmatpush1.xpose.msra.mxu0 0.0
  %1505 = vmatprep.subr.mxu0 0.0
  %1506 = vmatpush1.xpose.msra.mxu0 0.0
  %1507 = vmatprep.subr.mxu0 0.0
  %1508 = vmatpush1.xpose.msra.mxu0 0.0
  %1509 = vmatprep.subr.mxu0 0.0
  %1510 = vmatpush1.xpose.msra.mxu0 0.0
  %1511 = vmatprep.subr.mxu0 0.0
  %1512 = vmatpush1.xpose.msra.mxu0 0.0
  %1513 = vmatprep.subr.mxu0 0.0
  %1514 = vmatpush1.xpose.msra.mxu0 0.0
  %1515 = vmatprep.subr.mxu0 0.0
  %1516 = vmatpush1.xpose.msra.mxu0 0.0
  %1517 = vmatprep.subr.mxu0 0.0
  %1518 = vmatpush1.xpose.msra.mxu0 0.0
  %1519 = vmatprep.subr.mxu0 0.0
  %1520 = vmatpush1.xpose.msra.mxu0 0.0
  %1521 = vmatprep.subr.mxu0 0.0
  %1522 = vmatpush1.xpose.msra.mxu0 0.0
  %1523 = vmatprep.subr.mxu0 0.0
  %1524 = vmatpush1.xpose.msra.mxu0 0.0
  %1525 = vmatprep.subr.mxu0 0.0
  %1526 = vmatpush1.xpose.msra.mxu0 0.0
  %1527 = vmatprep.subr.mxu0 0.0
  %1528 = vmatpush1.xpose.msra.mxu0 0.0
  %1529 = vmatprep.subr.mxu0 0.0
  %1530 = vmatpush1.xpose.msra.mxu0 0.0
  %1531 = vmatprep.subr.mxu0 0.0
  %1532 = vmatpush1.xpose.msra.mxu0 0.0
  %1533 = vmatprep.subr.mxu0 0.0
  %1534 = vmatpush1.xpose.msra.mxu0 0.0
  %1535 = vmatprep.subr.mxu0 0.0
  %1536 = vmatpush1.xpose.msra.mxu0 0.0
  %1537 = vmatprep.subr.mxu0 0.0
  %1538 = vmatpush1.xpose.msra.mxu0 0.0
  %1539 = vmatprep.subr.mxu0 0.0
  %1540 = vmatpush1.xpose.msra.mxu0 0.0
  %1541 = vmatprep.subr.mxu0 0.0
  %1542 = vmatpush1.xpose.msra.mxu0 0.0
  %1543 = vmatprep.subr.mxu0 0.0
  %1544 = vmatpush1.xpose.msra.mxu0 0.0
  %1545 = vmatprep.subr.mxu0 0.0
  %1546 = vmatpush1.xpose.msra.mxu0 0.0
  %1547 = vmatprep.subr.mxu0 0.0
  %1548 = vmatpush1.xpose.msra.mxu0 0.0
  %1549 = vmatprep.subr.mxu0 0.0
  %1550 = vmatpush1.xpose.msra.mxu0 0.0
  %1551 = vmatprep.subr.mxu0 0.0
  %1552 = vmatpush1.xpose.msra.mxu0 0.0
  %1553 = vmatprep.subr.mxu0 0.0
  %1554 = vmatpush1.xpose.msra.mxu0 0.0
  %1555 = vmatprep.mubr.f32.mxu0 0.0
  %1556 = vmatmul.mubr.f32.gmra.mrb[0].mxu0 %v1487
  %v1557 = vpop.f32.mrb[0].mxu0
  %v1558 = vadd.f32 %v55, %v1557
  %v1559 = vpop.f32.mrb[0].mxu0
  %1560 = vdwg.mxu0
  %v1561 = vsel %vm227, %v1558, -inf
  %1562 = vmax.xlane.f32.xlu0 %v1561
  %v1563 = vpop.xlane.xlu0 %1562
  %v1564 = vsub.f32 %v1558, %v1563
  %v1565 = vmul.f32 %v1564, 1.442695
  %v1566 = vpow.pop %v1565
  %v1567 = vsel %vm227, %v1566, 0.0
  %1568 = vadd.xlane.f32.xlu0 %v1567
  %v1569 = vpop.xlane.xlu0 %1568
  %v1570 = vrcp.pop %v1569
  %v1571 = vmul.f32 %v1566, %v1570
  %1572 = vrot.lane.b32.xlu0 %v1311, 48
  %v1573 = vpop.permute.xlu0 %1572
  %v1576 = vsel %vm227, %v1571, 0
  %1578 = vmatprep.subr.mxu0 0.0
  %1579 = vmatpush1.msra.mxu0 %v1573
  %1580 = vmatprep.subr.mxu0 0.0
  %1581 = vmatpush1.msra.mxu0 0.0
  %1582 = vmatprep.subr.mxu0 0.0
  %1583 = vmatpush1.msra.mxu0 0.0
  %1584 = vmatprep.subr.mxu0 0.0
  %1585 = vmatpush1.msra.mxu0 0.0
  %1586 = vmatprep.subr.mxu0 0.0
  %1587 = vmatpush1.msra.mxu0 0.0
  %1588 = vmatprep.subr.mxu0 0.0
  %1589 = vmatpush1.msra.mxu0 0.0
  %1590 = vmatprep.subr.mxu0 0.0
  %1591 = vmatpush1.msra.mxu0 0.0
  %1592 = vmatprep.subr.mxu0 0.0
  %1593 = vmatpush1.msra.mxu0 0.0
  %1594 = vmatprep.subr.mxu0 0.0
  %1595 = vmatpush1.msra.mxu0 0.0
  %1596 = vmatprep.subr.mxu0 0.0
  %1597 = vmatpush1.msra.mxu0 0.0
  %1598 = vmatprep.subr.mxu0 0.0
  %1599 = vmatpush1.msra.mxu0 0.0
  %1600 = vmatprep.subr.mxu0 0.0
  %1601 = vmatpush1.msra.mxu0 0.0
  %1602 = vmatprep.subr.mxu0 0.0
  %1603 = vmatpush1.msra.mxu0 0.0
  %1604 = vmatprep.subr.mxu0 0.0
  %1605 = vmatpush1.msra.mxu0 0.0
  %1606 = vmatprep.subr.mxu0 0.0
  %1607 = vmatpush1.msra.mxu0 0.0
  %1608 = vmatprep.subr.mxu0 0.0
  %1609 = vmatpush1.msra.mxu0 0.0
  %1610 = vmatprep.subr.mxu0 0.0
  %1611 = vmatpush1.msra.mxu0 0.0
  %1612 = vmatprep.subr.mxu0 0.0
  %1613 = vmatpush1.msra.mxu0 0.0
  %1614 = vmatprep.subr.mxu0 0.0
  %1615 = vmatpush1.msra.mxu0 0.0
  %1616 = vmatprep.subr.mxu0 0.0
  %1617 = vmatpush1.msra.mxu0 0.0
  %1618 = vmatprep.subr.mxu0 0.0
  %1619 = vmatpush1.msra.mxu0 0.0
  %1620 = vmatprep.subr.mxu0 0.0
  %1621 = vmatpush1.msra.mxu0 0.0
  %1622 = vmatprep.subr.mxu0 0.0
  %1623 = vmatpush1.msra.mxu0 0.0
  %1624 = vmatprep.subr.mxu0 0.0
  %1625 = vmatpush1.msra.mxu0 0.0
  %1626 = vmatprep.subr.mxu0 0.0
  %1627 = vmatpush1.msra.mxu0 0.0
  %1628 = vmatprep.subr.mxu0 0.0
  %1629 = vmatpush1.msra.mxu0 0.0
  %1630 = vmatprep.subr.mxu0 0.0
  %1631 = vmatpush1.msra.mxu0 0.0
  %1632 = vmatprep.subr.mxu0 0.0
  %1633 = vmatpush1.msra.mxu0 0.0
  %1634 = vmatprep.subr.mxu0 0.0
  %1635 = vmatpush1.msra.mxu0 0.0
  %1636 = vmatprep.subr.mxu0 0.0
  %1637 = vmatpush1.msra.mxu0 0.0
  %1638 = vmatprep.subr.mxu0 0.0
  %1639 = vmatpush1.msra.mxu0 0.0
  %1640 = vmatprep.subr.mxu0 0.0
  %1641 = vmatpush1.msra.mxu0 0.0
  %1642 = vmatprep.mubr.f32.mxu0 0.0
  %1643 = vmatmul.mubr.f32.gmra.mrb[0].mxu0 %v1576
  %v1644 = vpop.f32.mrb[0].mxu0
  %v1645 = vadd.f32 0.0, %v1644
  %v1646 = vpop.f32.mrb[0].mxu0
  %1647 = vdwg.mxu0
  %1649 = vrot.lane.b32.xlu0 %v1645, 16
  %v1650 = vpop.permute.xlu0 %1649
  %v1652 = vsel %vm152, %v1480, %v1650
  %1654 = vrot.lane.b32.xlu0 %v1316, 96
  %v1655 = vpop.permute.xlu0 %1654
  %v1656 = vsel %vm152, %v1316, 0
  %v1658 = vsel %vm152, %v1655, 0
  %1660 = vmatprep.subr.mxu0 0.0
  %1661 = vmatpush1.xpose.msra.mxu0 %v1658
  %1662 = vmatprep.subr.mxu0 0.0
  %1663 = vmatpush1.xpose.msra.mxu0 0.0
  %1664 = vmatprep.subr.mxu0 0.0
  %1665 = vmatpush1.xpose.msra.mxu0 0.0
  %1666 = vmatprep.subr.mxu0 0.0
  %1667 = vmatpush1.xpose.msra.mxu0 0.0
  %1668 = vmatprep.subr.mxu0 0.0
  %1669 = vmatpush1.xpose.msra.mxu0 0.0
  %1670 = vmatprep.subr.mxu0 0.0
  %1671 = vmatpush1.xpose.msra.mxu0 0.0
  %1672 = vmatprep.subr.mxu0 0.0
  %1673 = vmatpush1.xpose.msra.mxu0 0.0
  %1674 = vmatprep.subr.mxu0 0.0
  %1675 = vmatpush1.xpose.msra.mxu0 0.0
  %1676 = vmatprep.subr.mxu0 0.0
  %1677 = vmatpush1.xpose.msra.mxu0 0.0
  %1678 = vmatprep.subr.mxu0 0.0
  %1679 = vmatpush1.xpose.msra.mxu0 0.0
  %1680 = vmatprep.subr.mxu0 0.0
  %1681 = vmatpush1.xpose.msra.mxu0 0.0
  %1682 = vmatprep.subr.mxu0 0.0
  %1683 = vmatpush1.xpose.msra.mxu0 0.0
  %1684 = vmatprep.subr.mxu0 0.0
  %1685 = vmatpush1.xpose.msra.mxu0 0.0
  %1686 = vmatprep.subr.mxu0 0.0
  %1687 = vmatpush1.xpose.msra.mxu0 0.0
  %1688 = vmatprep.subr.mxu0 0.0
  %1689 = vmatpush1.xpose.msra.mxu0 0.0
  %1690 = vmatprep.subr.mxu0 0.0
  %1691 = vmatpush1.xpose.msra.mxu0 0.0
  %1692 = vmatprep.subr.mxu0 0.0
  %1693 = vmatpush1.xpose.msra.mxu0 0.0
  %1694 = vmatprep.subr.mxu0 0.0
  %1695 = vmatpush1.xpose.msra.mxu0 0.0
  %1696 = vmatprep.subr.mxu0 0.0
  %1697 = vmatpush1.xpose.msra.mxu0 0.0
  %1698 = vmatprep.subr.mxu0 0.0
  %1699 = vmatpush1.xpose.msra.mxu0 0.0
  %1700 = vmatprep.subr.mxu0 0.0
  %1701 = vmatpush1.xpose.msra.mxu0 0.0
  %1702 = vmatprep.subr.mxu0 0.0
  %1703 = vmatpush1.xpose.msra.mxu0 0.0
  %1704 = vmatprep.subr.mxu0 0.0
  %1705 = vmatpush1.xpose.msra.mxu0 0.0
  %1706 = vmatprep.subr.mxu0 0.0
  %1707 = vmatpush1.xpose.msra.mxu0 0.0
  %1708 = vmatprep.subr.mxu0 0.0
  %1709 = vmatpush1.xpose.msra.mxu0 0.0
  %1710 = vmatprep.subr.mxu0 0.0
  %1711 = vmatpush1.xpose.msra.mxu0 0.0
  %1712 = vmatprep.subr.mxu0 0.0
  %1713 = vmatpush1.xpose.msra.mxu0 0.0
  %1714 = vmatprep.subr.mxu0 0.0
  %1715 = vmatpush1.xpose.msra.mxu0 0.0
  %1716 = vmatprep.subr.mxu0 0.0
  %1717 = vmatpush1.xpose.msra.mxu0 0.0
  %1718 = vmatprep.subr.mxu0 0.0
  %1719 = vmatpush1.xpose.msra.mxu0 0.0
  %1720 = vmatprep.subr.mxu0 0.0
  %1721 = vmatpush1.xpose.msra.mxu0 0.0
  %1722 = vmatprep.subr.mxu0 0.0
  %1723 = vmatpush1.xpose.msra.mxu0 0.0
  %1724 = vmatprep.mubr.f32.mxu0 0.0
  %1725 = vmatmul.mubr.f32.gmra.mrb[0].mxu0 %v1656
  %v1726 = vpop.f32.mrb[0].mxu0
  %v1727 = vadd.f32 %v55, %v1726
  %v1728 = vpop.f32.mrb[0].mxu0
  %1729 = vdwg.mxu0
  %v1730 = vsel %vm227, %v1727, -inf
  %1731 = vmax.xlane.f32.xlu0 %v1730
  %v1732 = vpop.xlane.xlu0 %1731
  %v1733 = vsub.f32 %v1727, %v1732
  %v1734 = vmul.f32 %v1733, 1.442695
  %v1735 = vpow.pop %v1734
  %v1736 = vsel %vm227, %v1735, 0.0
  %1737 = vadd.xlane.f32.xlu0 %v1736
  %v1738 = vpop.xlane.xlu0 %1737
  %v1739 = vrcp.pop %v1738
  %v1740 = vmul.f32 %v1735, %v1739
  %1741 = vrot.lane.b32.xlu0 %v1316, 64
  %v1742 = vpop.permute.xlu0 %1741
  %v1745 = vsel %vm227, %v1740, 0
  %1747 = vmatprep.subr.mxu0 0.0
  %1748 = vmatpush1.msra.mxu0 %v1742
  %1749 = vmatprep.subr.mxu0 0.0
  %1750 = vmatpush1.msra.mxu0 0.0
  %1751 = vmatprep.subr.mxu0 0.0
  %1752 = vmatpush1.msra.mxu0 0.0
  %1753 = vmatprep.subr.mxu0 0.0
  %1754 = vmatpush1.msra.mxu0 0.0
  %1755 = vmatprep.subr.mxu0 0.0
  %1756 = vmatpush1.msra.mxu0 0.0
  %1757 = vmatprep.subr.mxu0 0.0
  %1758 = vmatpush1.msra.mxu0 0.0
  %1759 = vmatprep.subr.mxu0 0.0
  %1760 = vmatpush1.msra.mxu0 0.0
  %1761 = vmatprep.subr.mxu0 0.0
  %1762 = vmatpush1.msra.mxu0 0.0
  %1763 = vmatprep.subr.mxu0 0.0
  %1764 = vmatpush1.msra.mxu0 0.0
  %1765 = vmatprep.subr.mxu0 0.0
  %1766 = vmatpush1.msra.mxu0 0.0
  %1767 = vmatprep.subr.mxu0 0.0
  %1768 = vmatpush1.msra.mxu0 0.0
  %1769 = vmatprep.subr.mxu0 0.0
  %1770 = vmatpush1.msra.mxu0 0.0
  %1771 = vmatprep.subr.mxu0 0.0
  %1772 = vmatpush1.msra.mxu0 0.0
  %1773 = vmatprep.subr.mxu0 0.0
  %1774 = vmatpush1.msra.mxu0 0.0
  %1775 = vmatprep.subr.mxu0 0.0
  %1776 = vmatpush1.msra.mxu0 0.0
  %1777 = vmatprep.subr.mxu0 0.0
  %1778 = vmatpush1.msra.mxu0 0.0
  %1779 = vmatprep.subr.mxu0 0.0
  %1780 = vmatpush1.msra.mxu0 0.0
  %1781 = vmatprep.subr.mxu0 0.0
  %1782 = vmatpush1.msra.mxu0 0.0
  %1783 = vmatprep.subr.mxu0 0.0
  %1784 = vmatpush1.msra.mxu0 0.0
  %1785 = vmatprep.subr.mxu0 0.0
  %1786 = vmatpush1.msra.mxu0 0.0
  %1787 = vmatprep.subr.mxu0 0.0
  %1788 = vmatpush1.msra.mxu0 0.0
  %1789 = vmatprep.subr.mxu0 0.0
  %1790 = vmatpush1.msra.mxu0 0.0
  %1791 = vmatprep.subr.mxu0 0.0
  %1792 = vmatpush1.msra.mxu0 0.0
  %1793 = vmatprep.subr.mxu0 0.0
  %1794 = vmatpush1.msra.mxu0 0.0
  %1795 = vmatprep.subr.mxu0 0.0
  %1796 = vmatpush1.msra.mxu0 0.0
  %1797 = vmatprep.subr.mxu0 0.0
  %1798 = vmatpush1.msra.mxu0 0.0
  %1799 = vmatprep.subr.mxu0 0.0
  %1800 = vmatpush1.msra.mxu0 0.0
  %1801 = vmatprep.subr.mxu0 0.0
  %1802 = vmatpush1.msra.mxu0 0.0
  %1803 = vmatprep.subr.mxu0 0.0
  %1804 = vmatpush1.msra.mxu0 0.0
  %1805 = vmatprep.subr.mxu0 0.0
  %1806 = vmatpush1.msra.mxu0 0.0
  %1807 = vmatprep.subr.mxu0 0.0
  %1808 = vmatpush1.msra.mxu0 0.0
  %1809 = vmatprep.subr.mxu0 0.0
  %1810 = vmatpush1.msra.mxu0 0.0
  %1811 = vmatprep.mubr.f32.mxu0 0.0
  %1812 = vmatmul.mubr.f32.gmra.mrb[0].mxu0 %v1745
  %v1813 = vpop.f32.mrb[0].mxu0
  %v1814 = vadd.f32 0.0, %v1813
  %v1815 = vpop.f32.mrb[0].mxu0
  %1816 = vdwg.mxu0
  %1817 = vrot.lane.b32.xlu0 %v1316, 112
  %v1818 = vpop.permute.xlu0 %1817
  %1819 = vrot.lane.b32.xlu0 %v1316, 80
  %v1820 = vpop.permute.xlu0 %1819
  %v1821 = vsel %vm152, %v1818, 0
  %v1823 = vsel %vm152, %v1820, 0
  %1825 = vmatprep.subr.mxu0 0.0
  %1826 = vmatpush1.xpose.msra.mxu0 %v1823
  %1827 = vmatprep.subr.mxu0 0.0
  %1828 = vmatpush1.xpose.msra.mxu0 0.0
  %1829 = vmatprep.subr.mxu0 0.0
  %1830 = vmatpush1.xpose.msra.mxu0 0.0
  %1831 = vmatprep.subr.mxu0 0.0
  %1832 = vmatpush1.xpose.msra.mxu0 0.0
  %1833 = vmatprep.subr.mxu0 0.0
  %1834 = vmatpush1.xpose.msra.mxu0 0.0
  %1835 = vmatprep.subr.mxu0 0.0
  %1836 = vmatpush1.xpose.msra.mxu0 0.0
  %1837 = vmatprep.subr.mxu0 0.0
  %1838 = vmatpush1.xpose.msra.mxu0 0.0
  %1839 = vmatprep.subr.mxu0 0.0
  %1840 = vmatpush1.xpose.msra.mxu0 0.0
  %1841 = vmatprep.subr.mxu0 0.0
  %1842 = vmatpush1.xpose.msra.mxu0 0.0
  %1843 = vmatprep.subr.mxu0 0.0
  %1844 = vmatpush1.xpose.msra.mxu0 0.0
  %1845 = vmatprep.subr.mxu0 0.0
  %1846 = vmatpush1.xpose.msra.mxu0 0.0
  %1847 = vmatprep.subr.mxu0 0.0
  %1848 = vmatpush1.xpose.msra.mxu0 0.0
  %1849 = vmatprep.subr.mxu0 0.0
  %1850 = vmatpush1.xpose.msra.mxu0 0.0
  %1851 = vmatprep.subr.mxu0 0.0
  %1852 = vmatpush1.xpose.msra.mxu0 0.0
  %1853 = vmatprep.subr.mxu0 0.0
  %1854 = vmatpush1.xpose.msra.mxu0 0.0
  %1855 = vmatprep.subr.mxu0 0.0
  %1856 = vmatpush1.xpose.msra.mxu0 0.0
  %1857 = vmatprep.subr.mxu0 0.0
  %1858 = vmatpush1.xpose.msra.mxu0 0.0
  %1859 = vmatprep.subr.mxu0 0.0
  %1860 = vmatpush1.xpose.msra.mxu0 0.0
  %1861 = vmatprep.subr.mxu0 0.0
  %1862 = vmatpush1.xpose.msra.mxu0 0.0
  %1863 = vmatprep.subr.mxu0 0.0
  %1864 = vmatpush1.xpose.msra.mxu0 0.0
  %1865 = vmatprep.subr.mxu0 0.0
  %1866 = vmatpush1.xpose.msra.mxu0 0.0
  %1867 = vmatprep.subr.mxu0 0.0
  %1868 = vmatpush1.xpose.msra.mxu0 0.0
  %1869 = vmatprep.subr.mxu0 0.0
  %1870 = vmatpush1.xpose.msra.mxu0 0.0
  %1871 = vmatprep.subr.mxu0 0.0
  %1872 = vmatpush1.xpose.msra.mxu0 0.0
  %1873 = vmatprep.subr.mxu0 0.0
  %1874 = vmatpush1.xpose.msra.mxu0 0.0
  %1875 = vmatprep.subr.mxu0 0.0
  %1876 = vmatpush1.xpose.msra.mxu0 0.0
  %1877 = vmatprep.subr.mxu0 0.0
  %1878 = vmatpush1.xpose.msra.mxu0 0.0
  %1879 = vmatprep.subr.mxu0 0.0
  %1880 = vmatpush1.xpose.msra.mxu0 0.0
  %1881 = vmatprep.subr.mxu0 0.0
  %1882 = vmatpush1.xpose.msra.mxu0 0.0
  %1883 = vmatprep.subr.mxu0 0.0
  %1884 = vmatpush1.xpose.msra.mxu0 0.0
  %1885 = vmatprep.subr.mxu0 0.0
  %1886 = vmatpush1.xpose.msra.mxu0 0.0
  %1887 = vmatprep.subr.mxu0 0.0
  %1888 = vmatpush1.xpose.msra.mxu0 0.0
  %1889 = vmatprep.mubr.f32.mxu0 0.0
  %1890 = vmatmul.mubr.f32.gmra.mrb[0].mxu0 %v1821
  %v1891 = vpop.f32.mrb[0].mxu0
  %v1892 = vadd.f32 %v55, %v1891
  %v1893 = vpop.f32.mrb[0].mxu0
  %1894 = vdwg.mxu0
  %v1895 = vsel %vm227, %v1892, -inf
  %1896 = vmax.xlane.f32.xlu0 %v1895
  %v1897 = vpop.xlane.xlu0 %1896
  %v1898 = vsub.f32 %v1892, %v1897
  %v1899 = vmul.f32 %v1898, 1.442695
  %v1900 = vpow.pop %v1899
  %v1901 = vsel %vm227, %v1900, 0.0
  %1902 = vadd.xlane.f32.xlu0 %v1901
  %v1903 = vpop.xlane.xlu0 %1902
  %v1904 = vrcp.pop %v1903
  %v1905 = vmul.f32 %v1900, %v1904
  %1906 = vrot.lane.b32.xlu0 %v1316, 48
  %v1907 = vpop.permute.xlu0 %1906
  %v1910 = vsel %vm227, %v1905, 0
  %1912 = vmatprep.subr.mxu0 0.0
  %1913 = vmatpush1.msra.mxu0 %v1907
  %1914 = vmatprep.subr.mxu0 0.0
  %1915 = vmatpush1.msra.mxu0 0.0
  %1916 = vmatprep.subr.mxu0 0.0
  %1917 = vmatpush1.msra.mxu0 0.0
  %1918 = vmatprep.subr.mxu0 0.0
  %1919 = vmatpush1.msra.mxu0 0.0
  %1920 = vmatprep.subr.mxu0 0.0
  %1921 = vmatpush1.msra.mxu0 0.0
  %1922 = vmatprep.subr.mxu0 0.0
  %1923 = vmatpush1.msra.mxu0 0.0
  %1924 = vmatprep.subr.mxu0 0.0
  %1925 = vmatpush1.msra.mxu0 0.0
  %1926 = vmatprep.subr.mxu0 0.0
  %1927 = vmatpush1.msra.mxu0 0.0
  %1928 = vmatprep.subr.mxu0 0.0
  %1929 = vmatpush1.msra.mxu0 0.0
  %1930 = vmatprep.subr.mxu0 0.0
  %1931 = vmatpush1.msra.mxu0 0.0
  %1932 = vmatprep.subr.mxu0 0.0
  %1933 = vmatpush1.msra.mxu0 0.0
  %1934 = vmatprep.subr.mxu0 0.0
  %1935 = vmatpush1.msra.mxu0 0.0
  %1936 = vmatprep.subr.mxu0 0.0
  %1937 = vmatpush1.msra.mxu0 0.0
  %1938 = vmatprep.subr.mxu0 0.0
  %1939 = vmatpush1.msra.mxu0 0.0
  %1940 = vmatprep.subr.mxu0 0.0
  %1941 = vmatpush1.msra.mxu0 0.0
  %1942 = vmatprep.subr.mxu0 0.0
  %1943 = vmatpush1.msra.mxu0 0.0
  %1944 = vmatprep.subr.mxu0 0.0
  %1945 = vmatpush1.msra.mxu0 0.0
  %1946 = vmatprep.subr.mxu0 0.0
  %1947 = vmatpush1.msra.mxu0 0.0
  %1948 = vmatprep.subr.mxu0 0.0
  %1949 = vmatpush1.msra.mxu0 0.0
  %1950 = vmatprep.subr.mxu0 0.0
  %1951 = vmatpush1.msra.mxu0 0.0
  %1952 = vmatprep.subr.mxu0 0.0
  %1953 = vmatpush1.msra.mxu0 0.0
  %1954 = vmatprep.subr.mxu0 0.0
  %1955 = vmatpush1.msra.mxu0 0.0
  %1956 = vmatprep.subr.mxu0 0.0
  %1957 = vmatpush1.msra.mxu0 0.0
  %1958 = vmatprep.subr.mxu0 0.0
  %1959 = vmatpush1.msra.mxu0 0.0
  %1960 = vmatprep.subr.mxu0 0.0
  %1961 = vmatpush1.msra.mxu0 0.0
  %1962 = vmatprep.subr.mxu0 0.0
  %1963 = vmatpush1.msra.mxu0 0.0
  %1964 = vmatprep.subr.mxu0 0.0
  %1965 = vmatpush1.msra.mxu0 0.0
  %1966 = vmatprep.subr.mxu0 0.0
  %1967 = vmatpush1.msra.mxu0 0.0
  %1968 = vmatprep.subr.mxu0 0.0
  %1969 = vmatpush1.msra.mxu0 0.0
  %1970 = vmatprep.subr.mxu0 0.0
  %1971 = vmatpush1.msra.mxu0 0.0
  %1972 = vmatprep.subr.mxu0 0.0
  %1973 = vmatpush1.msra.mxu0 0.0
  %1974 = vmatprep.subr.mxu0 0.0
  %1975 = vmatpush1.msra.mxu0 0.0
  %1976 = vmatprep.mubr.f32.mxu0 0.0
  %1977 = vmatmul.mubr.f32.gmra.mrb[0].mxu0 %v1910
  %v1978 = vpop.f32.mrb[0].mxu0
  %v1979 = vadd.f32 0.0, %v1978
  %v1980 = vpop.f32.mrb[0].mxu0
  %1981 = vdwg.mxu0
  %1983 = vrot.lane.b32.xlu0 %v1979, 16
  %v1984 = vpop.permute.xlu0 %1983
  %v1986 = vsel %vm152, %v1814, %v1984
  %s1987 = scalar_lea.vmem %s4, 32
  %v1988 = vld [vmem:[%s1987] sm:$0xff]
  %v1989 = vld [vmem:[%s1987 + $0x8] sm:$0xff]
  %v1990 = vld [vmem:[%s1987 + $0x10] sm:$0xff]
  %v1991 = vld [vmem:[%s1987 + $0x18] sm:$0xff]
  %s1992 = scalar_lea.vmem %s5, 1
  %v1993 = vld [vmem:[%s1992] sm:$0x1]
  %v1995 = vlaneseq
  %v1996 = vshrl.u32 %v1995, 7
  %v1997 = vsub.s32 0, %v1996
  %v1998 = vrot.slane %v1993, %v1997
  %v2001 = vsel %vm67, %v1652, 0
  %v2004 = vsel %vm67, %v1986, 0
  %2006 = vmatprep.subr.mxu0 0.0
  %2007 = vmatpush1.msra.mxu0 %v1988
  %2008 = vmatprep.subr.mxu0 0.0
  %2009 = vmatpush1.msra.mxu0 %v1989
  %2010 = vmatprep.subr.mxu0 0.0
  %2011 = vmatpush1.msra.mxu0 %v1990
  %2012 = vmatprep.subr.mxu0 0.0
  %2013 = vmatpush1.msra.mxu0 %v1991
  %2014 = vmatprep.subr.mxu0 0.0
  %2015 = vmatpush1.msra.mxu0 0.0
  %2016 = vmatprep.subr.mxu0 0.0
  %2017 = vmatpush1.msra.mxu0 0.0
  %2018 = vmatprep.subr.mxu0 0.0
  %2019 = vmatpush1.msra.mxu0 0.0
  %2020 = vmatprep.subr.mxu0 0.0
  %2021 = vmatpush1.msra.mxu0 0.0
  %2022 = vmatprep.subr.mxu0 0.0
  %2023 = vmatpush1.msra.mxu0 0.0
  %2024 = vmatprep.subr.mxu0 0.0
  %2025 = vmatpush1.msra.mxu0 0.0
  %2026 = vmatprep.subr.mxu0 0.0
  %2027 = vmatpush1.msra.mxu0 0.0
  %2028 = vmatprep.subr.mxu0 0.0
  %2029 = vmatpush1.msra.mxu0 0.0
  %2030 = vmatprep.subr.mxu0 0.0
  %2031 = vmatpush1.msra.mxu0 0.0
  %2032 = vmatprep.subr.mxu0 0.0
  %2033 = vmatpush1.msra.mxu0 0.0
  %2034 = vmatprep.subr.mxu0 0.0
  %2035 = vmatpush1.msra.mxu0 0.0
  %2036 = vmatprep.subr.mxu0 0.0
  %2037 = vmatpush1.msra.mxu0 0.0
  %2038 = vmatprep.subr.mxu0 0.0
  %2039 = vmatpush1.msra.mxu0 0.0
  %2040 = vmatprep.subr.mxu0 0.0
  %2041 = vmatpush1.msra.mxu0 0.0
  %2042 = vmatprep.subr.mxu0 0.0
  %2043 = vmatpush1.msra.mxu0 0.0
  %2044 = vmatprep.subr.mxu0 0.0
  %2045 = vmatpush1.msra.mxu0 0.0
  %2046 = vmatprep.subr.mxu0 0.0
  %2047 = vmatpush1.msra.mxu0 0.0
  %2048 = vmatprep.subr.mxu0 0.0
  %2049 = vmatpush1.msra.mxu0 0.0
  %2050 = vmatprep.subr.mxu0 0.0
  %2051 = vmatpush1.msra.mxu0 0.0
  %2052 = vmatprep.subr.mxu0 0.0
  %2053 = vmatpush1.msra.mxu0 0.0
  %2054 = vmatprep.subr.mxu0 0.0
  %2055 = vmatpush1.msra.mxu0 0.0
  %2056 = vmatprep.subr.mxu0 0.0
  %2057 = vmatpush1.msra.mxu0 0.0
  %2058 = vmatprep.subr.mxu0 0.0
  %2059 = vmatpush1.msra.mxu0 0.0
  %2060 = vmatprep.subr.mxu0 0.0
  %2061 = vmatpush1.msra.mxu0 0.0
  %2062 = vmatprep.subr.mxu0 0.0
  %2063 = vmatpush1.msra.mxu0 0.0
  %2064 = vmatprep.subr.mxu0 0.0
  %2065 = vmatpush1.msra.mxu0 0.0
  %2066 = vmatprep.subr.mxu0 0.0
  %2067 = vmatpush1.msra.mxu0 0.0
  %2068 = vmatprep.subr.mxu0 0.0
  %2069 = vmatpush1.msra.mxu0 0.0
  %2070 = vmatprep.mubr.f32.mxu0 0.0
  %2071 = vmatmul.mubr.f32.gmra.mrb[0].mxu0 %v2001
  %v2072 = vpop.f32.mrb[0].mxu0
  %v2073 = vadd.f32 %v1998, %v2072
  %v2074 = vpop.f32.mrb[0].mxu0
  %2075 = vmatprep.mubr.f32.mxu0 0.0
  %2076 = vmatmul.mubr.f32.gmra.mrb[0].mxu0 %v2004
  %v2077 = vpop.f32.mrb[0].mxu0
  %v2078 = vadd.f32 %v1998, %v2077
  %v2079 = vpop.f32.mrb[0].mxu0
  %2080 = vdwg.mxu0
  %v2081 = vadd.f32 %v1223, %v2073
  %v2082 = vadd.f32 %v1224, %v2078
  %v2083 = vsel %vm67, %v2081, 0.0
  %2084 = vadd.xlane.f32.xlu0 %v2083
  %v2085 = vpop.xlane.xlu0 %2084
  %v2086 = vsel %vm67, %v2082, 0.0
  %2087 = vadd.xlane.f32.xlu0 %v2086
  %v2088 = vpop.xlane.xlu0 %2087
  %v2089 = vmul.f32 %v2085, %v919
  %v2090 = vmul.f32 %v2088, %v919
  %v2091 = vsub.f32 %v2081, %v2089
  %v2092 = vsub.f32 %v2082, %v2090
  %v2093 = vmul.f32 %v2091, %v2091
  %v2094 = vmul.f32 %v2092, %v2092
  %v2095 = vsel %vm67, %v2093, 0.0
  %2096 = vadd.xlane.f32.xlu0 %v2095
  %v2097 = vpop.xlane.xlu0 %2096
  %v2098 = vsel %vm67, %v2094, 0.0
  %2099 = vadd.xlane.f32.xlu0 %v2098
  %v2100 = vpop.xlane.xlu0 %2099
  %v2101 = vmul.f32 %v2097, %v919
  %v2102 = vmul.f32 %v2100, %v919
  %v2103 = vadd.f32 %v2101, 1e-05
  %v2104 = vadd.f32 %v2102, 1e-05
  %v2105 = vrsqrt.pop %v2103
  %v2106 = vrsqrt.pop %v2104
  %v2107 = vmul.f32 %v2091, %v2105
  %v2108 = vmul.f32 %v2092, %v2106
  %s2109 = scalar_lea.vmem %s6, 1
  %v2110 = vld [vmem:[%s2109] sm:$0x1]
  %v2112 = vlaneseq
  %v2113 = vshrl.u32 %v2112, 7
  %v2114 = vsub.s32 0, %v2113
  %v2115 = vrot.slane %v2110, %v2114
  %v2117 = vmul.f32 %v2107, %v2115
  %v2118 = vmul.f32 %v2108, %v2115
  %s2119 = scalar_lea.vmem %s7, 1
  %v2120 = vld [vmem:[%s2119] sm:$0x1]
  %v2122 = vlaneseq
  %v2123 = vshrl.u32 %v2122, 7
  %v2124 = vsub.s32 0, %v2123
  %v2125 = vrot.slane %v2120, %v2124
  %v2127 = vadd.f32 %v2117, %v2125
  %v2128 = vadd.f32 %v2118, %v2125
  %s2129 = scalar_lea.vmem %s8, 64
  %v2130 = vld [vmem:[%s2129] sm:$0xff]
  %v2131 = vld [vmem:[%s2129 + $0x8] sm:$0xff]
  %v2132 = vld [vmem:[%s2129 + $0x10] sm:$0xff]
  %v2133 = vld [vmem:[%s2129 + $0x18] sm:$0xff]
  %v2134 = vld [vmem:[%s2129 + $0x20] sm:$0xff]
  %v2135 = vld [vmem:[%s2129 + $0x28] sm:$0xff]
  %v2136 = vld [vmem:[%s2129 + $0x30] sm:$0xff]
  %v2137 = vld [vmem:[%s2129 + $0x38] sm:$0xff]
  %s2138 = scalar_lea.vmem %s9, 2
  %v2139 = vld [vmem:[%s2138] sm:$0x3]
  %v2141 = vlaneseq
  %v2142 = vshrl.u32 %v2141, 7
  %v2143 = vsub.s32 0, %v2142
  %v2144 = vrot.slane %v2139, %v2143
  %v2145 = vlaneseq
  %v2146 = vshrl.u32 %v2145, 7
  %v2147 = vsub.s32 1, %v2146
  %v2148 = vrot.slane %v2139, %v2147
  %v2152 = vsel %vm67, %v2127, 0
  %v2155 = vsel %vm67, %v2128, 0
  %2157 = vmatprep.subr.mxu0 %v2131
  %2158 = vmatpush1.msra.mxu0 %v2130
  %2159 = vmatprep.subr.mxu0 %v2133
  %2160 = vmatpush1.msra.mxu0 %v2132
  %2161 = vmatprep.subr.mxu0 %v2135
  %2162 = vmatpush1.msra.mxu0 %v2134
  %2163 = vmatprep.subr.mxu0 %v2137
  %2164 = vmatpush1.msra.mxu0 %v2136
  %2165 = vmatprep.subr.mxu0 0.0
  %2166 = vmatpush1.msra.mxu0 0.0
  %2167 = vmatprep.subr.mxu0 0.0
  %2168 = vmatpush1.msra.mxu0 0.0
  %2169 = vmatprep.subr.mxu0 0.0
  %2170 = vmatpush1.msra.mxu0 0.0
  %2171 = vmatprep.subr.mxu0 0.0
  %2172 = vmatpush1.msra.mxu0 0.0
  %2173 = vmatprep.subr.mxu0 0.0
  %2174 = vmatpush1.msra.mxu0 0.0
  %2175 = vmatprep.subr.mxu0 0.0
  %2176 = vmatpush1.msra.mxu0 0.0
  %2177 = vmatprep.subr.mxu0 0.0
  %2178 = vmatpush1.msra.mxu0 0.0
  %2179 = vmatprep.subr.mxu0 0.0
  %2180 = vmatpush1.msra.mxu0 0.0
  %2181 = vmatprep.subr.mxu0 0.0
  %2182 = vmatpush1.msra.mxu0 0.0
  %2183 = vmatprep.subr.mxu0 0.0
  %2184 = vmatpush1.msra.mxu0 0.0
  %2185 = vmatprep.subr.mxu0 0.0
  %2186 = vmatpush1.msra.mxu0 0.0
  %2187 = vmatprep.subr.mxu0 0.0
  %2188 = vmatpush1.msra.mxu0 0.0
  %2189 = vmatprep.subr.mxu0 0.0
  %2190 = vmatpush1.msra.mxu0 0.0
  %2191 = vmatprep.subr.mxu0 0.0
  %2192 = vmatpush1.msra.mxu0 0.0
  %2193 = vmatprep.subr.mxu0 0.0
  %2194 = vmatpush1.msra.mxu0 0.0
  %2195 = vmatprep.subr.mxu0 0.0
  %2196 = vmatpush1.msra.mxu0 0.0
  %2197 = vmatprep.subr.mxu0 0.0
  %2198 = vmatpush1.msra.mxu0 0.0
  %2199 = vmatprep.subr.mxu0 0.0
  %2200 = vmatpush1.msra.mxu0 0.0
  %2201 = vmatprep.subr.mxu0 0.0
  %2202 = vmatpush1.msra.mxu0 0.0
  %2203 = vmatprep.subr.mxu0 0.0
  %2204 = vmatpush1.msra.mxu0 0.0
  %2205 = vmatprep.subr.mxu0 0.0
  %2206 = vmatpush1.msra.mxu0 0.0
  %2207 = vmatprep.subr.mxu0 0.0
  %2208 = vmatpush1.msra.mxu0 0.0
  %2209 = vmatprep.subr.mxu0 0.0
  %2210 = vmatpush1.msra.mxu0 0.0
  %2211 = vmatprep.subr.mxu0 0.0
  %2212 = vmatpush1.msra.mxu0 0.0
  %2213 = vmatprep.subr.mxu0 0.0
  %2214 = vmatpush1.msra.mxu0 0.0
  %2215 = vmatprep.subr.mxu0 0.0
  %2216 = vmatpush1.msra.mxu0 0.0
  %2217 = vmatprep.subr.mxu0 0.0
  %2218 = vmatpush1.msra.mxu0 0.0
  %2219 = vmatprep.subr.mxu0 0.0
  %2220 = vmatpush1.msra.mxu0 0.0
  %2221 = vmatprep.mubr.f32.mxu0 0.0
  %2222 = vmatmul.mubr.f32.gmra.mrb[0].mxu0 %v2152
  %v2223 = vpop.f32.mrb[0].mxu0
  %v2224 = vadd.f32 %v2144, %v2223
  %v2225 = vpop.f32.mrb[0].mxu0
  %v2226 = vadd.f32 %v2148, %v2225
  %2227 = vmatprep.mubr.f32.mxu0 0.0
  %2228 = vmatmul.mubr.f32.gmra.mrb[0].mxu0 %v2155
  %v2229 = vpop.f32.mrb[0].mxu0
  %v2230 = vadd.f32 %v2144, %v2229
  %v2231 = vpop.f32.mrb[0].mxu0
  %v2232 = vadd.f32 %v2148, %v2231
  %2233 = vdwg.mxu0
  %v2234 = vmax.f32 %v2224, 0.0
  %v2235 = vmax.f32 %v2226, 0.0
  %v2236 = vmax.f32 %v2230, 0.0
  %v2237 = vmax.f32 %v2232, 0.0
  %s2238 = scalar_lea.vmem %s10, 256
  %v2239 = vld [vmem:[%s2238] sm:$0xff]
  %v2240 = vld [vmem:[%s2238 + $0x8] sm:$0xff]
  %v2241 = vld [vmem:[%s2238 + $0x10] sm:$0xff]
  %v2242 = vld [vmem:[%s2238 + $0x18] sm:$0xff]
  %v2243 = vld [vmem:[%s2238 + $0x20] sm:$0xff]
  %v2244 = vld [vmem:[%s2238 + $0x28] sm:$0xff]
  %v2245 = vld [vmem:[%s2238 + $0x30] sm:$0xff]
  %v2246 = vld [vmem:[%s2238 + $0x38] sm:$0xff]
  %v2247 = vld [vmem:[%s2238 + $0x40] sm:$0xff]
  %v2248 = vld [vmem:[%s2238 + $0x48] sm:$0xff]
  %v2249 = vld [vmem:[%s2238 + $0x50] sm:$0xff]
  %v2250 = vld [vmem:[%s2238 + $0x58] sm:$0xff]
  %v2251 = vld [vmem:[%s2238 + $0x60] sm:$0xff]
  %v2252 = vld [vmem:[%s2238 + $0x68] sm:$0xff]
  %v2253 = vld [vmem:[%s2238 + $0x70] sm:$0xff]
  %v2254 = vld [vmem:[%s2238 + $0x78] sm:$0xff]
  %v2255 = vld [vmem:[%s2238 + $0x80] sm:$0xff]
  %v2256 = vld [vmem:[%s2238 + $0x88] sm:$0xff]
  %v2257 = vld [vmem:[%s2238 + $0x90] sm:$0xff]
  %v2258 = vld [vmem:[%s2238 + $0x98] sm:$0xff]
  %v2259 = vld [vmem:[%s2238 + $0xa0] sm:$0xff]
  %v2260 = vld [vmem:[%s2238 + $0xa8] sm:$0xff]
  %v2261 = vld [vmem:[%s2238 + $0xb0] sm:$0xff]
  %v2262 = vld [vmem:[%s2238 + $0xb8] sm:$0xff]
  %v2263 = vld [vmem:[%s2238 + $0xc0] sm:$0xff]
  %v2264 = vld [vmem:[%s2238 + $0xc8] sm:$0xff]
  %v2265 = vld [vmem:[%s2238 + $0xd0] sm:$0xff]
  %v2266 = vld [vmem:[%s2238 + $0xd8] sm:$0xff]
  %v2267 = vld [vmem:[%s2238 + $0xe0] sm:$0xff]
  %v2268 = vld [vmem:[%s2238 + $0xe8] sm:$0xff]
  %v2269 = vld [vmem:[%s2238 + $0xf0] sm:$0xff]
  %v2270 = vld [vmem:[%s2238 + $0xf8] sm:$0xff]
  %s2271 = scalar_lea.vmem %s11, 1
  %v2272 = vld [vmem:[%s2271] sm:$0x1]
  %v2274 = vlaneseq
  %v2275 = vshrl.u32 %v2274, 7
  %v2276 = vsub.s32 0, %v2275
  %v2277 = vrot.slane %v2272, %v2276
  %2279 = vmatprep.subr.mxu0 0.0
  %2280 = vmatpush1.msra.mxu0 %v2239
  %2281 = vmatprep.subr.mxu0 0.0
  %2282 = vmatpush1.msra.mxu0 %v2240
  %2283 = vmatprep.subr.mxu0 0.0
  %2284 = vmatpush1.msra.mxu0 %v2241
  %2285 = vmatprep.subr.mxu0 0.0
  %2286 = vmatpush1.msra.mxu0 %v2242
  %2287 = vmatprep.subr.mxu0 0.0
  %2288 = vmatpush1.msra.mxu0 %v2243
  %2289 = vmatprep.subr.mxu0 0.0
  %2290 = vmatpush1.msra.mxu0 %v2244
  %2291 = vmatprep.subr.mxu0 0.0
  %2292 = vmatpush1.msra.mxu0 %v2245
  %2293 = vmatprep.subr.mxu0 0.0
  %2294 = vmatpush1.msra.mxu0 %v2246
  %2295 = vmatprep.subr.mxu0 0.0
  %2296 = vmatpush1.msra.mxu0 %v2247
  %2297 = vmatprep.subr.mxu0 0.0
  %2298 = vmatpush1.msra.mxu0 %v2248
  %2299 = vmatprep.subr.mxu0 0.0
  %2300 = vmatpush1.msra.mxu0 %v2249
  %2301 = vmatprep.subr.mxu0 0.0
  %2302 = vmatpush1.msra.mxu0 %v2250
  %2303 = vmatprep.subr.mxu0 0.0
  %2304 = vmatpush1.msra.mxu0 %v2251
  %2305 = vmatprep.subr.mxu0 0.0
  %2306 = vmatpush1.msra.mxu0 %v2252
  %2307 = vmatprep.subr.mxu0 0.0
  %2308 = vmatpush1.msra.mxu0 %v2253
  %2309 = vmatprep.subr.mxu0 0.0
  %2310 = vmatpush1.msra.mxu0 %v2254
  %2311 = vmatprep.subr.mxu0 0.0
  %2312 = vmatpush1.msra.mxu0 %v2255
  %2313 = vmatprep.subr.mxu0 0.0
  %2314 = vmatpush1.msra.mxu0 %v2256
  %2315 = vmatprep.subr.mxu0 0.0
  %2316 = vmatpush1.msra.mxu0 %v2257
  %2317 = vmatprep.subr.mxu0 0.0
  %2318 = vmatpush1.msra.mxu0 %v2258
  %2319 = vmatprep.subr.mxu0 0.0
  %2320 = vmatpush1.msra.mxu0 %v2259
  %2321 = vmatprep.subr.mxu0 0.0
  %2322 = vmatpush1.msra.mxu0 %v2260
  %2323 = vmatprep.subr.mxu0 0.0
  %2324 = vmatpush1.msra.mxu0 %v2261
  %2325 = vmatprep.subr.mxu0 0.0
  %2326 = vmatpush1.msra.mxu0 %v2262
  %2327 = vmatprep.subr.mxu0 0.0
  %2328 = vmatpush1.msra.mxu0 %v2263
  %2329 = vmatprep.subr.mxu0 0.0
  %2330 = vmatpush1.msra.mxu0 %v2264
  %2331 = vmatprep.subr.mxu0 0.0
  %2332 = vmatpush1.msra.mxu0 %v2265
  %2333 = vmatprep.subr.mxu0 0.0
  %2334 = vmatpush1.msra.mxu0 %v2266
  %2335 = vmatprep.subr.mxu0 0.0
  %2336 = vmatpush1.msra.mxu0 %v2267
  %2337 = vmatprep.subr.mxu0 0.0
  %2338 = vmatpush1.msra.mxu0 %v2268
  %2339 = vmatprep.subr.mxu0 0.0
  %2340 = vmatpush1.msra.mxu0 %v2269
  %2341 = vmatprep.subr.mxu0 0.0
  %2342 = vmatpush1.msra.mxu0 %v2270
  %2343 = vmatprep.mubr.f32.mxu0 %v2235
  %2344 = vmatmul.mubr.f32.gmra.mrb[0].mxu0 %v2234
  %v2345 = vpop.f32.mrb[0].mxu0
  %v2346 = vadd.f32 %v2277, %v2345
  %v2347 = vpop.f32.mrb[0].mxu0
  %2348 = vmatprep.mubr.f32.mxu0 %v2237
  %2349 = vmatmul.mubr.f32.gmra.mrb[0].mxu0 %v2236
  %v2350 = vpop.f32.mrb[0].mxu0
  %v2351 = vadd.f32 %v2277, %v2350
  %v2352 = vpop.f32.mrb[0].mxu0
  %2353 = vdwg.mxu0
  %v2354 = vadd.f32 %v2127, %v2346
  %v2355 = vadd.f32 %v2128, %v2351
  %v2356 = vsel %vm67, %v2354, 0.0
  %2357 = vadd.xlane.f32.xlu0 %v2356
  %v2358 = vpop.xlane.xlu0 %2357
  %v2359 = vsel %vm67, %v2355, 0.0
  %2360 = vadd.xlane.f32.xlu0 %v2359
  %v2361 = vpop.xlane.xlu0 %2360
  %v2362 = vmul.f32 %v2358, %v919
  %v2363 = vmul.f32 %v2361, %v919
  %v2364 = vsub.f32 %v2354, %v2362
  %v2365 = vsub.f32 %v2355, %v2363
  %v2366 = vmul.f32 %v2364, %v2364
  %v2367 = vmul.f32 %v2365, %v2365
  %v2368 = vsel %vm67, %v2366, 0.0
  %2369 = vadd.xlane.f32.xlu0 %v2368
  %v2370 = vpop.xlane.xlu0 %2369
  %v2371 = vsel %vm67, %v2367, 0.0
  %2372 = vadd.xlane.f32.xlu0 %v2371
  %v2373 = vpop.xlane.xlu0 %2372
  %v2374 = vmul.f32 %v2370, %v919
  %v2375 = vmul.f32 %v2373, %v919
  %v2376 = vadd.f32 %v2374, 1e-05
  %v2377 = vadd.f32 %v2375, 1e-05
  %v2378 = vrsqrt.pop %v2376
  %v2379 = vrsqrt.pop %v2377
  %v2380 = vmul.f32 %v2364, %v2378
  %v2381 = vmul.f32 %v2365, %v2379
  %s2382 = scalar_lea.vmem %s12, 1
  %v2383 = vld [vmem:[%s2382] sm:$0x1]
  %v2385 = vlaneseq
  %v2386 = vshrl.u32 %v2385, 7
  %v2387 = vsub.s32 0, %v2386
  %v2388 = vrot.slane %v2383, %v2387
  %v2390 = vmul.f32 %v2380, %v2388
  %v2391 = vmul.f32 %v2381, %v2388
  %s2392 = scalar_lea.vmem %s13, 1
  %v2393 = vld [vmem:[%s2392] sm:$0x1]
  %v2395 = vlaneseq
  %v2396 = vshrl.u32 %v2395, 7
  %v2397 = vsub.s32 0, %v2396
  %v2398 = vrot.slane %v2393, %v2397
  %v2400 = vadd.f32 %v2390, %v2398
  %v2401 = vadd.f32 %v2391, %v2398
  %s2402 = scalar_lea.vmem %s2, 64
  %v2403 = vld [vmem:[%s2402] sm:$0xff]
  %v2404 = vld [vmem:[%s2402 + $0x8] sm:$0xff]
  %v2405 = vld [vmem:[%s2402 + $0x10] sm:$0xff]
  %v2406 = vld [vmem:[%s2402 + $0x18] sm:$0xff]
  %s2407 = scalar_lea.vmem %s3, 2
  %v2408 = vld [vmem:[%s2407] sm:$0x1]
  %v2410 = vlaneseq
  %v2411 = vshrl.u32 %v2410, 7
  %v2412 = vsub.s32 0, %v2411
  %v2413 = vrot.slane %v2408, %v2412
  %v2416 = vsel %vm67, %v2400, 0
  %v2419 = vsel %vm67, %v2401, 0
  %2421 = vmatprep.subr.mxu0 0.0
  %2422 = vmatpush1.msra.mxu0 %v2403
  %2423 = vmatprep.subr.mxu0 0.0
  %2424 = vmatpush1.msra.mxu0 %v2404
  %2425 = vmatprep.subr.mxu0 0.0
  %2426 = vmatpush1.msra.mxu0 %v2405
  %2427 = vmatprep.subr.mxu0 0.0
  %2428 = vmatpush1.msra.mxu0 %v2406
  %2429 = vmatprep.subr.mxu0 0.0
  %2430 = vmatpush1.msra.mxu0 0.0
  %2431 = vmatprep.subr.mxu0 0.0
  %2432 = vmatpush1.msra.mxu0 0.0
  %2433 = vmatprep.subr.mxu0 0.0
  %2434 = vmatpush1.msra.mxu0 0.0
  %2435 = vmatprep.subr.mxu0 0.0
  %2436 = vmatpush1.msra.mxu0 0.0
  %2437 = vmatprep.subr.mxu0 0.0
  %2438 = vmatpush1.msra.mxu0 0.0
  %2439 = vmatprep.subr.mxu0 0.0
  %2440 = vmatpush1.msra.mxu0 0.0
  %2441 = vmatprep.subr.mxu0 0.0
  %2442 = vmatpush1.msra.mxu0 0.0
  %2443 = vmatprep.subr.mxu0 0.0
  %2444 = vmatpush1.msra.mxu0 0.0
  %2445 = vmatprep.subr.mxu0 0.0
  %2446 = vmatpush1.msra.mxu0 0.0
  %2447 = vmatprep.subr.mxu0 0.0
  %2448 = vmatpush1.msra.mxu0 0.0
  %2449 = vmatprep.subr.mxu0 0.0
  %2450 = vmatpush1.msra.mxu0 0.0
  %2451 = vmatprep.subr.mxu0 0.0
  %2452 = vmatpush1.msra.mxu0 0.0
  %2453 = vmatprep.subr.mxu0 0.0
  %2454 = vmatpush1.msra.mxu0 0.0
  %2455 = vmatprep.subr.mxu0 0.0
  %2456 = vmatpush1.msra.mxu0 0.0
  %2457 = vmatprep.subr.mxu0 0.0
  %2458 = vmatpush1.msra.mxu0 0.0
  %2459 = vmatprep.subr.mxu0 0.0
  %2460 = vmatpush1.msra.mxu0 0.0
  %2461 = vmatprep.subr.mxu0 0.0
  %2462 = vmatpush1.msra.mxu0 0.0
  %2463 = vmatprep.subr.mxu0 0.0
  %2464 = vmatpush1.msra.mxu0 0.0
  %2465 = vmatprep.subr.mxu0 0.0
  %2466 = vmatpush1.msra.mxu0 0.0
  %2467 = vmatprep.subr.mxu0 0.0
  %2468 = vmatpush1.msra.mxu0 0.0
  %2469 = vmatprep.subr.mxu0 0.0
  %2470 = vmatpush1.msra.mxu0 0.0
  %2471 = vmatprep.subr.mxu0 0.0
  %2472 = vmatpush1.msra.mxu0 0.0
  %2473 = vmatprep.subr.mxu0 0.0
  %2474 = vmatpush1.msra.mxu0 0.0
  %2475 = vmatprep.subr.mxu0 0.0
  %2476 = vmatpush1.msra.mxu0 0.0
  %2477 = vmatprep.subr.mxu0 0.0
  %2478 = vmatpush1.msra.mxu0 0.0
  %2479 = vmatprep.subr.mxu0 0.0
  %2480 = vmatpush1.msra.mxu0 0.0
  %2481 = vmatprep.subr.mxu0 0.0
  %2482 = vmatpush1.msra.mxu0 0.0
  %2483 = vmatprep.subr.mxu0 0.0
  %2484 = vmatpush1.msra.mxu0 0.0
  %2485 = vmatprep.mubr.f32.mxu0 0.0
  %2486 = vmatmul.mubr.f32.gmra.mrb[0].mxu0 %v2416
  %v2487 = vpop.f32.mrb[0].mxu0
  %v2488 = vadd.f32 %v2413, %v2487
  %v2489 = vpop.f32.mrb[0].mxu0
  %2490 = vmatprep.mubr.f32.mxu0 0.0
  %2491 = vmatmul.mubr.f32.gmra.mrb[0].mxu0 %v2419
  %v2492 = vpop.f32.mrb[0].mxu0
  %v2493 = vadd.f32 %v2413, %v2492
  %v2494 = vpop.f32.mrb[0].mxu0
  %2495 = vdwg.mxu0
  %2497 = vrot.lane.b32.xlu0 %v2488, 96
  %v2498 = vpop.permute.xlu0 %2497
  %v2499 = vsel %vm152, %v2488, 0
  %v2501 = vsel %vm152, %v2498, 0
  %2503 = vmatprep.subr.mxu0 0.0
  %2504 = vmatpush1.xpose.msra.mxu0 %v2501
  %2505 = vmatprep.subr.mxu0 0.0
  %2506 = vmatpush1.xpose.msra.mxu0 0.0
  %2507 = vmatprep.subr.mxu0 0.0
  %2508 = vmatpush1.xpose.msra.mxu0 0.0
  %2509 = vmatprep.subr.mxu0 0.0
  %2510 = vmatpush1.xpose.msra.mxu0 0.0
  %2511 = vmatprep.subr.mxu0 0.0
  %2512 = vmatpush1.xpose.msra.mxu0 0.0
  %2513 = vmatprep.subr.mxu0 0.0
  %2514 = vmatpush1.xpose.msra.mxu0 0.0
  %2515 = vmatprep.subr.mxu0 0.0
  %2516 = vmatpush1.xpose.msra.mxu0 0.0
  %2517 = vmatprep.subr.mxu0 0.0
  %2518 = vmatpush1.xpose.msra.mxu0 0.0
  %2519 = vmatprep.subr.mxu0 0.0
  %2520 = vmatpush1.xpose.msra.mxu0 0.0
  %2521 = vmatprep.subr.mxu0 0.0
  %2522 = vmatpush1.xpose.msra.mxu0 0.0
  %2523 = vmatprep.subr.mxu0 0.0
  %2524 = vmatpush1.xpose.msra.mxu0 0.0
  %2525 = vmatprep.subr.mxu0 0.0
  %2526 = vmatpush1.xpose.msra.mxu0 0.0
  %2527 = vmatprep.subr.mxu0 0.0
  %2528 = vmatpush1.xpose.msra.mxu0 0.0
  %2529 = vmatprep.subr.mxu0 0.0
  %2530 = vmatpush1.xpose.msra.mxu0 0.0
  %2531 = vmatprep.subr.mxu0 0.0
  %2532 = vmatpush1.xpose.msra.mxu0 0.0
  %2533 = vmatprep.subr.mxu0 0.0
  %2534 = vmatpush1.xpose.msra.mxu0 0.0
  %2535 = vmatprep.subr.mxu0 0.0
  %2536 = vmatpush1.xpose.msra.mxu0 0.0
  %2537 = vmatprep.subr.mxu0 0.0
  %2538 = vmatpush1.xpose.msra.mxu0 0.0
  %2539 = vmatprep.subr.mxu0 0.0
  %2540 = vmatpush1.xpose.msra.mxu0 0.0
  %2541 = vmatprep.subr.mxu0 0.0
  %2542 = vmatpush1.xpose.msra.mxu0 0.0
  %2543 = vmatprep.subr.mxu0 0.0
  %2544 = vmatpush1.xpose.msra.mxu0 0.0
  %2545 = vmatprep.subr.mxu0 0.0
  %2546 = vmatpush1.xpose.msra.mxu0 0.0
  %2547 = vmatprep.subr.mxu0 0.0
  %2548 = vmatpush1.xpose.msra.mxu0 0.0
  %2549 = vmatprep.subr.mxu0 0.0
  %2550 = vmatpush1.xpose.msra.mxu0 0.0
  %2551 = vmatprep.subr.mxu0 0.0
  %2552 = vmatpush1.xpose.msra.mxu0 0.0
  %2553 = vmatprep.subr.mxu0 0.0
  %2554 = vmatpush1.xpose.msra.mxu0 0.0
  %2555 = vmatprep.subr.mxu0 0.0
  %2556 = vmatpush1.xpose.msra.mxu0 0.0
  %2557 = vmatprep.subr.mxu0 0.0
  %2558 = vmatpush1.xpose.msra.mxu0 0.0
  %2559 = vmatprep.subr.mxu0 0.0
  %2560 = vmatpush1.xpose.msra.mxu0 0.0
  %2561 = vmatprep.subr.mxu0 0.0
  %2562 = vmatpush1.xpose.msra.mxu0 0.0
  %2563 = vmatprep.subr.mxu0 0.0
  %2564 = vmatpush1.xpose.msra.mxu0 0.0
  %2565 = vmatprep.subr.mxu0 0.0
  %2566 = vmatpush1.xpose.msra.mxu0 0.0
  %2567 = vmatprep.mubr.f32.mxu0 0.0
  %2568 = vmatmul.mubr.f32.gmra.mrb[0].mxu0 %v2499
  %v2569 = vpop.f32.mrb[0].mxu0
  %v2570 = vadd.f32 %v55, %v2569
  %v2571 = vpop.f32.mrb[0].mxu0
  %2572 = vdwg.mxu0
  %v2573 = vsel %vm227, %v2570, -inf
  %2574 = vmax.xlane.f32.xlu0 %v2573
  %v2575 = vpop.xlane.xlu0 %2574
  %v2576 = vsub.f32 %v2570, %v2575
  %v2577 = vmul.f32 %v2576, 1.442695
  %v2578 = vpow.pop %v2577
  %v2579 = vsel %vm227, %v2578, 0.0
  %2580 = vadd.xlane.f32.xlu0 %v2579
  %v2581 = vpop.xlane.xlu0 %2580
  %v2582 = vrcp.pop %v2581
  %v2583 = vmul.f32 %v2578, %v2582
  %2584 = vrot.lane.b32.xlu0 %v2488, 64
  %v2585 = vpop.permute.xlu0 %2584
  %v2588 = vsel %vm227, %v2583, 0
  %2590 = vmatprep.subr.mxu0 0.0
  %2591 = vmatpush1.msra.mxu0 %v2585
  %2592 = vmatprep.subr.mxu0 0.0
  %2593 = vmatpush1.msra.mxu0 0.0
  %2594 = vmatprep.subr.mxu0 0.0
  %2595 = vmatpush1.msra.mxu0 0.0
  %2596 = vmatprep.subr.mxu0 0.0
  %2597 = vmatpush1.msra.mxu0 0.0
  %2598 = vmatprep.subr.mxu0 0.0
  %2599 = vmatpush1.msra.mxu0 0.0
  %2600 = vmatprep.subr.mxu0 0.0
  %2601 = vmatpush1.msra.mxu0 0.0
  %2602 = vmatprep.subr.mxu0 0.0
  %2603 = vmatpush1.msra.mxu0 0.0
  %2604 = vmatprep.subr.mxu0 0.0
  %2605 = vmatpush1.msra.mxu0 0.0
  %2606 = vmatprep.subr.mxu0 0.0
  %2607 = vmatpush1.msra.mxu0 0.0
  %2608 = vmatprep.subr.mxu0 0.0
  %2609 = vmatpush1.msra.mxu0 0.0
  %2610 = vmatprep.subr.mxu0 0.0
  %2611 = vmatpush1.msra.mxu0 0.0
  %2612 = vmatprep.subr.mxu0 0.0
  %2613 = vmatpush1.msra.mxu0 0.0
  %2614 = vmatprep.subr.mxu0 0.0
  %2615 = vmatpush1.msra.mxu0 0.0
  %2616 = vmatprep.subr.mxu0 0.0
  %2617 = vmatpush1.msra.mxu0 0.0
  %2618 = vmatprep.subr.mxu0 0.0
  %2619 = vmatpush1.msra.mxu0 0.0
  %2620 = vmatprep.subr.mxu0 0.0
  %2621 = vmatpush1.msra.mxu0 0.0
  %2622 = vmatprep.subr.mxu0 0.0
  %2623 = vmatpush1.msra.mxu0 0.0
  %2624 = vmatprep.subr.mxu0 0.0
  %2625 = vmatpush1.msra.mxu0 0.0
  %2626 = vmatprep.subr.mxu0 0.0
  %2627 = vmatpush1.msra.mxu0 0.0
  %2628 = vmatprep.subr.mxu0 0.0
  %2629 = vmatpush1.msra.mxu0 0.0
  %2630 = vmatprep.subr.mxu0 0.0
  %2631 = vmatpush1.msra.mxu0 0.0
  %2632 = vmatprep.subr.mxu0 0.0
  %2633 = vmatpush1.msra.mxu0 0.0
  %2634 = vmatprep.subr.mxu0 0.0
  %2635 = vmatpush1.msra.mxu0 0.0
  %2636 = vmatprep.subr.mxu0 0.0
  %2637 = vmatpush1.msra.mxu0 0.0
  %2638 = vmatprep.subr.mxu0 0.0
  %2639 = vmatpush1.msra.mxu0 0.0
  %2640 = vmatprep.subr.mxu0 0.0
  %2641 = vmatpush1.msra.mxu0 0.0
  %2642 = vmatprep.subr.mxu0 0.0
  %2643 = vmatpush1.msra.mxu0 0.0
  %2644 = vmatprep.subr.mxu0 0.0
  %2645 = vmatpush1.msra.mxu0 0.0
  %2646 = vmatprep.subr.mxu0 0.0
  %2647 = vmatpush1.msra.mxu0 0.0
  %2648 = vmatprep.subr.mxu0 0.0
  %2649 = vmatpush1.msra.mxu0 0.0
  %2650 = vmatprep.subr.mxu0 0.0
  %2651 = vmatpush1.msra.mxu0 0.0
  %2652 = vmatprep.subr.mxu0 0.0
  %2653 = vmatpush1.msra.mxu0 0.0
  %2654 = vmatprep.mubr.f32.mxu0 0.0
  %2655 = vmatmul.mubr.f32.gmra.mrb[0].mxu0 %v2588
  %v2656 = vpop.f32.mrb[0].mxu0
  %v2657 = vadd.f32 0.0, %v2656
  %v2658 = vpop.f32.mrb[0].mxu0
  %2659 = vdwg.mxu0
  %2660 = vrot.lane.b32.xlu0 %v2488, 112
  %v2661 = vpop.permute.xlu0 %2660
  %2662 = vrot.lane.b32.xlu0 %v2488, 80
  %v2663 = vpop.permute.xlu0 %2662
  %v2664 = vsel %vm152, %v2661, 0
  %v2666 = vsel %vm152, %v2663, 0
  %2668 = vmatprep.subr.mxu0 0.0
  %2669 = vmatpush1.xpose.msra.mxu0 %v2666
  %2670 = vmatprep.subr.mxu0 0.0
  %2671 = vmatpush1.xpose.msra.mxu0 0.0
  %2672 = vmatprep.subr.mxu0 0.0
  %2673 = vmatpush1.xpose.msra.mxu0 0.0
  %2674 = vmatprep.subr.mxu0 0.0
  %2675 = vmatpush1.xpose.msra.mxu0 0.0
  %2676 = vmatprep.subr.mxu0 0.0
  %2677 = vmatpush1.xpose.msra.mxu0 0.0
  %2678 = vmatprep.subr.mxu0 0.0
  %2679 = vmatpush1.xpose.msra.mxu0 0.0
  %2680 = vmatprep.subr.mxu0 0.0
  %2681 = vmatpush1.xpose.msra.mxu0 0.0
  %2682 = vmatprep.subr.mxu0 0.0
  %2683 = vmatpush1.xpose.msra.mxu0 0.0
  %2684 = vmatprep.subr.mxu0 0.0
  %2685 = vmatpush1.xpose.msra.mxu0 0.0
  %2686 = vmatprep.subr.mxu0 0.0
  %2687 = vmatpush1.xpose.msra.mxu0 0.0
  %2688 = vmatprep.subr.mxu0 0.0
  %2689 = vmatpush1.xpose.msra.mxu0 0.0
  %2690 = vmatprep.subr.mxu0 0.0
  %2691 = vmatpush1.xpose.msra.mxu0 0.0
  %2692 = vmatprep.subr.mxu0 0.0
  %2693 = vmatpush1.xpose.msra.mxu0 0.0
  %2694 = vmatprep.subr.mxu0 0.0
  %2695 = vmatpush1.xpose.msra.mxu0 0.0
  %2696 = vmatprep.subr.mxu0 0.0
  %2697 = vmatpush1.xpose.msra.mxu0 0.0
  %2698 = vmatprep.subr.mxu0 0.0
  %2699 = vmatpush1.xpose.msra.mxu0 0.0
  %2700 = vmatprep.subr.mxu0 0.0
  %2701 = vmatpush1.xpose.msra.mxu0 0.0
  %2702 = vmatprep.subr.mxu0 0.0
  %2703 = vmatpush1.xpose.msra.mxu0 0.0
  %2704 = vmatprep.subr.mxu0 0.0
  %2705 = vmatpush1.xpose.msra.mxu0 0.0
  %2706 = vmatprep.subr.mxu0 0.0
  %2707 = vmatpush1.xpose.msra.mxu0 0.0
  %2708 = vmatprep.subr.mxu0 0.0
  %2709 = vmatpush1.xpose.msra.mxu0 0.0
  %2710 = vmatprep.subr.mxu0 0.0
  %2711 = vmatpush1.xpose.msra.mxu0 0.0
  %2712 = vmatprep.subr.mxu0 0.0
  %2713 = vmatpush1.xpose.msra.mxu0 0.0
  %2714 = vmatprep.subr.mxu0 0.0
  %2715 = vmatpush1.xpose.msra.mxu0 0.0
  %2716 = vmatprep.subr.mxu0 0.0
  %2717 = vmatpush1.xpose.msra.mxu0 0.0
  %2718 = vmatprep.subr.mxu0 0.0
  %2719 = vmatpush1.xpose.msra.mxu0 0.0
  %2720 = vmatprep.subr.mxu0 0.0
  %2721 = vmatpush1.xpose.msra.mxu0 0.0
  %2722 = vmatprep.subr.mxu0 0.0
  %2723 = vmatpush1.xpose.msra.mxu0 0.0
  %2724 = vmatprep.subr.mxu0 0.0
  %2725 = vmatpush1.xpose.msra.mxu0 0.0
  %2726 = vmatprep.subr.mxu0 0.0
  %2727 = vmatpush1.xpose.msra.mxu0 0.0
  %2728 = vmatprep.subr.mxu0 0.0
  %2729 = vmatpush1.xpose.msra.mxu0 0.0
  %2730 = vmatprep.subr.mxu0 0.0
  %2731 = vmatpush1.xpose.msra.mxu0 0.0
  %2732 = vmatprep.mubr.f32.mxu0 0.0
  %2733 = vmatmul.mubr.f32.gmra.mrb[0].mxu0 %v2664
  %v2734 = vpop.f32.mrb[0].mxu0
  %v2735 = vadd.f32 %v55, %v2734
  %v2736 = vpop.f32.mrb[0].mxu0
  %2737 = vdwg.mxu0
  %v2738 = vsel %vm227, %v2735, -inf
  %2739 = vmax.xlane.f32.xlu0 %v2738
  %v2740 = vpop.xlane.xlu0 %2739
  %v2741 = vsub.f32 %v2735, %v2740
  %v2742 = vmul.f32 %v2741, 1.442695
  %v2743 = vpow.pop %v2742
  %v2744 = vsel %vm227, %v2743, 0.0
  %2745 = vadd.xlane.f32.xlu0 %v2744
  %v2746 = vpop.xlane.xlu0 %2745
  %v2747 = vrcp.pop %v2746
  %v2748 = vmul.f32 %v2743, %v2747
  %2749 = vrot.lane.b32.xlu0 %v2488, 48
  %v2750 = vpop.permute.xlu0 %2749
  %v2753 = vsel %vm227, %v2748, 0
  %2755 = vmatprep.subr.mxu0 0.0
  %2756 = vmatpush1.msra.mxu0 %v2750
  %2757 = vmatprep.subr.mxu0 0.0
  %2758 = vmatpush1.msra.mxu0 0.0
  %2759 = vmatprep.subr.mxu0 0.0
  %2760 = vmatpush1.msra.mxu0 0.0
  %2761 = vmatprep.subr.mxu0 0.0
  %2762 = vmatpush1.msra.mxu0 0.0
  %2763 = vmatprep.subr.mxu0 0.0
  %2764 = vmatpush1.msra.mxu0 0.0
  %2765 = vmatprep.subr.mxu0 0.0
  %2766 = vmatpush1.msra.mxu0 0.0
  %2767 = vmatprep.subr.mxu0 0.0
  %2768 = vmatpush1.msra.mxu0 0.0
  %2769 = vmatprep.subr.mxu0 0.0
  %2770 = vmatpush1.msra.mxu0 0.0
  %2771 = vmatprep.subr.mxu0 0.0
  %2772 = vmatpush1.msra.mxu0 0.0
  %2773 = vmatprep.subr.mxu0 0.0
  %2774 = vmatpush1.msra.mxu0 0.0
  %2775 = vmatprep.subr.mxu0 0.0
  %2776 = vmatpush1.msra.mxu0 0.0
  %2777 = vmatprep.subr.mxu0 0.0
  %2778 = vmatpush1.msra.mxu0 0.0
  %2779 = vmatprep.subr.mxu0 0.0
  %2780 = vmatpush1.msra.mxu0 0.0
  %2781 = vmatprep.subr.mxu0 0.0
  %2782 = vmatpush1.msra.mxu0 0.0
  %2783 = vmatprep.subr.mxu0 0.0
  %2784 = vmatpush1.msra.mxu0 0.0
  %2785 = vmatprep.subr.mxu0 0.0
  %2786 = vmatpush1.msra.mxu0 0.0
  %2787 = vmatprep.subr.mxu0 0.0
  %2788 = vmatpush1.msra.mxu0 0.0
  %2789 = vmatprep.subr.mxu0 0.0
  %2790 = vmatpush1.msra.mxu0 0.0
  %2791 = vmatprep.subr.mxu0 0.0
  %2792 = vmatpush1.msra.mxu0 0.0
  %2793 = vmatprep.subr.mxu0 0.0
  %2794 = vmatpush1.msra.mxu0 0.0
  %2795 = vmatprep.subr.mxu0 0.0
  %2796 = vmatpush1.msra.mxu0 0.0
  %2797 = vmatprep.subr.mxu0 0.0
  %2798 = vmatpush1.msra.mxu0 0.0
  %2799 = vmatprep.subr.mxu0 0.0
  %2800 = vmatpush1.msra.mxu0 0.0
  %2801 = vmatprep.subr.mxu0 0.0
  %2802 = vmatpush1.msra.mxu0 0.0
  %2803 = vmatprep.subr.mxu0 0.0
  %2804 = vmatpush1.msra.mxu0 0.0
  %2805 = vmatprep.subr.mxu0 0.0
  %2806 = vmatpush1.msra.mxu0 0.0
  %2807 = vmatprep.subr.mxu0 0.0
  %2808 = vmatpush1.msra.mxu0 0.0
  %2809 = vmatprep.subr.mxu0 0.0
  %2810 = vmatpush1.msra.mxu0 0.0
  %2811 = vmatprep.subr.mxu0 0.0
  %2812 = vmatpush1.msra.mxu0 0.0
  %2813 = vmatprep.subr.mxu0 0.0
  %2814 = vmatpush1.msra.mxu0 0.0
  %2815 = vmatprep.subr.mxu0 0.0
  %2816 = vmatpush1.msra.mxu0 0.0
  %2817 = vmatprep.subr.mxu0 0.0
  %2818 = vmatpush1.msra.mxu0 0.0
  %2819 = vmatprep.mubr.f32.mxu0 0.0
  %2820 = vmatmul.mubr.f32.gmra.mrb[0].mxu0 %v2753
  %v2821 = vpop.f32.mrb[0].mxu0
  %v2822 = vadd.f32 0.0, %v2821
  %v2823 = vpop.f32.mrb[0].mxu0
  %2824 = vdwg.mxu0
  %2826 = vrot.lane.b32.xlu0 %v2822, 16
  %v2827 = vpop.permute.xlu0 %2826
  %v2829 = vsel %vm152, %v2657, %v2827
  %2831 = vrot.lane.b32.xlu0 %v2493, 96
  %v2832 = vpop.permute.xlu0 %2831
  %v2833 = vsel %vm152, %v2493, 0
  %v2835 = vsel %vm152, %v2832, 0
  %2837 = vmatprep.subr.mxu0 0.0
  %2838 = vmatpush1.xpose.msra.mxu0 %v2835
  %2839 = vmatprep.subr.mxu0 0.0
  %2840 = vmatpush1.xpose.msra.mxu0 0.0
  %2841 = vmatprep.subr.mxu0 0.0
  %2842 = vmatpush1.xpose.msra.mxu0 0.0
  %2843 = vmatprep.subr.mxu0 0.0
  %2844 = vmatpush1.xpose.msra.mxu0 0.0
  %2845 = vmatprep.subr.mxu0 0.0
  %2846 = vmatpush1.xpose.msra.mxu0 0.0
  %2847 = vmatprep.subr.mxu0 0.0
  %2848 = vmatpush1.xpose.msra.mxu0 0.0
  %2849 = vmatprep.subr.mxu0 0.0
  %2850 = vmatpush1.xpose.msra.mxu0 0.0
  %2851 = vmatprep.subr.mxu0 0.0
  %2852 = vmatpush1.xpose.msra.mxu0 0.0
  %2853 = vmatprep.subr.mxu0 0.0
  %2854 = vmatpush1.xpose.msra.mxu0 0.0
  %2855 = vmatprep.subr.mxu0 0.0
  %2856 = vmatpush1.xpose.msra.mxu0 0.0
  %2857 = vmatprep.subr.mxu0 0.0
  %2858 = vmatpush1.xpose.msra.mxu0 0.0
  %2859 = vmatprep.subr.mxu0 0.0
  %2860 = vmatpush1.xpose.msra.mxu0 0.0
  %2861 = vmatprep.subr.mxu0 0.0
  %2862 = vmatpush1.xpose.msra.mxu0 0.0
  %2863 = vmatprep.subr.mxu0 0.0
  %2864 = vmatpush1.xpose.msra.mxu0 0.0
  %2865 = vmatprep.subr.mxu0 0.0
  %2866 = vmatpush1.xpose.msra.mxu0 0.0
  %2867 = vmatprep.subr.mxu0 0.0
  %2868 = vmatpush1.xpose.msra.mxu0 0.0
  %2869 = vmatprep.subr.mxu0 0.0
  %2870 = vmatpush1.xpose.msra.mxu0 0.0
  %2871 = vmatprep.subr.mxu0 0.0
  %2872 = vmatpush1.xpose.msra.mxu0 0.0
  %2873 = vmatprep.subr.mxu0 0.0
  %2874 = vmatpush1.xpose.msra.mxu0 0.0
  %2875 = vmatprep.subr.mxu0 0.0
  %2876 = vmatpush1.xpose.msra.mxu0 0.0
  %2877 = vmatprep.subr.mxu0 0.0
  %2878 = vmatpush1.xpose.msra.mxu0 0.0
  %2879 = vmatprep.subr.mxu0 0.0
  %2880 = vmatpush1.xpose.msra.mxu0 0.0
  %2881 = vmatprep.subr.mxu0 0.0
  %2882 = vmatpush1.xpose.msra.mxu0 0.0
  %2883 = vmatprep.subr.mxu0 0.0
  %2884 = vmatpush1.xpose.msra.mxu0 0.0
  %2885 = vmatprep.subr.mxu0 0.0
  %2886 = vmatpush1.xpose.msra.mxu0 0.0
  %2887 = vmatprep.subr.mxu0 0.0
  %2888 = vmatpush1.xpose.msra.mxu0 0.0
  %2889 = vmatprep.subr.mxu0 0.0
  %2890 = vmatpush1.xpose.msra.mxu0 0.0
  %2891 = vmatprep.subr.mxu0 0.0
  %2892 = vmatpush1.xpose.msra.mxu0 0.0
  %2893 = vmatprep.subr.mxu0 0.0
  %2894 = vmatpush1.xpose.msra.mxu0 0.0
  %2895 = vmatprep.subr.mxu0 0.0
  %2896 = vmatpush1.xpose.msra.mxu0 0.0
  %2897 = vmatprep.subr.mxu0 0.0
  %2898 = vmatpush1.xpose.msra.mxu0 0.0
  %2899 = vmatprep.subr.mxu0 0.0
  %2900 = vmatpush1.xpose.msra.mxu0 0.0
  %2901 = vmatprep.mubr.f32.mxu0 0.0
  %2902 = vmatmul.mubr.f32.gmra.mrb[0].mxu0 %v2833
  %v2903 = vpop.f32.mrb[0].mxu0
  %v2904 = vadd.f32 %v55, %v2903
  %v2905 = vpop.f32.mrb[0].mxu0
  %2906 = vdwg.mxu0
  %v2907 = vsel %vm227, %v2904, -inf
  %2908 = vmax.xlane.f32.xlu0 %v2907
  %v2909 = vpop.xlane.xlu0 %2908
  %v2910 = vsub.f32 %v2904, %v2909
  %v2911 = vmul.f32 %v2910, 1.442695
  %v2912 = vpow.pop %v2911
  %v2913 = vsel %vm227, %v2912, 0.0
  %2914 = vadd.xlane.f32.xlu0 %v2913
  %v2915 = vpop.xlane.xlu0 %2914
  %v2916 = vrcp.pop %v2915
  %v2917 = vmul.f32 %v2912, %v2916
  %2918 = vrot.lane.b32.xlu0 %v2493, 64
  %v2919 = vpop.permute.xlu0 %2918
  %v2922 = vsel %vm227, %v2917, 0
  %2924 = vmatprep.subr.mxu0 0.0
  %2925 = vmatpush1.msra.mxu0 %v2919
  %2926 = vmatprep.subr.mxu0 0.0
  %2927 = vmatpush1.msra.mxu0 0.0
  %2928 = vmatprep.subr.mxu0 0.0
  %2929 = vmatpush1.msra.mxu0 0.0
  %2930 = vmatprep.subr.mxu0 0.0
  %2931 = vmatpush1.msra.mxu0 0.0
  %2932 = vmatprep.subr.mxu0 0.0
  %2933 = vmatpush1.msra.mxu0 0.0
  %2934 = vmatprep.subr.mxu0 0.0
  %2935 = vmatpush1.msra.mxu0 0.0
  %2936 = vmatprep.subr.mxu0 0.0
  %2937 = vmatpush1.msra.mxu0 0.0
  %2938 = vmatprep.subr.mxu0 0.0
  %2939 = vmatpush1.msra.mxu0 0.0
  %2940 = vmatprep.subr.mxu0 0.0
  %2941 = vmatpush1.msra.mxu0 0.0
  %2942 = vmatprep.subr.mxu0 0.0
  %2943 = vmatpush1.msra.mxu0 0.0
  %2944 = vmatprep.subr.mxu0 0.0
  %2945 = vmatpush1.msra.mxu0 0.0
  %2946 = vmatprep.subr.mxu0 0.0
  %2947 = vmatpush1.msra.mxu0 0.0
  %2948 = vmatprep.subr.mxu0 0.0
  %2949 = vmatpush1.msra.mxu0 0.0
  %2950 = vmatprep.subr.mxu0 0.0
  %2951 = vmatpush1.msra.mxu0 0.0
  %2952 = vmatprep.subr.mxu0 0.0
  %2953 = vmatpush1.msra.mxu0 0.0
  %2954 = vmatprep.subr.mxu0 0.0
  %2955 = vmatpush1.msra.mxu0 0.0
  %2956 = vmatprep.subr.mxu0 0.0
  %2957 = vmatpush1.msra.mxu0 0.0
  %2958 = vmatprep.subr.mxu0 0.0
  %2959 = vmatpush1.msra.mxu0 0.0
  %2960 = vmatprep.subr.mxu0 0.0
  %2961 = vmatpush1.msra.mxu0 0.0
  %2962 = vmatprep.subr.mxu0 0.0
  %2963 = vmatpush1.msra.mxu0 0.0
  %2964 = vmatprep.subr.mxu0 0.0
  %2965 = vmatpush1.msra.mxu0 0.0
  %2966 = vmatprep.subr.mxu0 0.0
  %2967 = vmatpush1.msra.mxu0 0.0
  %2968 = vmatprep.subr.mxu0 0.0
  %2969 = vmatpush1.msra.mxu0 0.0
  %2970 = vmatprep.subr.mxu0 0.0
  %2971 = vmatpush1.msra.mxu0 0.0
  %2972 = vmatprep.subr.mxu0 0.0
  %2973 = vmatpush1.msra.mxu0 0.0
  %2974 = vmatprep.subr.mxu0 0.0
  %2975 = vmatpush1.msra.mxu0 0.0
  %2976 = vmatprep.subr.mxu0 0.0
  %2977 = vmatpush1.msra.mxu0 0.0
  %2978 = vmatprep.subr.mxu0 0.0
  %2979 = vmatpush1.msra.mxu0 0.0
  %2980 = vmatprep.subr.mxu0 0.0
  %2981 = vmatpush1.msra.mxu0 0.0
  %2982 = vmatprep.subr.mxu0 0.0
  %2983 = vmatpush1.msra.mxu0 0.0
  %2984 = vmatprep.subr.mxu0 0.0
  %2985 = vmatpush1.msra.mxu0 0.0
  %2986 = vmatprep.subr.mxu0 0.0
  %2987 = vmatpush1.msra.mxu0 0.0
  %2988 = vmatprep.mubr.f32.mxu0 0.0
  %2989 = vmatmul.mubr.f32.gmra.mrb[0].mxu0 %v2922
  %v2990 = vpop.f32.mrb[0].mxu0
  %v2991 = vadd.f32 0.0, %v2990
  %v2992 = vpop.f32.mrb[0].mxu0
  %2993 = vdwg.mxu0
  %2994 = vrot.lane.b32.xlu0 %v2493, 112
  %v2995 = vpop.permute.xlu0 %2994
  %2996 = vrot.lane.b32.xlu0 %v2493, 80
  %v2997 = vpop.permute.xlu0 %2996
  %v2998 = vsel %vm152, %v2995, 0
  %v3000 = vsel %vm152, %v2997, 0
  %3002 = vmatprep.subr.mxu0 0.0
  %3003 = vmatpush1.xpose.msra.mxu0 %v3000
  %3004 = vmatprep.subr.mxu0 0.0
  %3005 = vmatpush1.xpose.msra.mxu0 0.0
  %3006 = vmatprep.subr.mxu0 0.0
  %3007 = vmatpush1.xpose.msra.mxu0 0.0
  %3008 = vmatprep.subr.mxu0 0.0
  %3009 = vmatpush1.xpose.msra.mxu0 0.0
  %3010 = vmatprep.subr.mxu0 0.0
  %3011 = vmatpush1.xpose.msra.mxu0 0.0
  %3012 = vmatprep.subr.mxu0 0.0
  %3013 = vmatpush1.xpose.msra.mxu0 0.0
  %3014 = vmatprep.subr.mxu0 0.0
  %3015 = vmatpush1.xpose.msra.mxu0 0.0
  %3016 = vmatprep.subr.mxu0 0.0
  %3017 = vmatpush1.xpose.msra.mxu0 0.0
  %3018 = vmatprep.subr.mxu0 0.0
  %3019 = vmatpush1.xpose.msra.mxu0 0.0
  %3020 = vmatprep.subr.mxu0 0.0
  %3021 = vmatpush1.xpose.msra.mxu0 0.0
  %3022 = vmatprep.subr.mxu0 0.0
  %3023 = vmatpush1.xpose.msra.mxu0 0.0
  %3024 = vmatprep.subr.mxu0 0.0
  %3025 = vmatpush1.xpose.msra.mxu0 0.0
  %3026 = vmatprep.subr.mxu0 0.0
  %3027 = vmatpush1.xpose.msra.mxu0 0.0
  %3028 = vmatprep.subr.mxu0 0.0
  %3029 = vmatpush1.xpose.msra.mxu0 0.0
  %3030 = vmatprep.subr.mxu0 0.0
  %3031 = vmatpush1.xpose.msra.mxu0 0.0
  %3032 = vmatprep.subr.mxu0 0.0
  %3033 = vmatpush1.xpose.msra.mxu0 0.0
  %3034 = vmatprep.subr.mxu0 0.0
  %3035 = vmatpush1.xpose.msra.mxu0 0.0
  %3036 = vmatprep.subr.mxu0 0.0
  %3037 = vmatpush1.xpose.msra.mxu0 0.0
  %3038 = vmatprep.subr.mxu0 0.0
  %3039 = vmatpush1.xpose.msra.mxu0 0.0
  %3040 = vmatprep.subr.mxu0 0.0
  %3041 = vmatpush1.xpose.msra.mxu0 0.0
  %3042 = vmatprep.subr.mxu0 0.0
  %3043 = vmatpush1.xpose.msra.mxu0 0.0
  %3044 = vmatprep.subr.mxu0 0.0
  %3045 = vmatpush1.xpose.msra.mxu0 0.0
  %3046 = vmatprep.subr.mxu0 0.0
  %3047 = vmatpush1.xpose.msra.mxu0 0.0
  %3048 = vmatprep.subr.mxu0 0.0
  %3049 = vmatpush1.xpose.msra.mxu0 0.0
  %3050 = vmatprep.subr.mxu0 0.0
  %3051 = vmatpush1.xpose.msra.mxu0 0.0
  %3052 = vmatprep.subr.mxu0 0.0
  %3053 = vmatpush1.xpose.msra.mxu0 0.0
  %3054 = vmatprep.subr.mxu0 0.0
  %3055 = vmatpush1.xpose.msra.mxu0 0.0
  %3056 = vmatprep.subr.mxu0 0.0
  %3057 = vmatpush1.xpose.msra.mxu0 0.0
  %3058 = vmatprep.subr.mxu0 0.0
  %3059 = vmatpush1.xpose.msra.mxu0 0.0
  %3060 = vmatprep.subr.mxu0 0.0
  %3061 = vmatpush1.xpose.msra.mxu0 0.0
  %3062 = vmatprep.subr.mxu0 0.0
  %3063 = vmatpush1.xpose.msra.mxu0 0.0
  %3064 = vmatprep.subr.mxu0 0.0
  %3065 = vmatpush1.xpose.msra.mxu0 0.0
  %3066 = vmatprep.mubr.f32.mxu0 0.0
  %3067 = vmatmul.mubr.f32.gmra.mrb[0].mxu0 %v2998
  %v3068 = vpop.f32.mrb[0].mxu0
  %v3069 = vadd.f32 %v55, %v3068
  %v3070 = vpop.f32.mrb[0].mxu0
  %3071 = vdwg.mxu0
  %v3072 = vsel %vm227, %v3069, -inf
  %3073 = vmax.xlane.f32.xlu0 %v3072
  %v3074 = vpop.xlane.xlu0 %3073
  %v3075 = vsub.f32 %v3069, %v3074
  %v3076 = vmul.f32 %v3075, 1.442695
  %v3077 = vpow.pop %v3076
  %v3078 = vsel %vm227, %v3077, 0.0
  %3079 = vadd.xlane.f32.xlu0 %v3078
  %v3080 = vpop.xlane.xlu0 %3079
  %v3081 = vrcp.pop %v3080
  %v3082 = vmul.f32 %v3077, %v3081
  %3083 = vrot.lane.b32.xlu0 %v2493, 48
  %v3084 = vpop.permute.xlu0 %3083
  %v3087 = vsel %vm227, %v3082, 0
  %3089 = vmatprep.subr.mxu0 0.0
  %3090 = vmatpush1.msra.mxu0 %v3084
  %3091 = vmatprep.subr.mxu0 0.0
  %3092 = vmatpush1.msra.mxu0 0.0
  %3093 = vmatprep.subr.mxu0 0.0
  %3094 = vmatpush1.msra.mxu0 0.0
  %3095 = vmatprep.subr.mxu0 0.0
  %3096 = vmatpush1.msra.mxu0 0.0
  %3097 = vmatprep.subr.mxu0 0.0
  %3098 = vmatpush1.msra.mxu0 0.0
  %3099 = vmatprep.subr.mxu0 0.0
  %3100 = vmatpush1.msra.mxu0 0.0
  %3101 = vmatprep.subr.mxu0 0.0
  %3102 = vmatpush1.msra.mxu0 0.0
  %3103 = vmatprep.subr.mxu0 0.0
  %3104 = vmatpush1.msra.mxu0 0.0
  %3105 = vmatprep.subr.mxu0 0.0
  %3106 = vmatpush1.msra.mxu0 0.0
  %3107 = vmatprep.subr.mxu0 0.0
  %3108 = vmatpush1.msra.mxu0 0.0
  %3109 = vmatprep.subr.mxu0 0.0
  %3110 = vmatpush1.msra.mxu0 0.0
  %3111 = vmatprep.subr.mxu0 0.0
  %3112 = vmatpush1.msra.mxu0 0.0
  %3113 = vmatprep.subr.mxu0 0.0
  %3114 = vmatpush1.msra.mxu0 0.0
  %3115 = vmatprep.subr.mxu0 0.0
  %3116 = vmatpush1.msra.mxu0 0.0
  %3117 = vmatprep.subr.mxu0 0.0
  %3118 = vmatpush1.msra.mxu0 0.0
  %3119 = vmatprep.subr.mxu0 0.0
  %3120 = vmatpush1.msra.mxu0 0.0
  %3121 = vmatprep.subr.mxu0 0.0
  %3122 = vmatpush1.msra.mxu0 0.0
  %3123 = vmatprep.subr.mxu0 0.0
  %3124 = vmatpush1.msra.mxu0 0.0
  %3125 = vmatprep.subr.mxu0 0.0
  %3126 = vmatpush1.msra.mxu0 0.0
  %3127 = vmatprep.subr.mxu0 0.0
  %3128 = vmatpush1.msra.mxu0 0.0
  %3129 = vmatprep.subr.mxu0 0.0
  %3130 = vmatpush1.msra.mxu0 0.0
  %3131 = vmatprep.subr.mxu0 0.0
  %3132 = vmatpush1.msra.mxu0 0.0
  %3133 = vmatprep.subr.mxu0 0.0
  %3134 = vmatpush1.msra.mxu0 0.0
  %3135 = vmatprep.subr.mxu0 0.0
  %3136 = vmatpush1.msra.mxu0 0.0
  %3137 = vmatprep.subr.mxu0 0.0
  %3138 = vmatpush1.msra.mxu0 0.0
  %3139 = vmatprep.subr.mxu0 0.0
  %3140 = vmatpush1.msra.mxu0 0.0
  %3141 = vmatprep.subr.mxu0 0.0
  %3142 = vmatpush1.msra.mxu0 0.0
  %3143 = vmatprep.subr.mxu0 0.0
  %3144 = vmatpush1.msra.mxu0 0.0
  %3145 = vmatprep.subr.mxu0 0.0
  %3146 = vmatpush1.msra.mxu0 0.0
  %3147 = vmatprep.subr.mxu0 0.0
  %3148 = vmatpush1.msra.mxu0 0.0
  %3149 = vmatprep.subr.mxu0 0.0
  %3150 = vmatpush1.msra.mxu0 0.0
  %3151 = vmatprep.subr.mxu0 0.0
  %3152 = vmatpush1.msra.mxu0 0.0
  %3153 = vmatprep.mubr.f32.mxu0 0.0
  %3154 = vmatmul.mubr.f32.gmra.mrb[0].mxu0 %v3087
  %v3155 = vpop.f32.mrb[0].mxu0
  %v3156 = vadd.f32 0.0, %v3155
  %v3157 = vpop.f32.mrb[0].mxu0
  %3158 = vdwg.mxu0
  %3160 = vrot.lane.b32.xlu0 %v3156, 16
  %v3161 = vpop.permute.xlu0 %3160
  %v3163 = vsel %vm152, %v2991, %v3161
  %s3164 = scalar_lea.vmem %s4, 64
  %v3165 = vld [vmem:[%s3164] sm:$0xff]
  %v3166 = vld [vmem:[%s3164 + $0x8] sm:$0xff]
  %v3167 = vld [vmem:[%s3164 + $0x10] sm:$0xff]
  %v3168 = vld [vmem:[%s3164 + $0x18] sm:$0xff]
  %s3169 = scalar_lea.vmem %s5, 2
  %v3170 = vld [vmem:[%s3169] sm:$0x1]
  %v3172 = vlaneseq
  %v3173 = vshrl.u32 %v3172, 7
  %v3174 = vsub.s32 0, %v3173
  %v3175 = vrot.slane %v3170, %v3174
  %v3178 = vsel %vm67, %v2829, 0
  %v3181 = vsel %vm67, %v3163, 0
  %3183 = vmatprep.subr.mxu0 0.0
  %3184 = vmatpush1.msra.mxu0 %v3165
  %3185 = vmatprep.subr.mxu0 0.0
  %3186 = vmatpush1.msra.mxu0 %v3166
  %3187 = vmatprep.subr.mxu0 0.0
  %3188 = vmatpush1.msra.mxu0 %v3167
  %3189 = vmatprep.subr.mxu0 0.0
  %3190 = vmatpush1.msra.mxu0 %v3168
  %3191 = vmatprep.subr.mxu0 0.0
  %3192 = vmatpush1.msra.mxu0 0.0
  %3193 = vmatprep.subr.mxu0 0.0
  %3194 = vmatpush1.msra.mxu0 0.0
  %3195 = vmatprep.subr.mxu0 0.0
  %3196 = vmatpush1.msra.mxu0 0.0
  %3197 = vmatprep.subr.mxu0 0.0
  %3198 = vmatpush1.msra.mxu0 0.0
  %3199 = vmatprep.subr.mxu0 0.0
  %3200 = vmatpush1.msra.mxu0 0.0
  %3201 = vmatprep.subr.mxu0 0.0
  %3202 = vmatpush1.msra.mxu0 0.0
  %3203 = vmatprep.subr.mxu0 0.0
  %3204 = vmatpush1.msra.mxu0 0.0
  %3205 = vmatprep.subr.mxu0 0.0
  %3206 = vmatpush1.msra.mxu0 0.0
  %3207 = vmatprep.subr.mxu0 0.0
  %3208 = vmatpush1.msra.mxu0 0.0
  %3209 = vmatprep.subr.mxu0 0.0
  %3210 = vmatpush1.msra.mxu0 0.0
  %3211 = vmatprep.subr.mxu0 0.0
  %3212 = vmatpush1.msra.mxu0 0.0
  %3213 = vmatprep.subr.mxu0 0.0
  %3214 = vmatpush1.msra.mxu0 0.0
  %3215 = vmatprep.subr.mxu0 0.0
  %3216 = vmatpush1.msra.mxu0 0.0
  %3217 = vmatprep.subr.mxu0 0.0
  %3218 = vmatpush1.msra.mxu0 0.0
  %3219 = vmatprep.subr.mxu0 0.0
  %3220 = vmatpush1.msra.mxu0 0.0
  %3221 = vmatprep.subr.mxu0 0.0
  %3222 = vmatpush1.msra.mxu0 0.0
  %3223 = vmatprep.subr.mxu0 0.0
  %3224 = vmatpush1.msra.mxu0 0.0
  %3225 = vmatprep.subr.mxu0 0.0
  %3226 = vmatpush1.msra.mxu0 0.0
  %3227 = vmatprep.subr.mxu0 0.0
  %3228 = vmatpush1.msra.mxu0 0.0
  %3229 = vmatprep.subr.mxu0 0.0
  %3230 = vmatpush1.msra.mxu0 0.0
  %3231 = vmatprep.subr.mxu0 0.0
  %3232 = vmatpush1.msra.mxu0 0.0
  %3233 = vmatprep.subr.mxu0 0.0
  %3234 = vmatpush1.msra.mxu0 0.0
  %3235 = vmatprep.subr.mxu0 0.0
  %3236 = vmatpush1.msra.mxu0 0.0
  %3237 = vmatprep.subr.mxu0 0.0
  %3238 = vmatpush1.msra.mxu0 0.0
  %3239 = vmatprep.subr.mxu0 0.0
  %3240 = vmatpush1.msra.mxu0 0.0
  %3241 = vmatprep.subr.mxu0 0.0
  %3242 = vmatpush1.msra.mxu0 0.0
  %3243 = vmatprep.subr.mxu0 0.0
  %3244 = vmatpush1.msra.mxu0 0.0
  %3245 = vmatprep.subr.mxu0 0.0
  %3246 = vmatpush1.msra.mxu0 0.0
  %3247 = vmatprep.mubr.f32.mxu0 0.0
  %3248 = vmatmul.mubr.f32.gmra.mrb[0].mxu0 %v3178
  %v3249 = vpop.f32.mrb[0].mxu0
  %v3250 = vadd.f32 %v3175, %v3249
  %v3251 = vpop.f32.mrb[0].mxu0
  %3252 = vmatprep.mubr.f32.mxu0 0.0
  %3253 = vmatmul.mubr.f32.gmra.mrb[0].mxu0 %v3181
  %v3254 = vpop.f32.mrb[0].mxu0
  %v3255 = vadd.f32 %v3175, %v3254
  %v3256 = vpop.f32.mrb[0].mxu0
  %3257 = vdwg.mxu0
  %v3258 = vadd.f32 %v2400, %v3250
  %v3259 = vadd.f32 %v2401, %v3255
  %v3260 = vsel %vm67, %v3258, 0.0
  %3261 = vadd.xlane.f32.xlu0 %v3260
  %v3262 = vpop.xlane.xlu0 %3261
  %v3263 = vsel %vm67, %v3259, 0.0
  %3264 = vadd.xlane.f32.xlu0 %v3263
  %v3265 = vpop.xlane.xlu0 %3264
  %v3266 = vmul.f32 %v3262, %v919
  %v3267 = vmul.f32 %v3265, %v919
  %v3268 = vsub.f32 %v3258, %v3266
  %v3269 = vsub.f32 %v3259, %v3267
  %v3270 = vmul.f32 %v3268, %v3268
  %v3271 = vmul.f32 %v3269, %v3269
  %v3272 = vsel %vm67, %v3270, 0.0
  %3273 = vadd.xlane.f32.xlu0 %v3272
  %v3274 = vpop.xlane.xlu0 %3273
  %v3275 = vsel %vm67, %v3271, 0.0
  %3276 = vadd.xlane.f32.xlu0 %v3275
  %v3277 = vpop.xlane.xlu0 %3276
  %v3278 = vmul.f32 %v3274, %v919
  %v3279 = vmul.f32 %v3277, %v919
  %v3280 = vadd.f32 %v3278, 1e-05
  %v3281 = vadd.f32 %v3279, 1e-05
  %v3282 = vrsqrt.pop %v3280
  %v3283 = vrsqrt.pop %v3281
  %v3284 = vmul.f32 %v3268, %v3282
  %v3285 = vmul.f32 %v3269, %v3283
  %s3286 = scalar_lea.vmem %s6, 2
  %v3287 = vld [vmem:[%s3286] sm:$0x1]
  %v3289 = vlaneseq
  %v3290 = vshrl.u32 %v3289, 7
  %v3291 = vsub.s32 0, %v3290
  %v3292 = vrot.slane %v3287, %v3291
  %v3294 = vmul.f32 %v3284, %v3292
  %v3295 = vmul.f32 %v3285, %v3292
  %s3296 = scalar_lea.vmem %s7, 2
  %v3297 = vld [vmem:[%s3296] sm:$0x1]
  %v3299 = vlaneseq
  %v3300 = vshrl.u32 %v3299, 7
  %v3301 = vsub.s32 0, %v3300
  %v3302 = vrot.slane %v3297, %v3301
  %v3304 = vadd.f32 %v3294, %v3302
  %v3305 = vadd.f32 %v3295, %v3302
  %s3306 = scalar_lea.vmem %s8, 128
  %v3307 = vld [vmem:[%s3306] sm:$0xff]
  %v3308 = vld [vmem:[%s3306 + $0x8] sm:$0xff]
  %v3309 = vld [vmem:[%s3306 + $0x10] sm:$0xff]
  %v3310 = vld [vmem:[%s3306 + $0x18] sm:$0xff]
  %v3311 = vld [vmem:[%s3306 + $0x20] sm:$0xff]
  %v3312 = vld [vmem:[%s3306 + $0x28] sm:$0xff]
  %v3313 = vld [vmem:[%s3306 + $0x30] sm:$0xff]
  %v3314 = vld [vmem:[%s3306 + $0x38] sm:$0xff]
  %s3315 = scalar_lea.vmem %s9, 4
  %v3316 = vld [vmem:[%s3315] sm:$0x3]
  %v3318 = vlaneseq
  %v3319 = vshrl.u32 %v3318, 7
  %v3320 = vsub.s32 0, %v3319
  %v3321 = vrot.slane %v3316, %v3320
  %v3322 = vlaneseq
  %v3323 = vshrl.u32 %v3322, 7
  %v3324 = vsub.s32 1, %v3323
  %v3325 = vrot.slane %v3316, %v3324
  %v3329 = vsel %vm67, %v3304, 0
  %v3332 = vsel %vm67, %v3305, 0
  %3334 = vmatprep.subr.mxu0 %v3308
  %3335 = vmatpush1.msra.mxu0 %v3307
  %3336 = vmatprep.subr.mxu0 %v3310
  %3337 = vmatpush1.msra.mxu0 %v3309
  %3338 = vmatprep.subr.mxu0 %v3312
  %3339 = vmatpush1.msra.mxu0 %v3311
  %3340 = vmatprep.subr.mxu0 %v3314
  %3341 = vmatpush1.msra.mxu0 %v3313
  %3342 = vmatprep.subr.mxu0 0.0
  %3343 = vmatpush1.msra.mxu0 0.0
  %3344 = vmatprep.subr.mxu0 0.0
  %3345 = vmatpush1.msra.mxu0 0.0
  %3346 = vmatprep.subr.mxu0 0.0
  %3347 = vmatpush1.msra.mxu0 0.0
  %3348 = vmatprep.subr.mxu0 0.0
  %3349 = vmatpush1.msra.mxu0 0.0
  %3350 = vmatprep.subr.mxu0 0.0
  %3351 = vmatpush1.msra.mxu0 0.0
  %3352 = vmatprep.subr.mxu0 0.0
  %3353 = vmatpush1.msra.mxu0 0.0
  %3354 = vmatprep.subr.mxu0 0.0
  %3355 = vmatpush1.msra.mxu0 0.0
  %3356 = vmatprep.subr.mxu0 0.0
  %3357 = vmatpush1.msra.mxu0 0.0
  %3358 = vmatprep.subr.mxu0 0.0
  %3359 = vmatpush1.msra.mxu0 0.0
  %3360 = vmatprep.subr.mxu0 0.0
  %3361 = vmatpush1.msra.mxu0 0.0
  %3362 = vmatprep.subr.mxu0 0.0
  %3363 = vmatpush1.msra.mxu0 0.0
  %3364 = vmatprep.subr.mxu0 0.0
  %3365 = vmatpush1.msra.mxu0 0.0
  %3366 = vmatprep.subr.mxu0 0.0
  %3367 = vmatpush1.msra.mxu0 0.0
  %3368 = vmatprep.subr.mxu0 0.0
  %3369 = vmatpush1.msra.mxu0 0.0
  %3370 = vmatprep.subr.mxu0 0.0
  %3371 = vmatpush1.msra.mxu0 0.0
  %3372 = vmatprep.subr.mxu0 0.0
  %3373 = vmatpush1.msra.mxu0 0.0
  %3374 = vmatprep.subr.mxu0 0.0
  %3375 = vmatpush1.msra.mxu0 0.0
  %3376 = vmatprep.subr.mxu0 0.0
  %3377 = vmatpush1.msra.mxu0 0.0
  %3378 = vmatprep.subr.mxu0 0.0
  %3379 = vmatpush1.msra.mxu0 0.0
  %3380 = vmatprep.subr.mxu0 0.0
  %3381 = vmatpush1.msra.mxu0 0.0
  %3382 = vmatprep.subr.mxu0 0.0
  %3383 = vmatpush1.msra.mxu0 0.0
  %3384 = vmatprep.subr.mxu0 0.0
  %3385 = vmatpush1.msra.mxu0 0.0
  %3386 = vmatprep.subr.mxu0 0.0
  %3387 = vmatpush1.msra.mxu0 0.0
  %3388 = vmatprep.subr.mxu0 0.0
  %3389 = vmatpush1.msra.mxu0 0.0
  %3390 = vmatprep.subr.mxu0 0.0
  %3391 = vmatpush1.msra.mxu0 0.0
  %3392 = vmatprep.subr.mxu0 0.0
  %3393 = vmatpush1.msra.mxu0 0.0
  %3394 = vmatprep.subr.mxu0 0.0
  %3395 = vmatpush1.msra.mxu0 0.0
  %3396 = vmatprep.subr.mxu0 0.0
  %3397 = vmatpush1.msra.mxu0 0.0
  %3398 = vmatprep.mubr.f32.mxu0 0.0
  %3399 = vmatmul.mubr.f32.gmra.mrb[0].mxu0 %v3329
  %v3400 = vpop.f32.mrb[0].mxu0
  %v3401 = vadd.f32 %v3321, %v3400
  %v3402 = vpop.f32.mrb[0].mxu0
  %v3403 = vadd.f32 %v3325, %v3402
  %3404 = vmatprep.mubr.f32.mxu0 0.0
  %3405 = vmatmul.mubr.f32.gmra.mrb[0].mxu0 %v3332
  %v3406 = vpop.f32.mrb[0].mxu0
  %v3407 = vadd.f32 %v3321, %v3406
  %v3408 = vpop.f32.mrb[0].mxu0
  %v3409 = vadd.f32 %v3325, %v3408
  %3410 = vdwg.mxu0
  %v3411 = vmax.f32 %v3401, 0.0
  %v3412 = vmax.f32 %v3403, 0.0
  %v3413 = vmax.f32 %v3407, 0.0
  %v3414 = vmax.f32 %v3409, 0.0
  %s3415 = scalar_lea.vmem %s10, 512
  %v3416 = vld [vmem:[%s3415] sm:$0xff]
  %v3417 = vld [vmem:[%s3415 + $0x8] sm:$0xff]
  %v3418 = vld [vmem:[%s3415 + $0x10] sm:$0xff]
  %v3419 = vld [vmem:[%s3415 + $0x18] sm:$0xff]
  %v3420 = vld [vmem:[%s3415 + $0x20] sm:$0xff]
  %v3421 = vld [vmem:[%s3415 + $0x28] sm:$0xff]
  %v3422 = vld [vmem:[%s3415 + $0x30] sm:$0xff]
  %v3423 = vld [vmem:[%s3415 + $0x38] sm:$0xff]
  %v3424 = vld [vmem:[%s3415 + $0x40] sm:$0xff]
  %v3425 = vld [vmem:[%s3415 + $0x48] sm:$0xff]
  %v3426 = vld [vmem:[%s3415 + $0x50] sm:$0xff]
  %v3427 = vld [vmem:[%s3415 + $0x58] sm:$0xff]
  %v3428 = vld [vmem:[%s3415 + $0x60] sm:$0xff]
  %v3429 = vld [vmem:[%s3415 + $0x68] sm:$0xff]
  %v3430 = vld [vmem:[%s3415 + $0x70] sm:$0xff]
  %v3431 = vld [vmem:[%s3415 + $0x78] sm:$0xff]
  %v3432 = vld [vmem:[%s3415 + $0x80] sm:$0xff]
  %v3433 = vld [vmem:[%s3415 + $0x88] sm:$0xff]
  %v3434 = vld [vmem:[%s3415 + $0x90] sm:$0xff]
  %v3435 = vld [vmem:[%s3415 + $0x98] sm:$0xff]
  %v3436 = vld [vmem:[%s3415 + $0xa0] sm:$0xff]
  %v3437 = vld [vmem:[%s3415 + $0xa8] sm:$0xff]
  %v3438 = vld [vmem:[%s3415 + $0xb0] sm:$0xff]
  %v3439 = vld [vmem:[%s3415 + $0xb8] sm:$0xff]
  %v3440 = vld [vmem:[%s3415 + $0xc0] sm:$0xff]
  %v3441 = vld [vmem:[%s3415 + $0xc8] sm:$0xff]
  %v3442 = vld [vmem:[%s3415 + $0xd0] sm:$0xff]
  %v3443 = vld [vmem:[%s3415 + $0xd8] sm:$0xff]
  %v3444 = vld [vmem:[%s3415 + $0xe0] sm:$0xff]
  %v3445 = vld [vmem:[%s3415 + $0xe8] sm:$0xff]
  %v3446 = vld [vmem:[%s3415 + $0xf0] sm:$0xff]
  %v3447 = vld [vmem:[%s3415 + $0xf8] sm:$0xff]
  %s3448 = scalar_lea.vmem %s11, 2
  %v3449 = vld [vmem:[%s3448] sm:$0x1]
  %v3451 = vlaneseq
  %v3452 = vshrl.u32 %v3451, 7
  %v3453 = vsub.s32 0, %v3452
  %v3454 = vrot.slane %v3449, %v3453
  %3456 = vmatprep.subr.mxu0 0.0
  %3457 = vmatpush1.msra.mxu0 %v3416
  %3458 = vmatprep.subr.mxu0 0.0
  %3459 = vmatpush1.msra.mxu0 %v3417
  %3460 = vmatprep.subr.mxu0 0.0
  %3461 = vmatpush1.msra.mxu0 %v3418
  %3462 = vmatprep.subr.mxu0 0.0
  %3463 = vmatpush1.msra.mxu0 %v3419
  %3464 = vmatprep.subr.mxu0 0.0
  %3465 = vmatpush1.msra.mxu0 %v3420
  %3466 = vmatprep.subr.mxu0 0.0
  %3467 = vmatpush1.msra.mxu0 %v3421
  %3468 = vmatprep.subr.mxu0 0.0
  %3469 = vmatpush1.msra.mxu0 %v3422
  %3470 = vmatprep.subr.mxu0 0.0
  %3471 = vmatpush1.msra.mxu0 %v3423
  %3472 = vmatprep.subr.mxu0 0.0
  %3473 = vmatpush1.msra.mxu0 %v3424
  %3474 = vmatprep.subr.mxu0 0.0
  %3475 = vmatpush1.msra.mxu0 %v3425
  %3476 = vmatprep.subr.mxu0 0.0
  %3477 = vmatpush1.msra.mxu0 %v3426
  %3478 = vmatprep.subr.mxu0 0.0
  %3479 = vmatpush1.msra.mxu0 %v3427
  %3480 = vmatprep.subr.mxu0 0.0
  %3481 = vmatpush1.msra.mxu0 %v3428
  %3482 = vmatprep.subr.mxu0 0.0
  %3483 = vmatpush1.msra.mxu0 %v3429
  %3484 = vmatprep.subr.mxu0 0.0
  %3485 = vmatpush1.msra.mxu0 %v3430
  %3486 = vmatprep.subr.mxu0 0.0
  %3487 = vmatpush1.msra.mxu0 %v3431
  %3488 = vmatprep.subr.mxu0 0.0
  %3489 = vmatpush1.msra.mxu0 %v3432
  %3490 = vmatprep.subr.mxu0 0.0
  %3491 = vmatpush1.msra.mxu0 %v3433
  %3492 = vmatprep.subr.mxu0 0.0
  %3493 = vmatpush1.msra.mxu0 %v3434
  %3494 = vmatprep.subr.mxu0 0.0
  %3495 = vmatpush1.msra.mxu0 %v3435
  %3496 = vmatprep.subr.mxu0 0.0
  %3497 = vmatpush1.msra.mxu0 %v3436
  %3498 = vmatprep.subr.mxu0 0.0
  %3499 = vmatpush1.msra.mxu0 %v3437
  %3500 = vmatprep.subr.mxu0 0.0
  %3501 = vmatpush1.msra.mxu0 %v3438
  %3502 = vmatprep.subr.mxu0 0.0
  %3503 = vmatpush1.msra.mxu0 %v3439
  %3504 = vmatprep.subr.mxu0 0.0
  %3505 = vmatpush1.msra.mxu0 %v3440
  %3506 = vmatprep.subr.mxu0 0.0
  %3507 = vmatpush1.msra.mxu0 %v3441
  %3508 = vmatprep.subr.mxu0 0.0
  %3509 = vmatpush1.msra.mxu0 %v3442
  %3510 = vmatprep.subr.mxu0 0.0
  %3511 = vmatpush1.msra.mxu0 %v3443
  %3512 = vmatprep.subr.mxu0 0.0
  %3513 = vmatpush1.msra.mxu0 %v3444
  %3514 = vmatprep.subr.mxu0 0.0
  %3515 = vmatpush1.msra.mxu0 %v3445
  %3516 = vmatprep.subr.mxu0 0.0
  %3517 = vmatpush1.msra.mxu0 %v3446
  %3518 = vmatprep.subr.mxu0 0.0
  %3519 = vmatpush1.msra.mxu0 %v3447
  %3520 = vmatprep.mubr.f32.mxu0 %v3412
  %3521 = vmatmul.mubr.f32.gmra.mrb[0].mxu0 %v3411
  %v3522 = vpop.f32.mrb[0].mxu0
  %v3523 = vadd.f32 %v3454, %v3522
  %v3524 = vpop.f32.mrb[0].mxu0
  %3525 = vmatprep.mubr.f32.mxu0 %v3414
  %3526 = vmatmul.mubr.f32.gmra.mrb[0].mxu0 %v3413
  %v3527 = vpop.f32.mrb[0].mxu0
  %v3528 = vadd.f32 %v3454, %v3527
  %v3529 = vpop.f32.mrb[0].mxu0
  %3530 = vdwg.mxu0
  %v3531 = vadd.f32 %v3304, %v3523
  %v3532 = vadd.f32 %v3305, %v3528
  %v3533 = vsel %vm67, %v3531, 0.0
  %3534 = vadd.xlane.f32.xlu0 %v3533
  %v3535 = vpop.xlane.xlu0 %3534
  %v3536 = vsel %vm67, %v3532, 0.0
  %3537 = vadd.xlane.f32.xlu0 %v3536
  %v3538 = vpop.xlane.xlu0 %3537
  %v3539 = vmul.f32 %v3535, %v919
  %v3540 = vmul.f32 %v3538, %v919
  %v3541 = vsub.f32 %v3531, %v3539
  %v3542 = vsub.f32 %v3532, %v3540
  %v3543 = vmul.f32 %v3541, %v3541
  %v3544 = vmul.f32 %v3542, %v3542
  %v3545 = vsel %vm67, %v3543, 0.0
  %3546 = vadd.xlane.f32.xlu0 %v3545
  %v3547 = vpop.xlane.xlu0 %3546
  %v3548 = vsel %vm67, %v3544, 0.0
  %3549 = vadd.xlane.f32.xlu0 %v3548
  %v3550 = vpop.xlane.xlu0 %3549
  %v3551 = vmul.f32 %v3547, %v919
  %v3552 = vmul.f32 %v3550, %v919
  %v3553 = vadd.f32 %v3551, 1e-05
  %v3554 = vadd.f32 %v3552, 1e-05
  %v3555 = vrsqrt.pop %v3553
  %v3556 = vrsqrt.pop %v3554
  %v3557 = vmul.f32 %v3541, %v3555
  %v3558 = vmul.f32 %v3542, %v3556
  %s3559 = scalar_lea.vmem %s12, 2
  %v3560 = vld [vmem:[%s3559] sm:$0x1]
  %v3562 = vlaneseq
  %v3563 = vshrl.u32 %v3562, 7
  %v3564 = vsub.s32 0, %v3563
  %v3565 = vrot.slane %v3560, %v3564
  %v3567 = vmul.f32 %v3557, %v3565
  %v3568 = vmul.f32 %v3558, %v3565
  %s3569 = scalar_lea.vmem %s13, 2
  %v3570 = vld [vmem:[%s3569] sm:$0x1]
  %v3572 = vlaneseq
  %v3573 = vshrl.u32 %v3572, 7
  %v3574 = vsub.s32 0, %v3573
  %v3575 = vrot.slane %v3570, %v3574
  %v3577 = vadd.f32 %v3567, %v3575
  %v3578 = vadd.f32 %v3568, %v3575
  %v3579 = vld [vmem:[%s14] sm:$0xff]
  %v3580 = vld [vmem:[%s14 + $0x8] sm:$0xff]
  %v3581 = vld [vmem:[%s14 + $0x10] sm:$0xff]
  %v3582 = vld [vmem:[%s14 + $0x18] sm:$0xff]
  %v3583 = vld [vmem:[%s15] sm:$0x1]
  %v3585 = vlaneseq
  %v3586 = vshrl.u32 %v3585, 7
  %v3587 = vsub.s32 0, %v3586
  %v3588 = vrot.slane %v3583, %v3587
  %v3591 = vsel %vm67, %v3577, 0
  %v3594 = vsel %vm67, %v3578, 0
  %3596 = vmatprep.subr.mxu0 0.0
  %3597 = vmatpush1.msra.mxu0 %v3579
  %3598 = vmatprep.subr.mxu0 0.0
  %3599 = vmatpush1.msra.mxu0 %v3580
  %3600 = vmatprep.subr.mxu0 0.0
  %3601 = vmatpush1.msra.mxu0 %v3581
  %3602 = vmatprep.subr.mxu0 0.0
  %3603 = vmatpush1.msra.mxu0 %v3582
  %3604 = vmatprep.subr.mxu0 0.0
  %3605 = vmatpush1.msra.mxu0 0.0
  %3606 = vmatprep.subr.mxu0 0.0
  %3607 = vmatpush1.msra.mxu0 0.0
  %3608 = vmatprep.subr.mxu0 0.0
  %3609 = vmatpush1.msra.mxu0 0.0
  %3610 = vmatprep.subr.mxu0 0.0
  %3611 = vmatpush1.msra.mxu0 0.0
  %3612 = vmatprep.subr.mxu0 0.0
  %3613 = vmatpush1.msra.mxu0 0.0
  %3614 = vmatprep.subr.mxu0 0.0
  %3615 = vmatpush1.msra.mxu0 0.0
  %3616 = vmatprep.subr.mxu0 0.0
  %3617 = vmatpush1.msra.mxu0 0.0
  %3618 = vmatprep.subr.mxu0 0.0
  %3619 = vmatpush1.msra.mxu0 0.0
  %3620 = vmatprep.subr.mxu0 0.0
  %3621 = vmatpush1.msra.mxu0 0.0
  %3622 = vmatprep.subr.mxu0 0.0
  %3623 = vmatpush1.msra.mxu0 0.0
  %3624 = vmatprep.subr.mxu0 0.0
  %3625 = vmatpush1.msra.mxu0 0.0
  %3626 = vmatprep.subr.mxu0 0.0
  %3627 = vmatpush1.msra.mxu0 0.0
  %3628 = vmatprep.subr.mxu0 0.0
  %3629 = vmatpush1.msra.mxu0 0.0
  %3630 = vmatprep.subr.mxu0 0.0
  %3631 = vmatpush1.msra.mxu0 0.0
  %3632 = vmatprep.subr.mxu0 0.0
  %3633 = vmatpush1.msra.mxu0 0.0
  %3634 = vmatprep.subr.mxu0 0.0
  %3635 = vmatpush1.msra.mxu0 0.0
  %3636 = vmatprep.subr.mxu0 0.0
  %3637 = vmatpush1.msra.mxu0 0.0
  %3638 = vmatprep.subr.mxu0 0.0
  %3639 = vmatpush1.msra.mxu0 0.0
  %3640 = vmatprep.subr.mxu0 0.0
  %3641 = vmatpush1.msra.mxu0 0.0
  %3642 = vmatprep.subr.mxu0 0.0
  %3643 = vmatpush1.msra.mxu0 0.0
  %3644 = vmatprep.subr.mxu0 0.0
  %3645 = vmatpush1.msra.mxu0 0.0
  %3646 = vmatprep.subr.mxu0 0.0
  %3647 = vmatpush1.msra.mxu0 0.0
  %3648 = vmatprep.subr.mxu0 0.0
  %3649 = vmatpush1.msra.mxu0 0.0
  %3650 = vmatprep.subr.mxu0 0.0
  %3651 = vmatpush1.msra.mxu0 0.0
  %3652 = vmatprep.subr.mxu0 0.0
  %3653 = vmatpush1.msra.mxu0 0.0
  %3654 = vmatprep.subr.mxu0 0.0
  %3655 = vmatpush1.msra.mxu0 0.0
  %3656 = vmatprep.subr.mxu0 0.0
  %3657 = vmatpush1.msra.mxu0 0.0
  %3658 = vmatprep.subr.mxu0 0.0
  %3659 = vmatpush1.msra.mxu0 0.0
  %3660 = vmatprep.mubr.f32.mxu0 0.0
  %3661 = vmatmul.mubr.f32.gmra.mrb[0].mxu0 %v3591
  %v3662 = vpop.f32.mrb[0].mxu0
  %v3663 = vadd.f32 %v3588, %v3662
  %v3664 = vpop.f32.mrb[0].mxu0
  %3665 = vmatprep.mubr.f32.mxu0 0.0
  %3666 = vmatmul.mubr.f32.gmra.mrb[0].mxu0 %v3594
  %v3667 = vpop.f32.mrb[0].mxu0
  %v3668 = vadd.f32 %v3588, %v3667
  %v3669 = vpop.f32.mrb[0].mxu0
  %3670 = vdwg.mxu0
  %vm3671 = vcmask 523264
  %3672 = vst.msk [vmem:[%s16] sm:$0xff] %vm3671, %v3663
  %3673 = vst.msk [vmem:[%s16 + $0x8] sm:$0xff] %vm3671, %v3668
  // Predicated region
  $region66: #{transformer_forward.1} parent=0 // pred_check
    _
  $region67: #{transformer_forward.1} parent=0 // pred_check_branch
    %3675 = sbr.rel (0) target = $region69
  $region68: #{transformer_forward.1} parent=0 // pred_region
    _
  $region69: #{transformer_forward.1} parent=0 // pred_fallthru
    _
  // Predicated region
  $region70: #{transformer_forward.1} parent=0 // pred_check
    _
  $region71: #{transformer_forward.1} parent=0 // pred_check_branch
    %3677 = sbr.rel (0) target = $region73
  $region72: #{transformer_forward.1} parent=0 // pred_region
    _
  $region73: #{transformer_forward.1} parent=0 // pred_fallthru
    _

</llo_original>
